<compile_context>
chip_gen: v6e
topology: v6e:2x2x1
jax: 0.10.0
libtpu: 0.0.40
codegen_flags: <defaults>
</compile_context>

<pallas_src>
import functools
import math

import jax
import jax.numpy as jnp
from jax.experimental import pallas as pl
from jax.experimental.pallas import tpu as pltpu

MAX_SEQ_LEN = 512
LN_EPS = 1e-12


# ----------------------------- in-kernel helpers -----------------------------

def _layernorm(y, g, b, eps):
    mu = jnp.mean(y, axis=-1, keepdims=True)
    var = jnp.mean(jnp.square(y - mu), axis=-1, keepdims=True)
    return (y - mu) * jax.lax.rsqrt(var + eps) * g + b


# ----------------------------- fused Pallas kernel -----------------------------

def _bert_emb_kernel(*refs, num_layers, num_heads, head_dim, eps):
    """Full BERT encoder + masked-mean pooling for one batch element.

    refs = (word, mask, pos, typ, emb_g, emb_b,
            [qkv_w, qkv_b, ao_w, ao_b, ln1_g, ln1_b,
             ff1_w, ff1_b, ff2_w, ff2_b, ln2_g, ln2_b] * num_layers,
            out)
    """
    word_ref, mask_ref, pos_ref, typ_ref, eg_ref, eb_ref = refs[:6]
    layer_refs = refs[6:6 + 12 * num_layers]
    o_ref = refs[-1]

    H = num_heads * head_dim
    scale = 1.0 / math.sqrt(head_dim)

    # ---- embeddings: word + position + token-type, then LayerNorm ----
    h = word_ref[0] + pos_ref[...] + typ_ref[...]                   # (S, H)
    h = _layernorm(h, eg_ref[...], eb_ref[...], eps)

    m = mask_ref[0]                                                  # (1, S)
    neg = (m - 1.0) * 1e9                                            # additive key-padding mask

    # ---- transformer layers (statically unrolled; activations stay in VMEM) ----
    for l in range(num_layers):
        (wqkv, bqkv, wo, bo, g1, b1,
         w1, bf1, w2, bf2, g2, b2) = layer_refs[12 * l:12 * (l + 1)]

        x = h
        # fused QKV projection: single MXU pass over the [H, 3H] weight
        qkv = jnp.dot(x, wqkv[...], preferred_element_type=jnp.float32) + bqkv[...]

        # per-head attention; heads split in-kernel with static lane slices
        ctx_parts = []
        for hh in range(num_heads):
            lo = hh * head_dim
            q = qkv[:, lo:lo + head_dim]                             # (S, Dh)
            k = qkv[:, H + lo:H + lo + head_dim]                     # (S, Dh)
            v = qkv[:, 2 * H + lo:2 * H + lo + head_dim]             # (S, Dh)
            s = jax.lax.dot_general(q, k, (((1,), (1,)), ((), ())),
                                    preferred_element_type=jnp.float32) * scale
            s = s + neg
            s = s - jnp.max(s, axis=-1, keepdims=True)
            p = jnp.exp(s)
            p = p * pl.reciprocal(jnp.sum(p, axis=-1, keepdims=True), approx=True)
            ctx_parts.append(jnp.dot(p, v, preferred_element_type=jnp.float32))
        ctx = ctx_parts[0] if num_heads == 1 else jnp.concatenate(ctx_parts, axis=-1)

        # output projection + residual + LayerNorm
        attn = jnp.dot(ctx, wo[...], preferred_element_type=jnp.float32) + bo[...]
        h1 = _layernorm(attn + x, g1[...], b1[...], eps)

        # FFN: dense + GELU + dense + residual + LayerNorm
        # TODO(synk): HF BERT uses exact erf-based GELU; tanh approximation here.
        ff = jnp.dot(h1, w1[...], preferred_element_type=jnp.float32) + bf1[...]
        ff = jax.nn.gelu(ff, approximate=True)
        ff = jnp.dot(ff, w2[...], preferred_element_type=jnp.float32) + bf2[...]
        h = _layernorm(ff + h1, g2[...], b2[...], eps)

    # ---- masked mean pooling: sum(out*mask) / clamp(sum(mask), 1) ----
    pooled = jnp.dot(m, h, preferred_element_type=jnp.float32)       # (1, H)
    cnt = jnp.maximum(jnp.sum(m), 1.0)
    o_ref[0] = (pooled / cnt).astype(o_ref.dtype)


def bert_emb_fused(word_h, mask3, pos, typ, emb_g, emb_b, layer_params,
                   *, num_heads, eps=LN_EPS):
    """word_h: [B, S, H]; mask3: [B, 1, S] -> pooled [B, H]."""
    B, S, H = word_h.shape
    num_layers = len(layer_params)
    I = layer_params[0]["ff1_w"].shape[1]
    head_dim = H // num_heads
    row = lambda v: v.reshape(1, -1)

    def rep(shape):
        # Full-array block, constant index map: fetched once, stays resident.
        return pl.BlockSpec(shape, lambda b, _n=len(shape): (0,) * _n)

    in_specs = [
        pl.BlockSpec((1, S, H), lambda b: (b, 0, 0)),   # word embeddings
        pl.BlockSpec((1, 1, S), lambda b: (b, 0, 0)),   # attention/pooling mask
        rep((S, H)),                                    # position embeddings
        rep((1, H)), rep((1, H)), rep((1, H)),          # type emb, emb LN g/b
    ]
    args = [word_h, mask3, pos, row(typ), row(emb_g), row(emb_b)]

    for lp in layer_params:
        in_specs += [
            rep((H, 3 * H)), rep((1, 3 * H)),           # fused QKV
            rep((H, H)), rep((1, H)),                   # attn output proj
            rep((1, H)), rep((1, H)),                   # LN1
            rep((H, I)), rep((1, I)),                   # FFN up
            rep((I, H)), rep((1, H)),                   # FFN down
            rep((1, H)), rep((1, H)),                   # LN2
        ]
        args += [lp["qkv_w"], row(lp["qkv_b"]),
                 lp["ao_w"], row(lp["ao_b"]),
                 row(lp["ln1_g"]), row(lp["ln1_b"]),
                 lp["ff1_w"], row(lp["ff1_b"]),
                 lp["ff2_w"], row(lp["ff2_b"]),
                 row(lp["ln2_g"]), row(lp["ln2_b"])]

    out = pl.pallas_call(
        functools.partial(_bert_emb_kernel, num_layers=num_layers,
                          num_heads=num_heads, head_dim=head_dim, eps=eps),
        out_shape=jax.ShapeDtypeStruct((B, 1, H), jnp.float32),
        grid=(B,),
        in_specs=in_specs,
        out_specs=pl.BlockSpec((1, 1, H), lambda b: (b, 0, 0)),
        compiler_params=pltpu.CompilerParams(dimension_semantics=("parallel",)),
    )(*args)
    return out.reshape(B, H)


# ----------------------------- model glue -----------------------------

def init_params(key, *, vocab, hidden, heads, layers, intermediate, max_pos):
    def nrm(k, shape):
        return 0.02 * jax.random.normal(k, shape, dtype=jnp.float32)

    keys = iter(jax.random.split(key, 8 + layers * 8))
    params = {
        "word_emb": nrm(next(keys), (vocab, hidden)),
        "pos_emb": nrm(next(keys), (max_pos, hidden)),
        "type_emb": nrm(next(keys), (2, hidden)),
        "emb_ln_g": jnp.ones((hidden,), jnp.float32),
        "emb_ln_b": jnp.zeros((hidden,), jnp.float32),
        "layers": [],
    }
    for _ in range(layers):
        lp = {
            # Q|K|V fused into a single [H, 3H] projection (mathematically
            # identical to three separate [H, H] projections).
            "qkv_w": nrm(next(keys), (hidden, 3 * hidden)),
            "qkv_b": jnp.zeros((3 * hidden,), jnp.float32),
            "ao_w": nrm(next(keys), (hidden, hidden)),
            "ao_b": jnp.zeros((hidden,), jnp.float32),
            "ln1_g": jnp.ones((hidden,), jnp.float32),
            "ln1_b": jnp.zeros((hidden,), jnp.float32),
            "ff1_w": nrm(next(keys), (hidden, intermediate)),
            "ff1_b": jnp.zeros((intermediate,), jnp.float32),
            "ff2_w": nrm(next(keys), (intermediate, hidden)),
            "ff2_b": jnp.zeros((hidden,), jnp.float32),
            "ln2_g": jnp.ones((hidden,), jnp.float32),
            "ln2_b": jnp.zeros((hidden,), jnp.float32),
        }
        params["layers"].append(lp)
    return params


def bert_emb_forward(params, x, *, heads):
    # Truncate to max_seq_len (matches BertEmb.embed).
    if x.shape[1] > MAX_SEQ_LEN:
        x = x[:, :MAX_SEQ_LEN]
    B, S = x.shape

    mask_f = (x > 0).astype(jnp.float32)                       # [B, S]

    # Embedding-table gather stays in plain JAX; everything downstream
    # (embedding LN, all encoder layers, masked-mean pooling) is one
    # fused Pallas kernel.
    word_h = jnp.take(params["word_emb"], x, axis=0)           # [B, S, H]

    return bert_emb_fused(word_h, mask_f.reshape(B, 1, S),
                          params["pos_emb"][:S], params["type_emb"][0],
                          params["emb_ln_g"], params["emb_ln_b"],
                          params["layers"], num_heads=heads)


if __name__ == "__main__":
    B, S, H = 2, 8, 32
    HEADS, LAYERS, INTER, VOCAB = 2, 2, 64, 50

    key = jax.random.PRNGKey(0)
    kp, kx = jax.random.split(key)
    params = init_params(kp, vocab=VOCAB, hidden=H, heads=HEADS,
                         layers=LAYERS, intermediate=INTER, max_pos=MAX_SEQ_LEN)

    # Token ids with some 0-padding (id 0 == pad, as in the PyTorch mask x > 0).
    x = jax.random.randint(kx, (B, S), 1, VOCAB, dtype=jnp.int32)
    x = x.at[1, 5:].set(0)

    fwd = jax.jit(functools.partial(bert_emb_forward, heads=HEADS))
    out = fwd(params, x)
    out = jax.block_until_ready(out)
    assert out.shape == (B, H) and out.dtype == jnp.float32
    assert bool(jnp.all(jnp.isfinite(out)))
    print("KERNEL_OK")
</pallas_src>

<mosaic_0001>
module attributes {stable_mosaic.version = 11 : i64} {
  func.func @_bert_emb_kernel(%arg0: i32, %arg1: memref<1x8x32xf32, #tpu.memory_space<vmem>>, %arg2: memref<1x1x8xf32, #tpu.memory_space<vmem>>, %arg3: memref<8x32xf32, #tpu.memory_space<vmem>>, %arg4: memref<1x32xf32, #tpu.memory_space<vmem>>, %arg5: memref<1x32xf32, #tpu.memory_space<vmem>>, %arg6: memref<1x32xf32, #tpu.memory_space<vmem>>, %arg7: memref<32x96xf32, #tpu.memory_space<vmem>>, %arg8: memref<1x96xf32, #tpu.memory_space<vmem>>, %arg9: memref<32x32xf32, #tpu.memory_space<vmem>>, %arg10: memref<1x32xf32, #tpu.memory_space<vmem>>, %arg11: memref<1x32xf32, #tpu.memory_space<vmem>>, %arg12: memref<1x32xf32, #tpu.memory_space<vmem>>, %arg13: memref<32x64xf32, #tpu.memory_space<vmem>>, %arg14: memref<1x64xf32, #tpu.memory_space<vmem>>, %arg15: memref<64x32xf32, #tpu.memory_space<vmem>>, %arg16: memref<1x32xf32, #tpu.memory_space<vmem>>, %arg17: memref<1x32xf32, #tpu.memory_space<vmem>>, %arg18: memref<1x32xf32, #tpu.memory_space<vmem>>, %arg19: memref<32x96xf32, #tpu.memory_space<vmem>>, %arg20: memref<1x96xf32, #tpu.memory_space<vmem>>, %arg21: memref<32x32xf32, #tpu.memory_space<vmem>>, %arg22: memref<1x32xf32, #tpu.memory_space<vmem>>, %arg23: memref<1x32xf32, #tpu.memory_space<vmem>>, %arg24: memref<1x32xf32, #tpu.memory_space<vmem>>, %arg25: memref<32x64xf32, #tpu.memory_space<vmem>>, %arg26: memref<1x64xf32, #tpu.memory_space<vmem>>, %arg27: memref<64x32xf32, #tpu.memory_space<vmem>>, %arg28: memref<1x32xf32, #tpu.memory_space<vmem>>, %arg29: memref<1x32xf32, #tpu.memory_space<vmem>>, %arg30: memref<1x32xf32, #tpu.memory_space<vmem>>, %arg31: memref<1x1x32xf32, #tpu.memory_space<vmem>>) attributes {dimension_semantics = [#tpu.dimension_semantics<parallel>], iteration_bounds = array<i64: 2>, scalar_prefetch = 0 : i64, scratch_operands = 0 : i64, tpu.core_type = #tpu.core_type<tc>, window_params = [{transform_indices = @transform_0, window_bounds = array<i64: 1, 8, 32>}, {transform_indices = @transform_1, window_bounds = array<i64: 1, 1, 8>}, {pipeline_mode = #tpu.pipeline_mode<synchronous>, transform_indices = @transform_2, window_bounds = array<i64: 8, 32>}, {pipeline_mode = #tpu.pipeline_mode<synchronous>, transform_indices = @transform_3, window_bounds = array<i64: 1, 32>}, {pipeline_mode = #tpu.pipeline_mode<synchronous>, transform_indices = @transform_4, window_bounds = array<i64: 1, 32>}, {pipeline_mode = #tpu.pipeline_mode<synchronous>, transform_indices = @transform_5, window_bounds = array<i64: 1, 32>}, {pipeline_mode = #tpu.pipeline_mode<synchronous>, transform_indices = @transform_6, window_bounds = array<i64: 32, 96>}, {pipeline_mode = #tpu.pipeline_mode<synchronous>, transform_indices = @transform_7, window_bounds = array<i64: 1, 96>}, {pipeline_mode = #tpu.pipeline_mode<synchronous>, transform_indices = @transform_8, window_bounds = array<i64: 32, 32>}, {pipeline_mode = #tpu.pipeline_mode<synchronous>, transform_indices = @transform_9, window_bounds = array<i64: 1, 32>}, {pipeline_mode = #tpu.pipeline_mode<synchronous>, transform_indices = @transform_10, window_bounds = array<i64: 1, 32>}, {pipeline_mode = #tpu.pipeline_mode<synchronous>, transform_indices = @transform_11, window_bounds = array<i64: 1, 32>}, {pipeline_mode = #tpu.pipeline_mode<synchronous>, transform_indices = @transform_12, window_bounds = array<i64: 32, 64>}, {pipeline_mode = #tpu.pipeline_mode<synchronous>, transform_indices = @transform_13, window_bounds = array<i64: 1, 64>}, {pipeline_mode = #tpu.pipeline_mode<synchronous>, transform_indices = @transform_14, window_bounds = array<i64: 64, 32>}, {pipeline_mode = #tpu.pipeline_mode<synchronous>, transform_indices = @transform_15, window_bounds = array<i64: 1, 32>}, {pipeline_mode = #tpu.pipeline_mode<synchronous>, transform_indices = @transform_16, window_bounds = array<i64: 1, 32>}, {pipeline_mode = #tpu.pipeline_mode<synchronous>, transform_indices = @transform_17, window_bounds = array<i64: 1, 32>}, {pipeline_mode = #tpu.pipeline_mode<synchronous>, transform_indices = @transform_18, window_bounds = array<i64: 32, 96>}, {pipeline_mode = #tpu.pipeline_mode<synchronous>, transform_indices = @transform_19, window_bounds = array<i64: 1, 96>}, {pipeline_mode = #tpu.pipeline_mode<synchronous>, transform_indices = @transform_20, window_bounds = array<i64: 32, 32>}, {pipeline_mode = #tpu.pipeline_mode<synchronous>, transform_indices = @transform_21, window_bounds = array<i64: 1, 32>}, {pipeline_mode = #tpu.pipeline_mode<synchronous>, transform_indices = @transform_22, window_bounds = array<i64: 1, 32>}, {pipeline_mode = #tpu.pipeline_mode<synchronous>, transform_indices = @transform_23, window_bounds = array<i64: 1, 32>}, {pipeline_mode = #tpu.pipeline_mode<synchronous>, transform_indices = @transform_24, window_bounds = array<i64: 32, 64>}, {pipeline_mode = #tpu.pipeline_mode<synchronous>, transform_indices = @transform_25, window_bounds = array<i64: 1, 64>}, {pipeline_mode = #tpu.pipeline_mode<synchronous>, transform_indices = @transform_26, window_bounds = array<i64: 64, 32>}, {pipeline_mode = #tpu.pipeline_mode<synchronous>, transform_indices = @transform_27, window_bounds = array<i64: 1, 32>}, {pipeline_mode = #tpu.pipeline_mode<synchronous>, transform_indices = @transform_28, window_bounds = array<i64: 1, 32>}, {pipeline_mode = #tpu.pipeline_mode<synchronous>, transform_indices = @transform_29, window_bounds = array<i64: 1, 32>}, {transform_indices = @transform_30, window_bounds = array<i64: 1, 1, 32>}]} {
    %c0 = arith.constant 0 : index
    %c0_0 = arith.constant 0 : index
    %c0_1 = arith.constant 0 : index
    %0 = vector.load %arg1[%c0, %c0_0, %c0_1] : memref<1x8x32xf32, #tpu.memory_space<vmem>>, vector<1x8x32xf32>
    %1 = vector.shape_cast %0 : vector<1x8x32xf32> to vector<8x32xf32>
    %c0_2 = arith.constant 0 : index
    %c0_3 = arith.constant 0 : index
    %2 = vector.load %arg3[%c0_2, %c0_3] : memref<8x32xf32, #tpu.memory_space<vmem>>, vector<8x32xf32>
    %3 = arith.addf %1, %2 : vector<8x32xf32>
    %c0_4 = arith.constant 0 : index
    %c0_5 = arith.constant 0 : index
    %4 = vector.load %arg4[%c0_4, %c0_5] : memref<1x32xf32, #tpu.memory_space<vmem>>, vector<1x32xf32>
    %5 = vector.broadcast %4 : vector<1x32xf32> to vector<8x32xf32>
    %6 = arith.addf %3, %5 : vector<8x32xf32>
    %c0_6 = arith.constant 0 : index
    %c0_7 = arith.constant 0 : index
    %7 = vector.load %arg5[%c0_6, %c0_7] : memref<1x32xf32, #tpu.memory_space<vmem>>, vector<1x32xf32>
    %c0_8 = arith.constant 0 : index
    %c0_9 = arith.constant 0 : index
    %8 = vector.load %arg6[%c0_8, %c0_9] : memref<1x32xf32, #tpu.memory_space<vmem>>, vector<1x32xf32>
    %cst = arith.constant dense<0.000000e+00> : vector<8xf32>
    %9 = vector.multi_reduction <add>, %6, %cst [1] : vector<8x32xf32> to vector<8xf32>
    %10 = vector.shape_cast %9 : vector<8xf32> to vector<8x1xf32>
    %cst_10 = arith.constant 3.200000e+01 : f32
    %11 = vector.broadcast %cst_10 : f32 to vector<8x1xf32>
    %12 = arith.divf %10, %11 : vector<8x1xf32>
    %13 = vector.broadcast %12 : vector<8x1xf32> to vector<8x32xf32>
    %14 = arith.subf %6, %13 : vector<8x32xf32>
    %15 = arith.mulf %14, %14 : vector<8x32xf32>
    %cst_11 = arith.constant dense<0.000000e+00> : vector<8xf32>
    %16 = vector.multi_reduction <add>, %15, %cst_11 [1] : vector<8x32xf32> to vector<8xf32>
    %17 = vector.shape_cast %16 : vector<8xf32> to vector<8x1xf32>
    %cst_12 = arith.constant 3.200000e+01 : f32
    %18 = vector.broadcast %cst_12 : f32 to vector<8x1xf32>
    %19 = arith.divf %17, %18 : vector<8x1xf32>
    %20 = vector.broadcast %12 : vector<8x1xf32> to vector<8x32xf32>
    %21 = arith.subf %6, %20 : vector<8x32xf32>
    %cst_13 = arith.constant 9.99999996E-13 : f32
    %22 = vector.broadcast %cst_13 : f32 to vector<8x1xf32>
    %23 = arith.addf %19, %22 : vector<8x1xf32>
    %24 = math.rsqrt %23 : vector<8x1xf32>
    %25 = vector.broadcast %24 : vector<8x1xf32> to vector<8x32xf32>
    %26 = arith.mulf %21, %25 : vector<8x32xf32>
    %27 = vector.broadcast %7 : vector<1x32xf32> to vector<8x32xf32>
    %28 = arith.mulf %26, %27 : vector<8x32xf32>
    %29 = vector.broadcast %8 : vector<1x32xf32> to vector<8x32xf32>
    %30 = arith.addf %28, %29 : vector<8x32xf32>
    %c0_14 = arith.constant 0 : index
    %c0_15 = arith.constant 0 : index
    %c0_16 = arith.constant 0 : index
    %31 = vector.load %arg2[%c0_14, %c0_15, %c0_16] : memref<1x1x8xf32, #tpu.memory_space<vmem>>, vector<1x1x8xf32>
    %32 = vector.shape_cast %31 : vector<1x1x8xf32> to vector<1x8xf32>
    %cst_17 = arith.constant 1.000000e+00 : f32
    %33 = vector.broadcast %cst_17 : f32 to vector<1x8xf32>
    %34 = arith.subf %32, %33 : vector<1x8xf32>
    %cst_18 = arith.constant 1.000000e+09 : f32
    %35 = vector.broadcast %cst_18 : f32 to vector<1x8xf32>
    %36 = arith.mulf %34, %35 : vector<1x8xf32>
    %c0_19 = arith.constant 0 : index
    %c0_20 = arith.constant 0 : index
    %37 = vector.load %arg7[%c0_19, %c0_20] : memref<32x96xf32, #tpu.memory_space<vmem>>, vector<32x96xf32>
    %cst_21 = arith.constant dense<0.000000e+00> : vector<8x96xf32>
    %38 = tpu.matmul %30, %37, %cst_21 {dimension_numbers = #tpu.dot_dimension_numbers<[1], [0], [0], [1], [0, 0, 1, 1], [], []>} : vector<8x32xf32>, vector<32x96xf32>, vector<8x96xf32> -> vector<8x96xf32>
    %c0_22 = arith.constant 0 : index
    %c0_23 = arith.constant 0 : index
    %39 = vector.load %arg8[%c0_22, %c0_23] : memref<1x96xf32, #tpu.memory_space<vmem>>, vector<1x96xf32>
    %40 = vector.broadcast %39 : vector<1x96xf32> to vector<8x96xf32>
    %41 = arith.addf %38, %40 : vector<8x96xf32>
    %42 = vector.extract_strided_slice %41 {offsets = [0, 0], sizes = [8, 16], strides = [1, 1]} : vector<8x96xf32> to vector<8x16xf32>
    %43 = vector.extract_strided_slice %41 {offsets = [0, 32], sizes = [8, 16], strides = [1, 1]} : vector<8x96xf32> to vector<8x16xf32>
    %44 = vector.extract_strided_slice %41 {offsets = [0, 64], sizes = [8, 16], strides = [1, 1]} : vector<8x96xf32> to vector<8x16xf32>
    %cst_24 = arith.constant dense<0.000000e+00> : vector<8x8xf32>
    %45 = tpu.matmul %42, %43, %cst_24 {dimension_numbers = #tpu.dot_dimension_numbers<[1], [1], [0], [0], [0, 0, 1, 0], [], []>} : vector<8x16xf32>, vector<8x16xf32>, vector<8x8xf32> -> vector<8x8xf32>
    %cst_25 = arith.constant 2.500000e-01 : f32
    %46 = vector.broadcast %cst_25 : f32 to vector<8x8xf32>
    %47 = arith.mulf %45, %46 : vector<8x8xf32>
    %48 = vector.broadcast %36 : vector<1x8xf32> to vector<8x8xf32>
    %49 = arith.addf %47, %48 : vector<8x8xf32>
    %cst_26 = arith.constant dense<0xFF800000> : vector<8xf32>
    %50 = vector.multi_reduction <maximumf>, %49, %cst_26 [1] : vector<8x8xf32> to vector<8xf32>
    %51 = vector.shape_cast %50 : vector<8xf32> to vector<8x1xf32>
    %52 = vector.broadcast %51 : vector<8x1xf32> to vector<8x8xf32>
    %53 = arith.subf %49, %52 : vector<8x8xf32>
    %54 = math.exp %53 : vector<8x8xf32>
    %cst_27 = arith.constant dense<0.000000e+00> : vector<8xf32>
    %55 = vector.multi_reduction <add>, %54, %cst_27 [1] : vector<8x8xf32> to vector<8xf32>
    %56 = vector.shape_cast %55 : vector<8xf32> to vector<8x1xf32>
    %57 = tpu.reciprocal %56 {approx = true} : vector<8x1xf32> -> vector<8x1xf32>
    %58 = vector.broadcast %57 : vector<8x1xf32> to vector<8x8xf32>
    %59 = arith.mulf %54, %58 : vector<8x8xf32>
    %cst_28 = arith.constant dense<0.000000e+00> : vector<8x16xf32>
    %60 = tpu.matmul %59, %44, %cst_28 {dimension_numbers = #tpu.dot_dimension_numbers<[1], [0], [0], [1], [0, 0, 1, 1], [], []>} : vector<8x8xf32>, vector<8x16xf32>, vector<8x16xf32> -> vector<8x16xf32>
    %61 = vector.extract_strided_slice %41 {offsets = [0, 16], sizes = [8, 16], strides = [1, 1]} : vector<8x96xf32> to vector<8x16xf32>
    %62 = vector.extract_strided_slice %41 {offsets = [0, 48], sizes = [8, 16], strides = [1, 1]} : vector<8x96xf32> to vector<8x16xf32>
    %63 = vector.extract_strided_slice %41 {offsets = [0, 80], sizes = [8, 16], strides = [1, 1]} : vector<8x96xf32> to vector<8x16xf32>
    %cst_29 = arith.constant dense<0.000000e+00> : vector<8x8xf32>
    %64 = tpu.matmul %61, %62, %cst_29 {dimension_numbers = #tpu.dot_dimension_numbers<[1], [1], [0], [0], [0, 0, 1, 0], [], []>} : vector<8x16xf32>, vector<8x16xf32>, vector<8x8xf32> -> vector<8x8xf32>
    %cst_30 = arith.constant 2.500000e-01 : f32
    %65 = vector.broadcast %cst_30 : f32 to vector<8x8xf32>
    %66 = arith.mulf %64, %65 : vector<8x8xf32>
    %67 = vector.broadcast %36 : vector<1x8xf32> to vector<8x8xf32>
    %68 = arith.addf %66, %67 : vector<8x8xf32>
    %cst_31 = arith.constant dense<0xFF800000> : vector<8xf32>
    %69 = vector.multi_reduction <maximumf>, %68, %cst_31 [1] : vector<8x8xf32> to vector<8xf32>
    %70 = vector.shape_cast %69 : vector<8xf32> to vector<8x1xf32>
    %71 = vector.broadcast %70 : vector<8x1xf32> to vector<8x8xf32>
    %72 = arith.subf %68, %71 : vector<8x8xf32>
    %73 = math.exp %72 : vector<8x8xf32>
    %cst_32 = arith.constant dense<0.000000e+00> : vector<8xf32>
    %74 = vector.multi_reduction <add>, %73, %cst_32 [1] : vector<8x8xf32> to vector<8xf32>
    %75 = vector.shape_cast %74 : vector<8xf32> to vector<8x1xf32>
    %76 = tpu.reciprocal %75 {approx = true} : vector<8x1xf32> -> vector<8x1xf32>
    %77 = vector.broadcast %76 : vector<8x1xf32> to vector<8x8xf32>
    %78 = arith.mulf %73, %77 : vector<8x8xf32>
    %cst_33 = arith.constant dense<0.000000e+00> : vector<8x16xf32>
    %79 = tpu.matmul %78, %63, %cst_33 {dimension_numbers = #tpu.dot_dimension_numbers<[1], [0], [0], [1], [0, 0, 1, 1], [], []>} : vector<8x8xf32>, vector<8x16xf32>, vector<8x16xf32> -> vector<8x16xf32>
    %80 = tpu.concatenate %60, %79 in 1 : vector<8x16xf32>, vector<8x16xf32> -> vector<8x32xf32>
    %c0_34 = arith.constant 0 : index
    %c0_35 = arith.constant 0 : index
    %81 = vector.load %arg9[%c0_34, %c0_35] : memref<32x32xf32, #tpu.memory_space<vmem>>, vector<32x32xf32>
    %cst_36 = arith.constant dense<0.000000e+00> : vector<8x32xf32>
    %82 = tpu.matmul %80, %81, %cst_36 {dimension_numbers = #tpu.dot_dimension_numbers<[1], [0], [0], [1], [0, 0, 1, 1], [], []>} : vector<8x32xf32>, vector<32x32xf32>, vector<8x32xf32> -> vector<8x32xf32>
    %c0_37 = arith.constant 0 : index
    %c0_38 = arith.constant 0 : index
    %83 = vector.load %arg10[%c0_37, %c0_38] : memref<1x32xf32, #tpu.memory_space<vmem>>, vector<1x32xf32>
    %84 = vector.broadcast %83 : vector<1x32xf32> to vector<8x32xf32>
    %85 = arith.addf %82, %84 : vector<8x32xf32>
    %86 = arith.addf %85, %30 : vector<8x32xf32>
    %c0_39 = arith.constant 0 : index
    %c0_40 = arith.constant 0 : index
    %87 = vector.load %arg11[%c0_39, %c0_40] : memref<1x32xf32, #tpu.memory_space<vmem>>, vector<1x32xf32>
    %c0_41 = arith.constant 0 : index
    %c0_42 = arith.constant 0 : index
    %88 = vector.load %arg12[%c0_41, %c0_42] : memref<1x32xf32, #tpu.memory_space<vmem>>, vector<1x32xf32>
    %cst_43 = arith.constant dense<0.000000e+00> : vector<8xf32>
    %89 = vector.multi_reduction <add>, %86, %cst_43 [1] : vector<8x32xf32> to vector<8xf32>
    %90 = vector.shape_cast %89 : vector<8xf32> to vector<8x1xf32>
    %cst_44 = arith.constant 3.200000e+01 : f32
    %91 = vector.broadcast %cst_44 : f32 to vector<8x1xf32>
    %92 = arith.divf %90, %91 : vector<8x1xf32>
    %93 = vector.broadcast %92 : vector<8x1xf32> to vector<8x32xf32>
    %94 = arith.subf %86, %93 : vector<8x32xf32>
    %95 = arith.mulf %94, %94 : vector<8x32xf32>
    %cst_45 = arith.constant dense<0.000000e+00> : vector<8xf32>
    %96 = vector.multi_reduction <add>, %95, %cst_45 [1] : vector<8x32xf32> to vector<8xf32>
    %97 = vector.shape_cast %96 : vector<8xf32> to vector<8x1xf32>
    %cst_46 = arith.constant 3.200000e+01 : f32
    %98 = vector.broadcast %cst_46 : f32 to vector<8x1xf32>
    %99 = arith.divf %97, %98 : vector<8x1xf32>
    %100 = vector.broadcast %92 : vector<8x1xf32> to vector<8x32xf32>
    %101 = arith.subf %86, %100 : vector<8x32xf32>
    %cst_47 = arith.constant 9.99999996E-13 : f32
    %102 = vector.broadcast %cst_47 : f32 to vector<8x1xf32>
    %103 = arith.addf %99, %102 : vector<8x1xf32>
    %104 = math.rsqrt %103 : vector<8x1xf32>
    %105 = vector.broadcast %104 : vector<8x1xf32> to vector<8x32xf32>
    %106 = arith.mulf %101, %105 : vector<8x32xf32>
    %107 = vector.broadcast %87 : vector<1x32xf32> to vector<8x32xf32>
    %108 = arith.mulf %106, %107 : vector<8x32xf32>
    %109 = vector.broadcast %88 : vector<1x32xf32> to vector<8x32xf32>
    %110 = arith.addf %108, %109 : vector<8x32xf32>
    %c0_48 = arith.constant 0 : index
    %c0_49 = arith.constant 0 : index
    %111 = vector.load %arg13[%c0_48, %c0_49] : memref<32x64xf32, #tpu.memory_space<vmem>>, vector<32x64xf32>
    %cst_50 = arith.constant dense<0.000000e+00> : vector<8x64xf32>
    %112 = tpu.matmul %110, %111, %cst_50 {dimension_numbers = #tpu.dot_dimension_numbers<[1], [0], [0], [1], [0, 0, 1, 1], [], []>} : vector<8x32xf32>, vector<32x64xf32>, vector<8x64xf32> -> vector<8x64xf32>
    %c0_51 = arith.constant 0 : index
    %c0_52 = arith.constant 0 : index
    %113 = vector.load %arg14[%c0_51, %c0_52] : memref<1x64xf32, #tpu.memory_space<vmem>>, vector<1x64xf32>
    %114 = vector.broadcast %113 : vector<1x64xf32> to vector<8x64xf32>
    %115 = arith.addf %112, %114 : vector<8x64xf32>
    %116 = arith.mulf %115, %115 : vector<8x64xf32>
    %117 = arith.mulf %115, %116 : vector<8x64xf32>
    %cst_53 = arith.constant 4.471500e-02 : f32
    %118 = vector.broadcast %cst_53 : f32 to vector<8x64xf32>
    %119 = arith.mulf %118, %117 : vector<8x64xf32>
    %120 = arith.addf %115, %119 : vector<8x64xf32>
    %cst_54 = arith.constant 0.797884583 : f32
    %121 = vector.broadcast %cst_54 : f32 to vector<8x64xf32>
    %122 = arith.mulf %121, %120 : vector<8x64xf32>
    %123 = math.tanh %122 : vector<8x64xf32>
    %cst_55 = arith.constant 1.000000e+00 : f32
    %124 = vector.broadcast %cst_55 : f32 to vector<8x64xf32>
    %125 = arith.addf %124, %123 : vector<8x64xf32>
    %cst_56 = arith.constant 5.000000e-01 : f32
    %126 = vector.broadcast %cst_56 : f32 to vector<8x64xf32>
    %127 = arith.mulf %126, %125 : vector<8x64xf32>
    %128 = arith.mulf %115, %127 : vector<8x64xf32>
    %c0_57 = arith.constant 0 : index
    %c0_58 = arith.constant 0 : index
    %129 = vector.load %arg15[%c0_57, %c0_58] : memref<64x32xf32, #tpu.memory_space<vmem>>, vector<64x32xf32>
    %cst_59 = arith.constant dense<0.000000e+00> : vector<8x32xf32>
    %130 = tpu.matmul %128, %129, %cst_59 {dimension_numbers = #tpu.dot_dimension_numbers<[1], [0], [0], [1], [0, 0, 1, 1], [], []>} : vector<8x64xf32>, vector<64x32xf32>, vector<8x32xf32> -> vector<8x32xf32>
    %c0_60 = arith.constant 0 : index
    %c0_61 = arith.constant 0 : index
    %131 = vector.load %arg16[%c0_60, %c0_61] : memref<1x32xf32, #tpu.memory_space<vmem>>, vector<1x32xf32>
    %132 = vector.broadcast %131 : vector<1x32xf32> to vector<8x32xf32>
    %133 = arith.addf %130, %132 : vector<8x32xf32>
    %134 = arith.addf %133, %110 : vector<8x32xf32>
    %c0_62 = arith.constant 0 : index
    %c0_63 = arith.constant 0 : index
    %135 = vector.load %arg17[%c0_62, %c0_63] : memref<1x32xf32, #tpu.memory_space<vmem>>, vector<1x32xf32>
    %c0_64 = arith.constant 0 : index
    %c0_65 = arith.constant 0 : index
    %136 = vector.load %arg18[%c0_64, %c0_65] : memref<1x32xf32, #tpu.memory_space<vmem>>, vector<1x32xf32>
    %cst_66 = arith.constant dense<0.000000e+00> : vector<8xf32>
    %137 = vector.multi_reduction <add>, %134, %cst_66 [1] : vector<8x32xf32> to vector<8xf32>
    %138 = vector.shape_cast %137 : vector<8xf32> to vector<8x1xf32>
    %cst_67 = arith.constant 3.200000e+01 : f32
    %139 = vector.broadcast %cst_67 : f32 to vector<8x1xf32>
    %140 = arith.divf %138, %139 : vector<8x1xf32>
    %141 = vector.broadcast %140 : vector<8x1xf32> to vector<8x32xf32>
    %142 = arith.subf %134, %141 : vector<8x32xf32>
    %143 = arith.mulf %142, %142 : vector<8x32xf32>
    %cst_68 = arith.constant dense<0.000000e+00> : vector<8xf32>
    %144 = vector.multi_reduction <add>, %143, %cst_68 [1] : vector<8x32xf32> to vector<8xf32>
    %145 = vector.shape_cast %144 : vector<8xf32> to vector<8x1xf32>
    %cst_69 = arith.constant 3.200000e+01 : f32
    %146 = vector.broadcast %cst_69 : f32 to vector<8x1xf32>
    %147 = arith.divf %145, %146 : vector<8x1xf32>
    %148 = vector.broadcast %140 : vector<8x1xf32> to vector<8x32xf32>
    %149 = arith.subf %134, %148 : vector<8x32xf32>
    %cst_70 = arith.constant 9.99999996E-13 : f32
    %150 = vector.broadcast %cst_70 : f32 to vector<8x1xf32>
    %151 = arith.addf %147, %150 : vector<8x1xf32>
    %152 = math.rsqrt %151 : vector<8x1xf32>
    %153 = vector.broadcast %152 : vector<8x1xf32> to vector<8x32xf32>
    %154 = arith.mulf %149, %153 : vector<8x32xf32>
    %155 = vector.broadcast %135 : vector<1x32xf32> to vector<8x32xf32>
    %156 = arith.mulf %154, %155 : vector<8x32xf32>
    %157 = vector.broadcast %136 : vector<1x32xf32> to vector<8x32xf32>
    %158 = arith.addf %156, %157 : vector<8x32xf32>
    %c0_71 = arith.constant 0 : index
    %c0_72 = arith.constant 0 : index
    %159 = vector.load %arg19[%c0_71, %c0_72] : memref<32x96xf32, #tpu.memory_space<vmem>>, vector<32x96xf32>
    %cst_73 = arith.constant dense<0.000000e+00> : vector<8x96xf32>
    %160 = tpu.matmul %158, %159, %cst_73 {dimension_numbers = #tpu.dot_dimension_numbers<[1], [0], [0], [1], [0, 0, 1, 1], [], []>} : vector<8x32xf32>, vector<32x96xf32>, vector<8x96xf32> -> vector<8x96xf32>
    %c0_74 = arith.constant 0 : index
    %c0_75 = arith.constant 0 : index
    %161 = vector.load %arg20[%c0_74, %c0_75] : memref<1x96xf32, #tpu.memory_space<vmem>>, vector<1x96xf32>
    %162 = vector.broadcast %161 : vector<1x96xf32> to vector<8x96xf32>
    %163 = arith.addf %160, %162 : vector<8x96xf32>
    %164 = vector.extract_strided_slice %163 {offsets = [0, 0], sizes = [8, 16], strides = [1, 1]} : vector<8x96xf32> to vector<8x16xf32>
    %165 = vector.extract_strided_slice %163 {offsets = [0, 32], sizes = [8, 16], strides = [1, 1]} : vector<8x96xf32> to vector<8x16xf32>
    %166 = vector.extract_strided_slice %163 {offsets = [0, 64], sizes = [8, 16], strides = [1, 1]} : vector<8x96xf32> to vector<8x16xf32>
    %cst_76 = arith.constant dense<0.000000e+00> : vector<8x8xf32>
    %167 = tpu.matmul %164, %165, %cst_76 {dimension_numbers = #tpu.dot_dimension_numbers<[1], [1], [0], [0], [0, 0, 1, 0], [], []>} : vector<8x16xf32>, vector<8x16xf32>, vector<8x8xf32> -> vector<8x8xf32>
    %cst_77 = arith.constant 2.500000e-01 : f32
    %168 = vector.broadcast %cst_77 : f32 to vector<8x8xf32>
    %169 = arith.mulf %167, %168 : vector<8x8xf32>
    %170 = vector.broadcast %36 : vector<1x8xf32> to vector<8x8xf32>
    %171 = arith.addf %169, %170 : vector<8x8xf32>
    %cst_78 = arith.constant dense<0xFF800000> : vector<8xf32>
    %172 = vector.multi_reduction <maximumf>, %171, %cst_78 [1] : vector<8x8xf32> to vector<8xf32>
    %173 = vector.shape_cast %172 : vector<8xf32> to vector<8x1xf32>
    %174 = vector.broadcast %173 : vector<8x1xf32> to vector<8x8xf32>
    %175 = arith.subf %171, %174 : vector<8x8xf32>
    %176 = math.exp %175 : vector<8x8xf32>
    %cst_79 = arith.constant dense<0.000000e+00> : vector<8xf32>
    %177 = vector.multi_reduction <add>, %176, %cst_79 [1] : vector<8x8xf32> to vector<8xf32>
    %178 = vector.shape_cast %177 : vector<8xf32> to vector<8x1xf32>
    %179 = tpu.reciprocal %178 {approx = true} : vector<8x1xf32> -> vector<8x1xf32>
    %180 = vector.broadcast %179 : vector<8x1xf32> to vector<8x8xf32>
    %181 = arith.mulf %176, %180 : vector<8x8xf32>
    %cst_80 = arith.constant dense<0.000000e+00> : vector<8x16xf32>
    %182 = tpu.matmul %181, %166, %cst_80 {dimension_numbers = #tpu.dot_dimension_numbers<[1], [0], [0], [1], [0, 0, 1, 1], [], []>} : vector<8x8xf32>, vector<8x16xf32>, vector<8x16xf32> -> vector<8x16xf32>
    %183 = vector.extract_strided_slice %163 {offsets = [0, 16], sizes = [8, 16], strides = [1, 1]} : vector<8x96xf32> to vector<8x16xf32>
    %184 = vector.extract_strided_slice %163 {offsets = [0, 48], sizes = [8, 16], strides = [1, 1]} : vector<8x96xf32> to vector<8x16xf32>
    %185 = vector.extract_strided_slice %163 {offsets = [0, 80], sizes = [8, 16], strides = [1, 1]} : vector<8x96xf32> to vector<8x16xf32>
    %cst_81 = arith.constant dense<0.000000e+00> : vector<8x8xf32>
    %186 = tpu.matmul %183, %184, %cst_81 {dimension_numbers = #tpu.dot_dimension_numbers<[1], [1], [0], [0], [0, 0, 1, 0], [], []>} : vector<8x16xf32>, vector<8x16xf32>, vector<8x8xf32> -> vector<8x8xf32>
    %cst_82 = arith.constant 2.500000e-01 : f32
    %187 = vector.broadcast %cst_82 : f32 to vector<8x8xf32>
    %188 = arith.mulf %186, %187 : vector<8x8xf32>
    %189 = vector.broadcast %36 : vector<1x8xf32> to vector<8x8xf32>
    %190 = arith.addf %188, %189 : vector<8x8xf32>
    %cst_83 = arith.constant dense<0xFF800000> : vector<8xf32>
    %191 = vector.multi_reduction <maximumf>, %190, %cst_83 [1] : vector<8x8xf32> to vector<8xf32>
    %192 = vector.shape_cast %191 : vector<8xf32> to vector<8x1xf32>
    %193 = vector.broadcast %192 : vector<8x1xf32> to vector<8x8xf32>
    %194 = arith.subf %190, %193 : vector<8x8xf32>
    %195 = math.exp %194 : vector<8x8xf32>
    %cst_84 = arith.constant dense<0.000000e+00> : vector<8xf32>
    %196 = vector.multi_reduction <add>, %195, %cst_84 [1] : vector<8x8xf32> to vector<8xf32>
    %197 = vector.shape_cast %196 : vector<8xf32> to vector<8x1xf32>
    %198 = tpu.reciprocal %197 {approx = true} : vector<8x1xf32> -> vector<8x1xf32>
    %199 = vector.broadcast %198 : vector<8x1xf32> to vector<8x8xf32>
    %200 = arith.mulf %195, %199 : vector<8x8xf32>
    %cst_85 = arith.constant dense<0.000000e+00> : vector<8x16xf32>
    %201 = tpu.matmul %200, %185, %cst_85 {dimension_numbers = #tpu.dot_dimension_numbers<[1], [0], [0], [1], [0, 0, 1, 1], [], []>} : vector<8x8xf32>, vector<8x16xf32>, vector<8x16xf32> -> vector<8x16xf32>
    %202 = tpu.concatenate %182, %201 in 1 : vector<8x16xf32>, vector<8x16xf32> -> vector<8x32xf32>
    %c0_86 = arith.constant 0 : index
    %c0_87 = arith.constant 0 : index
    %203 = vector.load %arg21[%c0_86, %c0_87] : memref<32x32xf32, #tpu.memory_space<vmem>>, vector<32x32xf32>
    %cst_88 = arith.constant dense<0.000000e+00> : vector<8x32xf32>
    %204 = tpu.matmul %202, %203, %cst_88 {dimension_numbers = #tpu.dot_dimension_numbers<[1], [0], [0], [1], [0, 0, 1, 1], [], []>} : vector<8x32xf32>, vector<32x32xf32>, vector<8x32xf32> -> vector<8x32xf32>
    %c0_89 = arith.constant 0 : index
    %c0_90 = arith.constant 0 : index
    %205 = vector.load %arg22[%c0_89, %c0_90] : memref<1x32xf32, #tpu.memory_space<vmem>>, vector<1x32xf32>
    %206 = vector.broadcast %205 : vector<1x32xf32> to vector<8x32xf32>
    %207 = arith.addf %204, %206 : vector<8x32xf32>
    %208 = arith.addf %207, %158 : vector<8x32xf32>
    %c0_91 = arith.constant 0 : index
    %c0_92 = arith.constant 0 : index
    %209 = vector.load %arg23[%c0_91, %c0_92] : memref<1x32xf32, #tpu.memory_space<vmem>>, vector<1x32xf32>
    %c0_93 = arith.constant 0 : index
    %c0_94 = arith.constant 0 : index
    %210 = vector.load %arg24[%c0_93, %c0_94] : memref<1x32xf32, #tpu.memory_space<vmem>>, vector<1x32xf32>
    %cst_95 = arith.constant dense<0.000000e+00> : vector<8xf32>
    %211 = vector.multi_reduction <add>, %208, %cst_95 [1] : vector<8x32xf32> to vector<8xf32>
    %212 = vector.shape_cast %211 : vector<8xf32> to vector<8x1xf32>
    %cst_96 = arith.constant 3.200000e+01 : f32
    %213 = vector.broadcast %cst_96 : f32 to vector<8x1xf32>
    %214 = arith.divf %212, %213 : vector<8x1xf32>
    %215 = vector.broadcast %214 : vector<8x1xf32> to vector<8x32xf32>
    %216 = arith.subf %208, %215 : vector<8x32xf32>
    %217 = arith.mulf %216, %216 : vector<8x32xf32>
    %cst_97 = arith.constant dense<0.000000e+00> : vector<8xf32>
    %218 = vector.multi_reduction <add>, %217, %cst_97 [1] : vector<8x32xf32> to vector<8xf32>
    %219 = vector.shape_cast %218 : vector<8xf32> to vector<8x1xf32>
    %cst_98 = arith.constant 3.200000e+01 : f32
    %220 = vector.broadcast %cst_98 : f32 to vector<8x1xf32>
    %221 = arith.divf %219, %220 : vector<8x1xf32>
    %222 = vector.broadcast %214 : vector<8x1xf32> to vector<8x32xf32>
    %223 = arith.subf %208, %222 : vector<8x32xf32>
    %cst_99 = arith.constant 9.99999996E-13 : f32
    %224 = vector.broadcast %cst_99 : f32 to vector<8x1xf32>
    %225 = arith.addf %221, %224 : vector<8x1xf32>
    %226 = math.rsqrt %225 : vector<8x1xf32>
    %227 = vector.broadcast %226 : vector<8x1xf32> to vector<8x32xf32>
    %228 = arith.mulf %223, %227 : vector<8x32xf32>
    %229 = vector.broadcast %209 : vector<1x32xf32> to vector<8x32xf32>
    %230 = arith.mulf %228, %229 : vector<8x32xf32>
    %231 = vector.broadcast %210 : vector<1x32xf32> to vector<8x32xf32>
    %232 = arith.addf %230, %231 : vector<8x32xf32>
    %c0_100 = arith.constant 0 : index
    %c0_101 = arith.constant 0 : index
    %233 = vector.load %arg25[%c0_100, %c0_101] : memref<32x64xf32, #tpu.memory_space<vmem>>, vector<32x64xf32>
    %cst_102 = arith.constant dense<0.000000e+00> : vector<8x64xf32>
    %234 = tpu.matmul %232, %233, %cst_102 {dimension_numbers = #tpu.dot_dimension_numbers<[1], [0], [0], [1], [0, 0, 1, 1], [], []>} : vector<8x32xf32>, vector<32x64xf32>, vector<8x64xf32> -> vector<8x64xf32>
    %c0_103 = arith.constant 0 : index
    %c0_104 = arith.constant 0 : index
    %235 = vector.load %arg26[%c0_103, %c0_104] : memref<1x64xf32, #tpu.memory_space<vmem>>, vector<1x64xf32>
    %236 = vector.broadcast %235 : vector<1x64xf32> to vector<8x64xf32>
    %237 = arith.addf %234, %236 : vector<8x64xf32>
    %238 = arith.mulf %237, %237 : vector<8x64xf32>
    %239 = arith.mulf %237, %238 : vector<8x64xf32>
    %cst_105 = arith.constant 4.471500e-02 : f32
    %240 = vector.broadcast %cst_105 : f32 to vector<8x64xf32>
    %241 = arith.mulf %240, %239 : vector<8x64xf32>
    %242 = arith.addf %237, %241 : vector<8x64xf32>
    %cst_106 = arith.constant 0.797884583 : f32
    %243 = vector.broadcast %cst_106 : f32 to vector<8x64xf32>
    %244 = arith.mulf %243, %242 : vector<8x64xf32>
    %245 = math.tanh %244 : vector<8x64xf32>
    %cst_107 = arith.constant 1.000000e+00 : f32
    %246 = vector.broadcast %cst_107 : f32 to vector<8x64xf32>
    %247 = arith.addf %246, %245 : vector<8x64xf32>
    %cst_108 = arith.constant 5.000000e-01 : f32
    %248 = vector.broadcast %cst_108 : f32 to vector<8x64xf32>
    %249 = arith.mulf %248, %247 : vector<8x64xf32>
    %250 = arith.mulf %237, %249 : vector<8x64xf32>
    %c0_109 = arith.constant 0 : index
    %c0_110 = arith.constant 0 : index
    %251 = vector.load %arg27[%c0_109, %c0_110] : memref<64x32xf32, #tpu.memory_space<vmem>>, vector<64x32xf32>
    %cst_111 = arith.constant dense<0.000000e+00> : vector<8x32xf32>
    %252 = tpu.matmul %250, %251, %cst_111 {dimension_numbers = #tpu.dot_dimension_numbers<[1], [0], [0], [1], [0, 0, 1, 1], [], []>} : vector<8x64xf32>, vector<64x32xf32>, vector<8x32xf32> -> vector<8x32xf32>
    %c0_112 = arith.constant 0 : index
    %c0_113 = arith.constant 0 : index
    %253 = vector.load %arg28[%c0_112, %c0_113] : memref<1x32xf32, #tpu.memory_space<vmem>>, vector<1x32xf32>
    %254 = vector.broadcast %253 : vector<1x32xf32> to vector<8x32xf32>
    %255 = arith.addf %252, %254 : vector<8x32xf32>
    %256 = arith.addf %255, %232 : vector<8x32xf32>
    %c0_114 = arith.constant 0 : index
    %c0_115 = arith.constant 0 : index
    %257 = vector.load %arg29[%c0_114, %c0_115] : memref<1x32xf32, #tpu.memory_space<vmem>>, vector<1x32xf32>
    %c0_116 = arith.constant 0 : index
    %c0_117 = arith.constant 0 : index
    %258 = vector.load %arg30[%c0_116, %c0_117] : memref<1x32xf32, #tpu.memory_space<vmem>>, vector<1x32xf32>
    %cst_118 = arith.constant dense<0.000000e+00> : vector<8xf32>
    %259 = vector.multi_reduction <add>, %256, %cst_118 [1] : vector<8x32xf32> to vector<8xf32>
    %260 = vector.shape_cast %259 : vector<8xf32> to vector<8x1xf32>
    %cst_119 = arith.constant 3.200000e+01 : f32
    %261 = vector.broadcast %cst_119 : f32 to vector<8x1xf32>
    %262 = arith.divf %260, %261 : vector<8x1xf32>
    %263 = vector.broadcast %262 : vector<8x1xf32> to vector<8x32xf32>
    %264 = arith.subf %256, %263 : vector<8x32xf32>
    %265 = arith.mulf %264, %264 : vector<8x32xf32>
    %cst_120 = arith.constant dense<0.000000e+00> : vector<8xf32>
    %266 = vector.multi_reduction <add>, %265, %cst_120 [1] : vector<8x32xf32> to vector<8xf32>
    %267 = vector.shape_cast %266 : vector<8xf32> to vector<8x1xf32>
    %cst_121 = arith.constant 3.200000e+01 : f32
    %268 = vector.broadcast %cst_121 : f32 to vector<8x1xf32>
    %269 = arith.divf %267, %268 : vector<8x1xf32>
    %270 = vector.broadcast %262 : vector<8x1xf32> to vector<8x32xf32>
    %271 = arith.subf %256, %270 : vector<8x32xf32>
    %cst_122 = arith.constant 9.99999996E-13 : f32
    %272 = vector.broadcast %cst_122 : f32 to vector<8x1xf32>
    %273 = arith.addf %269, %272 : vector<8x1xf32>
    %274 = math.rsqrt %273 : vector<8x1xf32>
    %275 = vector.broadcast %274 : vector<8x1xf32> to vector<8x32xf32>
    %276 = arith.mulf %271, %275 : vector<8x32xf32>
    %277 = vector.broadcast %257 : vector<1x32xf32> to vector<8x32xf32>
    %278 = arith.mulf %276, %277 : vector<8x32xf32>
    %279 = vector.broadcast %258 : vector<1x32xf32> to vector<8x32xf32>
    %280 = arith.addf %278, %279 : vector<8x32xf32>
    %cst_123 = arith.constant dense<0.000000e+00> : vector<1x32xf32>
    %281 = tpu.matmul %32, %280, %cst_123 {dimension_numbers = #tpu.dot_dimension_numbers<[1], [0], [0], [1], [0, 0, 1, 1], [], []>} : vector<1x8xf32>, vector<8x32xf32>, vector<1x32xf32> -> vector<1x32xf32>
    %282 = vector.shape_cast %32 : vector<1x8xf32> to vector<1x1x8xf32>
    %cst_124 = arith.constant dense<0.000000e+00> : vector<1xf32>
    %283 = vector.multi_reduction <add>, %282, %cst_124 [1, 2] : vector<1x1x8xf32> to vector<1xf32>
    %284 = vector.shape_cast %283 : vector<1xf32> to vector<1x1x1xf32>
    %285 = vector.extract %284[0, 0, 0] : f32 from vector<1x1x1xf32>
    %cst_125 = arith.constant 1.000000e+00 : f32
    %286 = arith.maximumf %285, %cst_125 : f32
    %287 = vector.broadcast %286 : f32 to vector<1x32xf32>
    %288 = arith.divf %281, %287 : vector<1x32xf32>
    %c0_126 = arith.constant 0 : index
    %c0_127 = arith.constant 0 : index
    %c0_128 = arith.constant 0 : index
    %289 = vector.load %arg31[%c0_126, %c0_127, %c0_128] : memref<1x1x32xf32, #tpu.memory_space<vmem>>, vector<1x1x32xf32>
    %290 = vector.shape_cast %289 : vector<1x1x32xf32> to vector<1x32xf32>
    %291 = vector.shape_cast %288 : vector<1x32xf32> to vector<1x1x32xf32>
    tpu.vector_store %arg31[%c0_126, %c0_127, %c0_128], %291 {strides = array<i32>} : memref<1x1x32xf32, #tpu.memory_space<vmem>>, vector<1x1x32xf32>,
    return
  }
  func.func @transform_0(%arg0: i32) -> (i32, i32, i32) {
    %c0_i32 = arith.constant 0 : i32
    %c0_i32_0 = arith.constant 0 : i32
    %c0_i32_1 = arith.constant 0 : i32
    return %arg0, %c0_i32, %c0_i32_0 : i32, i32, i32
  }
  func.func @transform_1(%arg0: i32) -> (i32, i32, i32) {
    %c0_i32 = arith.constant 0 : i32
    %c0_i32_0 = arith.constant 0 : i32
    %c0_i32_1 = arith.constant 0 : i32
    return %arg0, %c0_i32, %c0_i32_0 : i32, i32, i32
  }
  func.func @transform_2(%arg0: i32) -> (i32, i32) {
    %c0_i32 = arith.constant 0 : i32
    %c0_i32_0 = arith.constant 0 : i32
    %c0_i32_1 = arith.constant 0 : i32
    return %c0_i32, %c0_i32_0 : i32, i32
  }
  func.func @transform_3(%arg0: i32) -> (i32, i32) {
    %c0_i32 = arith.constant 0 : i32
    %c0_i32_0 = arith.constant 0 : i32
    %c0_i32_1 = arith.constant 0 : i32
    return %c0_i32, %c0_i32_0 : i32, i32
  }
  func.func @transform_4(%arg0: i32) -> (i32, i32) {
    %c0_i32 = arith.constant 0 : i32
    %c0_i32_0 = arith.constant 0 : i32
    %c0_i32_1 = arith.constant 0 : i32
    return %c0_i32, %c0_i32_0 : i32, i32
  }
  func.func @transform_5(%arg0: i32) -> (i32, i32) {
    %c0_i32 = arith.constant 0 : i32
    %c0_i32_0 = arith.constant 0 : i32
    %c0_i32_1 = arith.constant 0 : i32
    return %c0_i32, %c0_i32_0 : i32, i32
  }
  func.func @transform_6(%arg0: i32) -> (i32, i32) {
    %c0_i32 = arith.constant 0 : i32
    %c0_i32_0 = arith.constant 0 : i32
    %c0_i32_1 = arith.constant 0 : i32
    return %c0_i32, %c0_i32_0 : i32, i32
  }
  func.func @transform_7(%arg0: i32) -> (i32, i32) {
    %c0_i32 = arith.constant 0 : i32
    %c0_i32_0 = arith.constant 0 : i32
    %c0_i32_1 = arith.constant 0 : i32
    return %c0_i32, %c0_i32_0 : i32, i32
  }
  func.func @transform_8(%arg0: i32) -> (i32, i32) {
    %c0_i32 = arith.constant 0 : i32
    %c0_i32_0 = arith.constant 0 : i32
    %c0_i32_1 = arith.constant 0 : i32
    return %c0_i32, %c0_i32_0 : i32, i32
  }
  func.func @transform_9(%arg0: i32) -> (i32, i32) {
    %c0_i32 = arith.constant 0 : i32
    %c0_i32_0 = arith.constant 0 : i32
    %c0_i32_1 = arith.constant 0 : i32
    return %c0_i32, %c0_i32_0 : i32, i32
  }
  func.func @transform_10(%arg0: i32) -> (i32, i32) {
    %c0_i32 = arith.constant 0 : i32
    %c0_i32_0 = arith.constant 0 : i32
    %c0_i32_1 = arith.constant 0 : i32
    return %c0_i32, %c0_i32_0 : i32, i32
  }
  func.func @transform_11(%arg0: i32) -> (i32, i32) {
    %c0_i32 = arith.constant 0 : i32
    %c0_i32_0 = arith.constant 0 : i32
    %c0_i32_1 = arith.constant 0 : i32
    return %c0_i32, %c0_i32_0 : i32, i32
  }
  func.func @transform_12(%arg0: i32) -> (i32, i32) {
    %c0_i32 = arith.constant 0 : i32
    %c0_i32_0 = arith.constant 0 : i32
    %c0_i32_1 = arith.constant 0 : i32
    return %c0_i32, %c0_i32_0 : i32, i32
  }
  func.func @transform_13(%arg0: i32) -> (i32, i32) {
    %c0_i32 = arith.constant 0 : i32
    %c0_i32_0 = arith.constant 0 : i32
    %c0_i32_1 = arith.constant 0 : i32
    return %c0_i32, %c0_i32_0 : i32, i32
  }
  func.func @transform_14(%arg0: i32) -> (i32, i32) {
    %c0_i32 = arith.constant 0 : i32
    %c0_i32_0 = arith.constant 0 : i32
    %c0_i32_1 = arith.constant 0 : i32
    return %c0_i32, %c0_i32_0 : i32, i32
  }
  func.func @transform_15(%arg0: i32) -> (i32, i32) {
    %c0_i32 = arith.constant 0 : i32
    %c0_i32_0 = arith.constant 0 : i32
    %c0_i32_1 = arith.constant 0 : i32
    return %c0_i32, %c0_i32_0 : i32, i32
  }
  func.func @transform_16(%arg0: i32) -> (i32, i32) {
    %c0_i32 = arith.constant 0 : i32
    %c0_i32_0 = arith.constant 0 : i32
    %c0_i32_1 = arith.constant 0 : i32
    return %c0_i32, %c0_i32_0 : i32, i32
  }
  func.func @transform_17(%arg0: i32) -> (i32, i32) {
    %c0_i32 = arith.constant 0 : i32
    %c0_i32_0 = arith.constant 0 : i32
    %c0_i32_1 = arith.constant 0 : i32
    return %c0_i32, %c0_i32_0 : i32, i32
  }
  func.func @transform_18(%arg0: i32) -> (i32, i32) {
    %c0_i32 = arith.constant 0 : i32
    %c0_i32_0 = arith.constant 0 : i32
    %c0_i32_1 = arith.constant 0 : i32
    return %c0_i32, %c0_i32_0 : i32, i32
  }
  func.func @transform_19(%arg0: i32) -> (i32, i32) {
    %c0_i32 = arith.constant 0 : i32
    %c0_i32_0 = arith.constant 0 : i32
    %c0_i32_1 = arith.constant 0 : i32
    return %c0_i32, %c0_i32_0 : i32, i32
  }
  func.func @transform_20(%arg0: i32) -> (i32, i32) {
    %c0_i32 = arith.constant 0 : i32
    %c0_i32_0 = arith.constant 0 : i32
    %c0_i32_1 = arith.constant 0 : i32
    return %c0_i32, %c0_i32_0 : i32, i32
  }
  func.func @transform_21(%arg0: i32) -> (i32, i32) {
    %c0_i32 = arith.constant 0 : i32
    %c0_i32_0 = arith.constant 0 : i32
    %c0_i32_1 = arith.constant 0 : i32
    return %c0_i32, %c0_i32_0 : i32, i32
  }
  func.func @transform_22(%arg0: i32) -> (i32, i32) {
    %c0_i32 = arith.constant 0 : i32
    %c0_i32_0 = arith.constant 0 : i32
    %c0_i32_1 = arith.constant 0 : i32
    return %c0_i32, %c0_i32_0 : i32, i32
  }
  func.func @transform_23(%arg0: i32) -> (i32, i32) {
    %c0_i32 = arith.constant 0 : i32
    %c0_i32_0 = arith.constant 0 : i32
    %c0_i32_1 = arith.constant 0 : i32
    return %c0_i32, %c0_i32_0 : i32, i32
  }
  func.func @transform_24(%arg0: i32) -> (i32, i32) {
    %c0_i32 = arith.constant 0 : i32
    %c0_i32_0 = arith.constant 0 : i32
    %c0_i32_1 = arith.constant 0 : i32
    return %c0_i32, %c0_i32_0 : i32, i32
  }
  func.func @transform_25(%arg0: i32) -> (i32, i32) {
    %c0_i32 = arith.constant 0 : i32
    %c0_i32_0 = arith.constant 0 : i32
    %c0_i32_1 = arith.constant 0 : i32
    return %c0_i32, %c0_i32_0 : i32, i32
  }
  func.func @transform_26(%arg0: i32) -> (i32, i32) {
    %c0_i32 = arith.constant 0 : i32
    %c0_i32_0 = arith.constant 0 : i32
    %c0_i32_1 = arith.constant 0 : i32
    return %c0_i32, %c0_i32_0 : i32, i32
  }
  func.func @transform_27(%arg0: i32) -> (i32, i32) {
    %c0_i32 = arith.constant 0 : i32
    %c0_i32_0 = arith.constant 0 : i32
    %c0_i32_1 = arith.constant 0 : i32
    return %c0_i32, %c0_i32_0 : i32, i32
  }
  func.func @transform_28(%arg0: i32) -> (i32, i32) {
    %c0_i32 = arith.constant 0 : i32
    %c0_i32_0 = arith.constant 0 : i32
    %c0_i32_1 = arith.constant 0 : i32
    return %c0_i32, %c0_i32_0 : i32, i32
  }
  func.func @transform_29(%arg0: i32) -> (i32, i32) {
    %c0_i32 = arith.constant 0 : i32
    %c0_i32_0 = arith.constant 0 : i32
    %c0_i32_1 = arith.constant 0 : i32
    return %c0_i32, %c0_i32_0 : i32, i32
  }
  func.func @transform_30(%arg0: i32) -> (i32, i32, i32) {
    %c0_i32 = arith.constant 0 : i32
    %c0_i32_0 = arith.constant 0 : i32
    %c0_i32_1 = arith.constant 0 : i32
    return %arg0, %c0_i32, %c0_i32_0 : i32, i32, i32
  }
}

</mosaic_0001>

<llo_original>
// kernel: bert_emb_forward.1
$region0: #{bert_emb_forward.1}
  #allocation0 [shape = 'u32[]', space=smem, size = 0x4, offset = 0x4, fixed_abs, tag = 'smem constant byte address 0x4 - core index']
  #allocation1 [shape = 'u32[144,128]{1,0:T(1,128)}', space=vmem, size = 0x12000, scoped, tag = 'internal scratch']
  %s0 = inlined_call_operand.smem [shape: u32[31], index: -1, kind: input, shape index: {}]
  %s1 = sld [smem:[%s0]]
  %s2 = scalar_lea.smem %s0, 1
  %s3 = sld [smem:[%s2]]
  %s4 = scalar_lea.smem %s0, 2
  %s5 = sld [smem:[%s4]]
  %s6 = scalar_lea.smem %s0, 3
  %s7 = sld [smem:[%s6]]
  %s8 = scalar_lea.smem %s0, 4
  %s9 = sld [smem:[%s8]]
  %s10 = scalar_lea.smem %s0, 5
  %s11 = sld [smem:[%s10]]
  %s12 = scalar_lea.smem %s0, 6
  %s13 = sld [smem:[%s12]]
  %s14 = scalar_lea.smem %s0, 7
  %s15 = sld [smem:[%s14]]
  %s16 = scalar_lea.smem %s0, 8
  %s17 = sld [smem:[%s16]]
  %s18 = scalar_lea.smem %s0, 9
  %s19 = sld [smem:[%s18]]
  %s20 = scalar_lea.smem %s0, 10
  %s21 = sld [smem:[%s20]]
  %s22 = scalar_lea.smem %s0, 11
  %s23 = sld [smem:[%s22]]
  %s24 = scalar_lea.smem %s0, 12
  %s25 = sld [smem:[%s24]]
  %s26 = scalar_lea.smem %s0, 13
  %s27 = sld [smem:[%s26]]
  %s28 = scalar_lea.smem %s0, 14
  %s29 = sld [smem:[%s28]]
  %s30 = scalar_lea.smem %s0, 15
  %s31 = sld [smem:[%s30]]
  %s32 = scalar_lea.smem %s0, 16
  %s33 = sld [smem:[%s32]]
  %s34 = scalar_lea.smem %s0, 17
  %s35 = sld [smem:[%s34]]
  %s36 = scalar_lea.smem %s0, 18
  %s37 = sld [smem:[%s36]]
  %s38 = scalar_lea.smem %s0, 19
  %s39 = sld [smem:[%s38]]
  %s40 = scalar_lea.smem %s0, 20
  %s41 = sld [smem:[%s40]]
  %s42 = scalar_lea.smem %s0, 21
  %s43 = sld [smem:[%s42]]
  %s44 = scalar_lea.smem %s0, 22
  %s45 = sld [smem:[%s44]]
  %s46 = scalar_lea.smem %s0, 23
  %s47 = sld [smem:[%s46]]
  %s48 = scalar_lea.smem %s0, 24
  %s49 = sld [smem:[%s48]]
  %s50 = scalar_lea.smem %s0, 25
  %s51 = sld [smem:[%s50]]
  %s52 = scalar_lea.smem %s0, 26
  %s53 = sld [smem:[%s52]]
  %s54 = scalar_lea.smem %s0, 27
  %s55 = sld [smem:[%s54]]
  %s56 = scalar_lea.smem %s0, 28
  %s57 = sld [smem:[%s56]]
  %s58 = scalar_lea.smem %s0, 29
  %s59 = sld [smem:[%s58]]
  %s60 = scalar_lea.smem %s0, 30
  %s61 = sld [smem:[%s60]]
  %s62 = sld [smem:[#allocation0]]
  $region153: #{bert_emb_forward.1} parent=0
    _
  %s64 = ssub.s32 1, %s62
  %s65 = scalar_select 0, %s64, %s62
  $region1: #{bert_emb_forward.1} parent=0
    #allocation2 [shape = 'u8[1024]{0}', space=vmem, size = 0x400, scoped, tag = 'output window, operand 0']
    #allocation3 [shape = 's32[2]{0}', space=sflag, size = 0x8, scoped, tag = 'scoped memory for bert_emb_forward.1']
    %66 = vsyncpa [#allocation3], 0
    %s67 = scalar_lea.sflag [#allocation3], 1
    %68 = vsyncpa %s67, 0
    loop: start=0, step=1, limit=4
    $region2: #{bert_emb_forward.1} parent=1 // loop_pre_header
      _
    $region3: #{bert_emb_forward.1} parent=1 // loop_header
      %s70 = sphi 0, %s74
      %p71 = scmp.ge.s32.totalorder %s70, 4
      %s80 = sphi 0, %s82
      %s83 = sphi 0, %s80
      %s84 = sphi 0, %s83
      %s100 = sphi 0, %s84
      %s106 = sphi 0, %s108
      %s109 = sphi 0, %s106
      %s110 = sphi 0, %s109
      %s126 = sphi 0, %s110
      %s130 = sphi 0, %s130
      %s132 = sphi 0, %s130
      %s133 = sphi 0, %s132
      %s147 = sphi 0, %s133
      %s151 = sphi 0, %s151
      %s153 = sphi 0, %s151
      %s154 = sphi 0, %s153
      %s168 = sphi 0, %s154
      %s172 = sphi 0, %s172
      %s174 = sphi 0, %s172
      %s175 = sphi 0, %s174
      %s189 = sphi 0, %s175
      %s193 = sphi 0, %s193
      %s195 = sphi 0, %s193
      %s196 = sphi 0, %s195
      %s210 = sphi 0, %s196
      %s214 = sphi 0, %s214
      %s216 = sphi 0, %s214
      %s217 = sphi 0, %s216
      %s231 = sphi 0, %s217
      %s235 = sphi 0, %s235
      %s237 = sphi 0, %s235
      %s238 = sphi 0, %s237
      %s252 = sphi 0, %s238
      %s256 = sphi 0, %s256
      %s258 = sphi 0, %s256
      %s259 = sphi 0, %s258
      %s273 = sphi 0, %s259
      %s277 = sphi 0, %s277
      %s279 = sphi 0, %s277
      %s280 = sphi 0, %s279
      %s294 = sphi 0, %s280
      %s298 = sphi 0, %s298
      %s300 = sphi 0, %s298
      %s301 = sphi 0, %s300
      %s315 = sphi 0, %s301
      %s319 = sphi 0, %s319
      %s321 = sphi 0, %s319
      %s322 = sphi 0, %s321
      %s336 = sphi 0, %s322
      %s340 = sphi 0, %s340
      %s342 = sphi 0, %s340
      %s343 = sphi 0, %s342
      %s357 = sphi 0, %s343
      %s361 = sphi 0, %s361
      %s363 = sphi 0, %s361
      %s364 = sphi 0, %s363
      %s378 = sphi 0, %s364
      %s382 = sphi 0, %s382
      %s384 = sphi 0, %s382
      %s385 = sphi 0, %s384
      %s399 = sphi 0, %s385
      %s403 = sphi 0, %s403
      %s405 = sphi 0, %s403
      %s406 = sphi 0, %s405
      %s420 = sphi 0, %s406
      %s424 = sphi 0, %s424
      %s426 = sphi 0, %s424
      %s427 = sphi 0, %s426
      %s441 = sphi 0, %s427
      %s445 = sphi 0, %s445
      %s447 = sphi 0, %s445
      %s448 = sphi 0, %s447
      %s462 = sphi 0, %s448
      %s466 = sphi 0, %s466
      %s468 = sphi 0, %s466
      %s469 = sphi 0, %s468
      %s483 = sphi 0, %s469
      %s487 = sphi 0, %s487
      %s489 = sphi 0, %s487
      %s490 = sphi 0, %s489
      %s504 = sphi 0, %s490
      %s508 = sphi 0, %s508
      %s510 = sphi 0, %s508
      %s511 = sphi 0, %s510
      %s525 = sphi 0, %s511
      %s529 = sphi 0, %s529
      %s531 = sphi 0, %s529
      %s532 = sphi 0, %s531
      %s546 = sphi 0, %s532
      %s550 = sphi 0, %s550
      %s552 = sphi 0, %s550
      %s553 = sphi 0, %s552
      %s567 = sphi 0, %s553
      %s571 = sphi 0, %s571
      %s573 = sphi 0, %s571
      %s574 = sphi 0, %s573
      %s588 = sphi 0, %s574
      %s592 = sphi 0, %s592
      %s594 = sphi 0, %s592
      %s595 = sphi 0, %s594
      %s609 = sphi 0, %s595
      %s613 = sphi 0, %s613
      %s615 = sphi 0, %s613
      %s616 = sphi 0, %s615
      %s630 = sphi 0, %s616
      %s634 = sphi 0, %s634
      %s636 = sphi 0, %s634
      %s637 = sphi 0, %s636
      %s651 = sphi 0, %s637
      %s655 = sphi 0, %s655
      %s657 = sphi 0, %s655
      %s658 = sphi 0, %s657
      %s672 = sphi 0, %s658
      %s676 = sphi 0, %s676
      %s678 = sphi 0, %s676
      %s679 = sphi 0, %s678
      %s693 = sphi 0, %s679
      %s697 = sphi 0, %s697
      %s699 = sphi 0, %s697
      %s700 = sphi 0, %s699
      %s714 = sphi 0, %s700
      %s720 = sphi 0, %s722
      %s723 = sphi 0, %s720
      %s724 = sphi 0, %s723
      %s740 = sphi 0, %s724
    $region4: #{bert_emb_forward.1} parent=1 // loop_header_branch
      %73 = sbr.rel (%p71) target = $region8
    $region5: #{bert_emb_forward.1} parent=1 // loop_body
      %s75 = ssub.s32 %s70, 1
      %s76 = ssub.s32 %s70, 2
      %s77 = sadd.s32 %s70, 1
      %s78 = ssub.s32 %s70, %s77
      %p79 = scmp.eq.s32.totalorder %s78, 0
      %s81 = sadd.s32 %s80, 1
      %s82 = scalar_select %p79, %s80, %s81
      %p85 = pneg %p79
      %p86 = scmp.eq.s32.totalorder %s70, 1
      %p87 = por %p85, %p86
      %p88 = scmp.ne.s32.totalorder %s80, %s83
      %p89 = scmp.eq.s32.totalorder %s70, 0
      %p90 = por %p88, %p89
      %p91 = scmp.ne.s32.totalorder %s80, %s83
      %p92 = scmp.eq.s32.totalorder %s75, 1
      %p93 = por %p91, %p92
      %p94 = scmp.ne.s32.totalorder %s83, %s84
      %p95 = scmp.eq.s32.totalorder %s75, 0
      %p96 = por %p94, %p95
      %p97 = scmp.ne.s32.totalorder %s83, %s84
      %p98 = scmp.eq.s32.totalorder %s76, 1
      %p99 = por %p97, %p98
      %p101 = scmp.ne.s32.totalorder %s84, %s100
      %p102 = scmp.eq.s32.totalorder %s76, 0
      %p103 = por %p101, %p102
      %s104 = ssub.s32 %s70, %s77
      %p105 = scmp.eq.s32.totalorder %s104, 0
      %s107 = sadd.s32 %s106, 1
      %s108 = scalar_select %p105, %s106, %s107
      %p111 = pneg %p105
      %p112 = scmp.eq.s32.totalorder %s70, 1
      %p113 = por %p111, %p112
      %p114 = scmp.ne.s32.totalorder %s106, %s109
      %p115 = scmp.eq.s32.totalorder %s70, 0
      %p116 = por %p114, %p115
      %p117 = scmp.ne.s32.totalorder %s106, %s109
      %p118 = scmp.eq.s32.totalorder %s75, 1
      %p119 = por %p117, %p118
      %p120 = scmp.ne.s32.totalorder %s109, %s110
      %p121 = scmp.eq.s32.totalorder %s75, 0
      %p122 = por %p120, %p121
      %p123 = scmp.ne.s32.totalorder %s109, %s110
      %p124 = scmp.eq.s32.totalorder %s76, 1
      %p125 = por %p123, %p124
      %p127 = scmp.ne.s32.totalorder %s110, %s126
      %p128 = scmp.eq.s32.totalorder %s76, 0
      %p129 = por %p127, %p128
      %s131 = sadd.s32 %s130, 1
      %p134 = scmp.eq.s32.totalorder %s70, 1
      %p135 = scmp.ne.s32.totalorder %s130, %s132
      %p136 = scmp.eq.s32.totalorder %s70, 0
      %p137 = por %p135, %p136
      %p138 = scmp.ne.s32.totalorder %s130, %s132
      %p139 = scmp.eq.s32.totalorder %s75, 1
      %p140 = por %p138, %p139
      %p141 = scmp.ne.s32.totalorder %s132, %s133
      %p142 = scmp.eq.s32.totalorder %s75, 0
      %p143 = por %p141, %p142
      %p144 = scmp.ne.s32.totalorder %s132, %s133
      %p145 = scmp.eq.s32.totalorder %s76, 1
      %p146 = por %p144, %p145
      %p148 = scmp.ne.s32.totalorder %s133, %s147
      %p149 = scmp.eq.s32.totalorder %s76, 0
      %p150 = por %p148, %p149
      %s152 = sadd.s32 %s151, 1
      %p155 = scmp.eq.s32.totalorder %s70, 1
      %p156 = scmp.ne.s32.totalorder %s151, %s153
      %p157 = scmp.eq.s32.totalorder %s70, 0
      %p158 = por %p156, %p157
      %p159 = scmp.ne.s32.totalorder %s151, %s153
      %p160 = scmp.eq.s32.totalorder %s75, 1
      %p161 = por %p159, %p160
      %p162 = scmp.ne.s32.totalorder %s153, %s154
      %p163 = scmp.eq.s32.totalorder %s75, 0
      %p164 = por %p162, %p163
      %p165 = scmp.ne.s32.totalorder %s153, %s154
      %p166 = scmp.eq.s32.totalorder %s76, 1
      %p167 = por %p165, %p166
      %p169 = scmp.ne.s32.totalorder %s154, %s168
      %p170 = scmp.eq.s32.totalorder %s76, 0
      %p171 = por %p169, %p170
      %s173 = sadd.s32 %s172, 1
      %p176 = scmp.eq.s32.totalorder %s70, 1
      %p177 = scmp.ne.s32.totalorder %s172, %s174
      %p178 = scmp.eq.s32.totalorder %s70, 0
      %p179 = por %p177, %p178
      %p180 = scmp.ne.s32.totalorder %s172, %s174
      %p181 = scmp.eq.s32.totalorder %s75, 1
      %p182 = por %p180, %p181
      %p183 = scmp.ne.s32.totalorder %s174, %s175
      %p184 = scmp.eq.s32.totalorder %s75, 0
      %p185 = por %p183, %p184
      %p186 = scmp.ne.s32.totalorder %s174, %s175
      %p187 = scmp.eq.s32.totalorder %s76, 1
      %p188 = por %p186, %p187
      %p190 = scmp.ne.s32.totalorder %s175, %s189
      %p191 = scmp.eq.s32.totalorder %s76, 0
      %p192 = por %p190, %p191
      %s194 = sadd.s32 %s193, 1
      %p197 = scmp.eq.s32.totalorder %s70, 1
      %p198 = scmp.ne.s32.totalorder %s193, %s195
      %p199 = scmp.eq.s32.totalorder %s70, 0
      %p200 = por %p198, %p199
      %p201 = scmp.ne.s32.totalorder %s193, %s195
      %p202 = scmp.eq.s32.totalorder %s75, 1
      %p203 = por %p201, %p202
      %p204 = scmp.ne.s32.totalorder %s195, %s196
      %p205 = scmp.eq.s32.totalorder %s75, 0
      %p206 = por %p204, %p205
      %p207 = scmp.ne.s32.totalorder %s195, %s196
      %p208 = scmp.eq.s32.totalorder %s76, 1
      %p209 = por %p207, %p208
      %p211 = scmp.ne.s32.totalorder %s196, %s210
      %p212 = scmp.eq.s32.totalorder %s76, 0
      %p213 = por %p211, %p212
      %s215 = sadd.s32 %s214, 1
      %p218 = scmp.eq.s32.totalorder %s70, 1
      %p219 = scmp.ne.s32.totalorder %s214, %s216
      %p220 = scmp.eq.s32.totalorder %s70, 0
      %p221 = por %p219, %p220
      %p222 = scmp.ne.s32.totalorder %s214, %s216
      %p223 = scmp.eq.s32.totalorder %s75, 1
      %p224 = por %p222, %p223
      %p225 = scmp.ne.s32.totalorder %s216, %s217
      %p226 = scmp.eq.s32.totalorder %s75, 0
      %p227 = por %p225, %p226
      %p228 = scmp.ne.s32.totalorder %s216, %s217
      %p229 = scmp.eq.s32.totalorder %s76, 1
      %p230 = por %p228, %p229
      %p232 = scmp.ne.s32.totalorder %s217, %s231
      %p233 = scmp.eq.s32.totalorder %s76, 0
      %p234 = por %p232, %p233
      %s236 = sadd.s32 %s235, 1
      %p239 = scmp.eq.s32.totalorder %s70, 1
      %p240 = scmp.ne.s32.totalorder %s235, %s237
      %p241 = scmp.eq.s32.totalorder %s70, 0
      %p242 = por %p240, %p241
      %p243 = scmp.ne.s32.totalorder %s235, %s237
      %p244 = scmp.eq.s32.totalorder %s75, 1
      %p245 = por %p243, %p244
      %p246 = scmp.ne.s32.totalorder %s237, %s238
      %p247 = scmp.eq.s32.totalorder %s75, 0
      %p248 = por %p246, %p247
      %p249 = scmp.ne.s32.totalorder %s237, %s238
      %p250 = scmp.eq.s32.totalorder %s76, 1
      %p251 = por %p249, %p250
      %p253 = scmp.ne.s32.totalorder %s238, %s252
      %p254 = scmp.eq.s32.totalorder %s76, 0
      %p255 = por %p253, %p254
      %s257 = sadd.s32 %s256, 1
      %p260 = scmp.eq.s32.totalorder %s70, 1
      %p261 = scmp.ne.s32.totalorder %s256, %s258
      %p262 = scmp.eq.s32.totalorder %s70, 0
      %p263 = por %p261, %p262
      %p264 = scmp.ne.s32.totalorder %s256, %s258
      %p265 = scmp.eq.s32.totalorder %s75, 1
      %p266 = por %p264, %p265
      %p267 = scmp.ne.s32.totalorder %s258, %s259
      %p268 = scmp.eq.s32.totalorder %s75, 0
      %p269 = por %p267, %p268
      %p270 = scmp.ne.s32.totalorder %s258, %s259
      %p271 = scmp.eq.s32.totalorder %s76, 1
      %p272 = por %p270, %p271
      %p274 = scmp.ne.s32.totalorder %s259, %s273
      %p275 = scmp.eq.s32.totalorder %s76, 0
      %p276 = por %p274, %p275
      %s278 = sadd.s32 %s277, 1
      %p281 = scmp.eq.s32.totalorder %s70, 1
      %p282 = scmp.ne.s32.totalorder %s277, %s279
      %p283 = scmp.eq.s32.totalorder %s70, 0
      %p284 = por %p282, %p283
      %p285 = scmp.ne.s32.totalorder %s277, %s279
      %p286 = scmp.eq.s32.totalorder %s75, 1
      %p287 = por %p285, %p286
      %p288 = scmp.ne.s32.totalorder %s279, %s280
      %p289 = scmp.eq.s32.totalorder %s75, 0
      %p290 = por %p288, %p289
      %p291 = scmp.ne.s32.totalorder %s279, %s280
      %p292 = scmp.eq.s32.totalorder %s76, 1
      %p293 = por %p291, %p292
      %p295 = scmp.ne.s32.totalorder %s280, %s294
      %p296 = scmp.eq.s32.totalorder %s76, 0
      %p297 = por %p295, %p296
      %s299 = sadd.s32 %s298, 1
      %p302 = scmp.eq.s32.totalorder %s70, 1
      %p303 = scmp.ne.s32.totalorder %s298, %s300
      %p304 = scmp.eq.s32.totalorder %s70, 0
      %p305 = por %p303, %p304
      %p306 = scmp.ne.s32.totalorder %s298, %s300
      %p307 = scmp.eq.s32.totalorder %s75, 1
      %p308 = por %p306, %p307
      %p309 = scmp.ne.s32.totalorder %s300, %s301
      %p310 = scmp.eq.s32.totalorder %s75, 0
      %p311 = por %p309, %p310
      %p312 = scmp.ne.s32.totalorder %s300, %s301
      %p313 = scmp.eq.s32.totalorder %s76, 1
      %p314 = por %p312, %p313
      %p316 = scmp.ne.s32.totalorder %s301, %s315
      %p317 = scmp.eq.s32.totalorder %s76, 0
      %p318 = por %p316, %p317
      %s320 = sadd.s32 %s319, 1
      %p323 = scmp.eq.s32.totalorder %s70, 1
      %p324 = scmp.ne.s32.totalorder %s319, %s321
      %p325 = scmp.eq.s32.totalorder %s70, 0
      %p326 = por %p324, %p325
      %p327 = scmp.ne.s32.totalorder %s319, %s321
      %p328 = scmp.eq.s32.totalorder %s75, 1
      %p329 = por %p327, %p328
      %p330 = scmp.ne.s32.totalorder %s321, %s322
      %p331 = scmp.eq.s32.totalorder %s75, 0
      %p332 = por %p330, %p331
      %p333 = scmp.ne.s32.totalorder %s321, %s322
      %p334 = scmp.eq.s32.totalorder %s76, 1
      %p335 = por %p333, %p334
      %p337 = scmp.ne.s32.totalorder %s322, %s336
      %p338 = scmp.eq.s32.totalorder %s76, 0
      %p339 = por %p337, %p338
      %s341 = sadd.s32 %s340, 1
      %p344 = scmp.eq.s32.totalorder %s70, 1
      %p345 = scmp.ne.s32.totalorder %s340, %s342
      %p346 = scmp.eq.s32.totalorder %s70, 0
      %p347 = por %p345, %p346
      %p348 = scmp.ne.s32.totalorder %s340, %s342
      %p349 = scmp.eq.s32.totalorder %s75, 1
      %p350 = por %p348, %p349
      %p351 = scmp.ne.s32.totalorder %s342, %s343
      %p352 = scmp.eq.s32.totalorder %s75, 0
      %p353 = por %p351, %p352
      %p354 = scmp.ne.s32.totalorder %s342, %s343
      %p355 = scmp.eq.s32.totalorder %s76, 1
      %p356 = por %p354, %p355
      %p358 = scmp.ne.s32.totalorder %s343, %s357
      %p359 = scmp.eq.s32.totalorder %s76, 0
      %p360 = por %p358, %p359
      %s362 = sadd.s32 %s361, 1
      %p365 = scmp.eq.s32.totalorder %s70, 1
      %p366 = scmp.ne.s32.totalorder %s361, %s363
      %p367 = scmp.eq.s32.totalorder %s70, 0
      %p368 = por %p366, %p367
      %p369 = scmp.ne.s32.totalorder %s361, %s363
      %p370 = scmp.eq.s32.totalorder %s75, 1
      %p371 = por %p369, %p370
      %p372 = scmp.ne.s32.totalorder %s363, %s364
      %p373 = scmp.eq.s32.totalorder %s75, 0
      %p374 = por %p372, %p373
      %p375 = scmp.ne.s32.totalorder %s363, %s364
      %p376 = scmp.eq.s32.totalorder %s76, 1
      %p377 = por %p375, %p376
      %p379 = scmp.ne.s32.totalorder %s364, %s378
      %p380 = scmp.eq.s32.totalorder %s76, 0
      %p381 = por %p379, %p380
      %s383 = sadd.s32 %s382, 1
      %p386 = scmp.eq.s32.totalorder %s70, 1
      %p387 = scmp.ne.s32.totalorder %s382, %s384
      %p388 = scmp.eq.s32.totalorder %s70, 0
      %p389 = por %p387, %p388
      %p390 = scmp.ne.s32.totalorder %s382, %s384
      %p391 = scmp.eq.s32.totalorder %s75, 1
      %p392 = por %p390, %p391
      %p393 = scmp.ne.s32.totalorder %s384, %s385
      %p394 = scmp.eq.s32.totalorder %s75, 0
      %p395 = por %p393, %p394
      %p396 = scmp.ne.s32.totalorder %s384, %s385
      %p397 = scmp.eq.s32.totalorder %s76, 1
      %p398 = por %p396, %p397
      %p400 = scmp.ne.s32.totalorder %s385, %s399
      %p401 = scmp.eq.s32.totalorder %s76, 0
      %p402 = por %p400, %p401
      %s404 = sadd.s32 %s403, 1
      %p407 = scmp.eq.s32.totalorder %s70, 1
      %p408 = scmp.ne.s32.totalorder %s403, %s405
      %p409 = scmp.eq.s32.totalorder %s70, 0
      %p410 = por %p408, %p409
      %p411 = scmp.ne.s32.totalorder %s403, %s405
      %p412 = scmp.eq.s32.totalorder %s75, 1
      %p413 = por %p411, %p412
      %p414 = scmp.ne.s32.totalorder %s405, %s406
      %p415 = scmp.eq.s32.totalorder %s75, 0
      %p416 = por %p414, %p415
      %p417 = scmp.ne.s32.totalorder %s405, %s406
      %p418 = scmp.eq.s32.totalorder %s76, 1
      %p419 = por %p417, %p418
      %p421 = scmp.ne.s32.totalorder %s406, %s420
      %p422 = scmp.eq.s32.totalorder %s76, 0
      %p423 = por %p421, %p422
      %s425 = sadd.s32 %s424, 1
      %p428 = scmp.eq.s32.totalorder %s70, 1
      %p429 = scmp.ne.s32.totalorder %s424, %s426
      %p430 = scmp.eq.s32.totalorder %s70, 0
      %p431 = por %p429, %p430
      %p432 = scmp.ne.s32.totalorder %s424, %s426
      %p433 = scmp.eq.s32.totalorder %s75, 1
      %p434 = por %p432, %p433
      %p435 = scmp.ne.s32.totalorder %s426, %s427
      %p436 = scmp.eq.s32.totalorder %s75, 0
      %p437 = por %p435, %p436
      %p438 = scmp.ne.s32.totalorder %s426, %s427
      %p439 = scmp.eq.s32.totalorder %s76, 1
      %p440 = por %p438, %p439
      %p442 = scmp.ne.s32.totalorder %s427, %s441
      %p443 = scmp.eq.s32.totalorder %s76, 0
      %p444 = por %p442, %p443
      %s446 = sadd.s32 %s445, 1
      %p449 = scmp.eq.s32.totalorder %s70, 1
      %p450 = scmp.ne.s32.totalorder %s445, %s447
      %p451 = scmp.eq.s32.totalorder %s70, 0
      %p452 = por %p450, %p451
      %p453 = scmp.ne.s32.totalorder %s445, %s447
      %p454 = scmp.eq.s32.totalorder %s75, 1
      %p455 = por %p453, %p454
      %p456 = scmp.ne.s32.totalorder %s447, %s448
      %p457 = scmp.eq.s32.totalorder %s75, 0
      %p458 = por %p456, %p457
      %p459 = scmp.ne.s32.totalorder %s447, %s448
      %p460 = scmp.eq.s32.totalorder %s76, 1
      %p461 = por %p459, %p460
      %p463 = scmp.ne.s32.totalorder %s448, %s462
      %p464 = scmp.eq.s32.totalorder %s76, 0
      %p465 = por %p463, %p464
      %s467 = sadd.s32 %s466, 1
      %p470 = scmp.eq.s32.totalorder %s70, 1
      %p471 = scmp.ne.s32.totalorder %s466, %s468
      %p472 = scmp.eq.s32.totalorder %s70, 0
      %p473 = por %p471, %p472
      %p474 = scmp.ne.s32.totalorder %s466, %s468
      %p475 = scmp.eq.s32.totalorder %s75, 1
      %p476 = por %p474, %p475
      %p477 = scmp.ne.s32.totalorder %s468, %s469
      %p478 = scmp.eq.s32.totalorder %s75, 0
      %p479 = por %p477, %p478
      %p480 = scmp.ne.s32.totalorder %s468, %s469
      %p481 = scmp.eq.s32.totalorder %s76, 1
      %p482 = por %p480, %p481
      %p484 = scmp.ne.s32.totalorder %s469, %s483
      %p485 = scmp.eq.s32.totalorder %s76, 0
      %p486 = por %p484, %p485
      %s488 = sadd.s32 %s487, 1
      %p491 = scmp.eq.s32.totalorder %s70, 1
      %p492 = scmp.ne.s32.totalorder %s487, %s489
      %p493 = scmp.eq.s32.totalorder %s70, 0
      %p494 = por %p492, %p493
      %p495 = scmp.ne.s32.totalorder %s487, %s489
      %p496 = scmp.eq.s32.totalorder %s75, 1
      %p497 = por %p495, %p496
      %p498 = scmp.ne.s32.totalorder %s489, %s490
      %p499 = scmp.eq.s32.totalorder %s75, 0
      %p500 = por %p498, %p499
      %p501 = scmp.ne.s32.totalorder %s489, %s490
      %p502 = scmp.eq.s32.totalorder %s76, 1
      %p503 = por %p501, %p502
      %p505 = scmp.ne.s32.totalorder %s490, %s504
      %p506 = scmp.eq.s32.totalorder %s76, 0
      %p507 = por %p505, %p506
      %s509 = sadd.s32 %s508, 1
      %p512 = scmp.eq.s32.totalorder %s70, 1
      %p513 = scmp.ne.s32.totalorder %s508, %s510
      %p514 = scmp.eq.s32.totalorder %s70, 0
      %p515 = por %p513, %p514
      %p516 = scmp.ne.s32.totalorder %s508, %s510
      %p517 = scmp.eq.s32.totalorder %s75, 1
      %p518 = por %p516, %p517
      %p519 = scmp.ne.s32.totalorder %s510, %s511
      %p520 = scmp.eq.s32.totalorder %s75, 0
      %p521 = por %p519, %p520
      %p522 = scmp.ne.s32.totalorder %s510, %s511
      %p523 = scmp.eq.s32.totalorder %s76, 1
      %p524 = por %p522, %p523
      %p526 = scmp.ne.s32.totalorder %s511, %s525
      %p527 = scmp.eq.s32.totalorder %s76, 0
      %p528 = por %p526, %p527
      %s530 = sadd.s32 %s529, 1
      %p533 = scmp.eq.s32.totalorder %s70, 1
      %p534 = scmp.ne.s32.totalorder %s529, %s531
      %p535 = scmp.eq.s32.totalorder %s70, 0
      %p536 = por %p534, %p535
      %p537 = scmp.ne.s32.totalorder %s529, %s531
      %p538 = scmp.eq.s32.totalorder %s75, 1
      %p539 = por %p537, %p538
      %p540 = scmp.ne.s32.totalorder %s531, %s532
      %p541 = scmp.eq.s32.totalorder %s75, 0
      %p542 = por %p540, %p541
      %p543 = scmp.ne.s32.totalorder %s531, %s532
      %p544 = scmp.eq.s32.totalorder %s76, 1
      %p545 = por %p543, %p544
      %p547 = scmp.ne.s32.totalorder %s532, %s546
      %p548 = scmp.eq.s32.totalorder %s76, 0
      %p549 = por %p547, %p548
      %s551 = sadd.s32 %s550, 1
      %p554 = scmp.eq.s32.totalorder %s70, 1
      %p555 = scmp.ne.s32.totalorder %s550, %s552
      %p556 = scmp.eq.s32.totalorder %s70, 0
      %p557 = por %p555, %p556
      %p558 = scmp.ne.s32.totalorder %s550, %s552
      %p559 = scmp.eq.s32.totalorder %s75, 1
      %p560 = por %p558, %p559
      %p561 = scmp.ne.s32.totalorder %s552, %s553
      %p562 = scmp.eq.s32.totalorder %s75, 0
      %p563 = por %p561, %p562
      %p564 = scmp.ne.s32.totalorder %s552, %s553
      %p565 = scmp.eq.s32.totalorder %s76, 1
      %p566 = por %p564, %p565
      %p568 = scmp.ne.s32.totalorder %s553, %s567
      %p569 = scmp.eq.s32.totalorder %s76, 0
      %p570 = por %p568, %p569
      %s572 = sadd.s32 %s571, 1
      %p575 = scmp.eq.s32.totalorder %s70, 1
      %p576 = scmp.ne.s32.totalorder %s571, %s573
      %p577 = scmp.eq.s32.totalorder %s70, 0
      %p578 = por %p576, %p577
      %p579 = scmp.ne.s32.totalorder %s571, %s573
      %p580 = scmp.eq.s32.totalorder %s75, 1
      %p581 = por %p579, %p580
      %p582 = scmp.ne.s32.totalorder %s573, %s574
      %p583 = scmp.eq.s32.totalorder %s75, 0
      %p584 = por %p582, %p583
      %p585 = scmp.ne.s32.totalorder %s573, %s574
      %p586 = scmp.eq.s32.totalorder %s76, 1
      %p587 = por %p585, %p586
      %p589 = scmp.ne.s32.totalorder %s574, %s588
      %p590 = scmp.eq.s32.totalorder %s76, 0
      %p591 = por %p589, %p590
      %s593 = sadd.s32 %s592, 1
      %p596 = scmp.eq.s32.totalorder %s70, 1
      %p597 = scmp.ne.s32.totalorder %s592, %s594
      %p598 = scmp.eq.s32.totalorder %s70, 0
      %p599 = por %p597, %p598
      %p600 = scmp.ne.s32.totalorder %s592, %s594
      %p601 = scmp.eq.s32.totalorder %s75, 1
      %p602 = por %p600, %p601
      %p603 = scmp.ne.s32.totalorder %s594, %s595
      %p604 = scmp.eq.s32.totalorder %s75, 0
      %p605 = por %p603, %p604
      %p606 = scmp.ne.s32.totalorder %s594, %s595
      %p607 = scmp.eq.s32.totalorder %s76, 1
      %p608 = por %p606, %p607
      %p610 = scmp.ne.s32.totalorder %s595, %s609
      %p611 = scmp.eq.s32.totalorder %s76, 0
      %p612 = por %p610, %p611
      %s614 = sadd.s32 %s613, 1
      %p617 = scmp.eq.s32.totalorder %s70, 1
      %p618 = scmp.ne.s32.totalorder %s613, %s615
      %p619 = scmp.eq.s32.totalorder %s70, 0
      %p620 = por %p618, %p619
      %p621 = scmp.ne.s32.totalorder %s613, %s615
      %p622 = scmp.eq.s32.totalorder %s75, 1
      %p623 = por %p621, %p622
      %p624 = scmp.ne.s32.totalorder %s615, %s616
      %p625 = scmp.eq.s32.totalorder %s75, 0
      %p626 = por %p624, %p625
      %p627 = scmp.ne.s32.totalorder %s615, %s616
      %p628 = scmp.eq.s32.totalorder %s76, 1
      %p629 = por %p627, %p628
      %p631 = scmp.ne.s32.totalorder %s616, %s630
      %p632 = scmp.eq.s32.totalorder %s76, 0
      %p633 = por %p631, %p632
      %s635 = sadd.s32 %s634, 1
      %p638 = scmp.eq.s32.totalorder %s70, 1
      %p639 = scmp.ne.s32.totalorder %s634, %s636
      %p640 = scmp.eq.s32.totalorder %s70, 0
      %p641 = por %p639, %p640
      %p642 = scmp.ne.s32.totalorder %s634, %s636
      %p643 = scmp.eq.s32.totalorder %s75, 1
      %p644 = por %p642, %p643
      %p645 = scmp.ne.s32.totalorder %s636, %s637
      %p646 = scmp.eq.s32.totalorder %s75, 0
      %p647 = por %p645, %p646
      %p648 = scmp.ne.s32.totalorder %s636, %s637
      %p649 = scmp.eq.s32.totalorder %s76, 1
      %p650 = por %p648, %p649
      %p652 = scmp.ne.s32.totalorder %s637, %s651
      %p653 = scmp.eq.s32.totalorder %s76, 0
      %p654 = por %p652, %p653
      %s656 = sadd.s32 %s655, 1
      %p659 = scmp.eq.s32.totalorder %s70, 1
      %p660 = scmp.ne.s32.totalorder %s655, %s657
      %p661 = scmp.eq.s32.totalorder %s70, 0
      %p662 = por %p660, %p661
      %p663 = scmp.ne.s32.totalorder %s655, %s657
      %p664 = scmp.eq.s32.totalorder %s75, 1
      %p665 = por %p663, %p664
      %p666 = scmp.ne.s32.totalorder %s657, %s658
      %p667 = scmp.eq.s32.totalorder %s75, 0
      %p668 = por %p666, %p667
      %p669 = scmp.ne.s32.totalorder %s657, %s658
      %p670 = scmp.eq.s32.totalorder %s76, 1
      %p671 = por %p669, %p670
      %p673 = scmp.ne.s32.totalorder %s658, %s672
      %p674 = scmp.eq.s32.totalorder %s76, 0
      %p675 = por %p673, %p674
      %s677 = sadd.s32 %s676, 1
      %p680 = scmp.eq.s32.totalorder %s70, 1
      %p681 = scmp.ne.s32.totalorder %s676, %s678
      %p682 = scmp.eq.s32.totalorder %s70, 0
      %p683 = por %p681, %p682
      %p684 = scmp.ne.s32.totalorder %s676, %s678
      %p685 = scmp.eq.s32.totalorder %s75, 1
      %p686 = por %p684, %p685
      %p687 = scmp.ne.s32.totalorder %s678, %s679
      %p688 = scmp.eq.s32.totalorder %s75, 0
      %p689 = por %p687, %p688
      %p690 = scmp.ne.s32.totalorder %s678, %s679
      %p691 = scmp.eq.s32.totalorder %s76, 1
      %p692 = por %p690, %p691
      %p694 = scmp.ne.s32.totalorder %s679, %s693
      %p695 = scmp.eq.s32.totalorder %s76, 0
      %p696 = por %p694, %p695
      %s698 = sadd.s32 %s697, 1
      %p701 = scmp.eq.s32.totalorder %s70, 1
      %p702 = scmp.ne.s32.totalorder %s697, %s699
      %p703 = scmp.eq.s32.totalorder %s70, 0
      %p704 = por %p702, %p703
      %p705 = scmp.ne.s32.totalorder %s697, %s699
      %p706 = scmp.eq.s32.totalorder %s75, 1
      %p707 = por %p705, %p706
      %p708 = scmp.ne.s32.totalorder %s699, %s700
      %p709 = scmp.eq.s32.totalorder %s75, 0
      %p710 = por %p708, %p709
      %p711 = scmp.ne.s32.totalorder %s699, %s700
      %p712 = scmp.eq.s32.totalorder %s76, 1
      %p713 = por %p711, %p712
      %p715 = scmp.ne.s32.totalorder %s700, %s714
      %p716 = scmp.eq.s32.totalorder %s76, 0
      %p717 = por %p715, %p716
      %s718 = ssub.s32 %s70, %s77
      %p719 = scmp.eq.s32.totalorder %s718, 0
      %s721 = sadd.s32 %s720, 1
      %s722 = scalar_select %p719, %s720, %s721
      %p725 = pneg %p719
      %p726 = scmp.eq.s32.totalorder %s70, 1
      %p727 = por %p725, %p726
      %p728 = scmp.ne.s32.totalorder %s720, %s723
      %p729 = scmp.eq.s32.totalorder %s70, 0
      %p730 = por %p728, %p729
      %p731 = scmp.ne.s32.totalorder %s720, %s723
      %p732 = scmp.eq.s32.totalorder %s75, 1
      %p733 = por %p731, %p732
      %p734 = scmp.ne.s32.totalorder %s723, %s724
      %p735 = scmp.eq.s32.totalorder %s75, 0
      %p736 = por %p734, %p735
      %p737 = scmp.ne.s32.totalorder %s723, %s724
      %p738 = scmp.eq.s32.totalorder %s76, 1
      %p739 = por %p737, %p738
      %p741 = scmp.ne.s32.totalorder %s724, %s740
      %p742 = scmp.eq.s32.totalorder %s76, 0
      %p743 = por %p741, %p742
      %p744 = scmp.le.s32.totalorder 1, %s70
      %p745 = scmp.lt.s32.totalorder %s70, 3
      %p746 = pnand %p744, %p745
      %p747 = pneg %p746
      // Predicated region
      $region9: #{bert_emb_forward.1} parent=5 // pred_check
        _
      $region10: #{bert_emb_forward.1} parent=5 // pred_check_branch
        %749 = sbr.rel (%p746) target = $region12
      $region11: #{bert_emb_forward.1} parent=5 // pred_region
        %s750 = ssub.s32 %s70, 1
        // Predicated region
        $region13: #{bert_emb_forward.1} parent=11 // pred_check
          %p751 = pneg %p143
        $region14: #{bert_emb_forward.1} parent=11 // pred_check_branch
          %753 = sbr.rel (%p751) target = $region16
        $region15: #{bert_emb_forward.1} parent=11 // pred_region
          _
        $region16: #{bert_emb_forward.1} parent=11 // pred_fallthru
          _
        // Predicated region
        $region17: #{bert_emb_forward.1} parent=11 // pred_check
          %p754 = pneg %p164
        $region18: #{bert_emb_forward.1} parent=11 // pred_check_branch
          %756 = sbr.rel (%p754) target = $region20
        $region19: #{bert_emb_forward.1} parent=11 // pred_region
          _
        $region20: #{bert_emb_forward.1} parent=11 // pred_fallthru
          _
        // Predicated region
        $region21: #{bert_emb_forward.1} parent=11 // pred_check
          %p757 = pneg %p185
        $region22: #{bert_emb_forward.1} parent=11 // pred_check_branch
          %759 = sbr.rel (%p757) target = $region24
        $region23: #{bert_emb_forward.1} parent=11 // pred_region
          _
        $region24: #{bert_emb_forward.1} parent=11 // pred_fallthru
          _
        // Predicated region
        $region25: #{bert_emb_forward.1} parent=11 // pred_check
          %p760 = pneg %p206
        $region26: #{bert_emb_forward.1} parent=11 // pred_check_branch
          %762 = sbr.rel (%p760) target = $region28
        $region27: #{bert_emb_forward.1} parent=11 // pred_region
          _
        $region28: #{bert_emb_forward.1} parent=11 // pred_fallthru
          _
        // Predicated region
        $region29: #{bert_emb_forward.1} parent=11 // pred_check
          %p763 = pneg %p227
        $region30: #{bert_emb_forward.1} parent=11 // pred_check_branch
          %765 = sbr.rel (%p763) target = $region32
        $region31: #{bert_emb_forward.1} parent=11 // pred_region
          _
        $region32: #{bert_emb_forward.1} parent=11 // pred_fallthru
          _
        // Predicated region
        $region33: #{bert_emb_forward.1} parent=11 // pred_check
          %p766 = pneg %p248
        $region34: #{bert_emb_forward.1} parent=11 // pred_check_branch
          %768 = sbr.rel (%p766) target = $region36
        $region35: #{bert_emb_forward.1} parent=11 // pred_region
          _
        $region36: #{bert_emb_forward.1} parent=11 // pred_fallthru
          _
        // Predicated region
        $region37: #{bert_emb_forward.1} parent=11 // pred_check
          %p769 = pneg %p269
        $region38: #{bert_emb_forward.1} parent=11 // pred_check_branch
          %771 = sbr.rel (%p769) target = $region40
        $region39: #{bert_emb_forward.1} parent=11 // pred_region
          _
        $region40: #{bert_emb_forward.1} parent=11 // pred_fallthru
          _
        // Predicated region
        $region41: #{bert_emb_forward.1} parent=11 // pred_check
          %p772 = pneg %p290
        $region42: #{bert_emb_forward.1} parent=11 // pred_check_branch
          %774 = sbr.rel (%p772) target = $region44
        $region43: #{bert_emb_forward.1} parent=11 // pred_region
          _
        $region44: #{bert_emb_forward.1} parent=11 // pred_fallthru
          _
        // Predicated region
        $region45: #{bert_emb_forward.1} parent=11 // pred_check
          %p775 = pneg %p311
        $region46: #{bert_emb_forward.1} parent=11 // pred_check_branch
          %777 = sbr.rel (%p775) target = $region48
        $region47: #{bert_emb_forward.1} parent=11 // pred_region
          _
        $region48: #{bert_emb_forward.1} parent=11 // pred_fallthru
          _
        // Predicated region
        $region49: #{bert_emb_forward.1} parent=11 // pred_check
          %p778 = pneg %p332
        $region50: #{bert_emb_forward.1} parent=11 // pred_check_branch
          %780 = sbr.rel (%p778) target = $region52
        $region51: #{bert_emb_forward.1} parent=11 // pred_region
          _
        $region52: #{bert_emb_forward.1} parent=11 // pred_fallthru
          _
        // Predicated region
        $region53: #{bert_emb_forward.1} parent=11 // pred_check
          %p781 = pneg %p353
        $region54: #{bert_emb_forward.1} parent=11 // pred_check_branch
          %783 = sbr.rel (%p781) target = $region56
        $region55: #{bert_emb_forward.1} parent=11 // pred_region
          _
        $region56: #{bert_emb_forward.1} parent=11 // pred_fallthru
          _
        // Predicated region
        $region57: #{bert_emb_forward.1} parent=11 // pred_check
          %p784 = pneg %p374
        $region58: #{bert_emb_forward.1} parent=11 // pred_check_branch
          %786 = sbr.rel (%p784) target = $region60
        $region59: #{bert_emb_forward.1} parent=11 // pred_region
          _
        $region60: #{bert_emb_forward.1} parent=11 // pred_fallthru
          _
        // Predicated region
        $region61: #{bert_emb_forward.1} parent=11 // pred_check
          %p787 = pneg %p395
        $region62: #{bert_emb_forward.1} parent=11 // pred_check_branch
          %789 = sbr.rel (%p787) target = $region64
        $region63: #{bert_emb_forward.1} parent=11 // pred_region
          _
        $region64: #{bert_emb_forward.1} parent=11 // pred_fallthru
          _
        // Predicated region
        $region65: #{bert_emb_forward.1} parent=11 // pred_check
          %p790 = pneg %p416
        $region66: #{bert_emb_forward.1} parent=11 // pred_check_branch
          %792 = sbr.rel (%p790) target = $region68
        $region67: #{bert_emb_forward.1} parent=11 // pred_region
          _
        $region68: #{bert_emb_forward.1} parent=11 // pred_fallthru
          _
        // Predicated region
        $region69: #{bert_emb_forward.1} parent=11 // pred_check
          %p793 = pneg %p437
        $region70: #{bert_emb_forward.1} parent=11 // pred_check_branch
          %795 = sbr.rel (%p793) target = $region72
        $region71: #{bert_emb_forward.1} parent=11 // pred_region
          _
        $region72: #{bert_emb_forward.1} parent=11 // pred_fallthru
          _
        // Predicated region
        $region73: #{bert_emb_forward.1} parent=11 // pred_check
          %p796 = pneg %p458
        $region74: #{bert_emb_forward.1} parent=11 // pred_check_branch
          %798 = sbr.rel (%p796) target = $region76
        $region75: #{bert_emb_forward.1} parent=11 // pred_region
          _
        $region76: #{bert_emb_forward.1} parent=11 // pred_fallthru
          _
        // Predicated region
        $region77: #{bert_emb_forward.1} parent=11 // pred_check
          %p799 = pneg %p479
        $region78: #{bert_emb_forward.1} parent=11 // pred_check_branch
          %801 = sbr.rel (%p799) target = $region80
        $region79: #{bert_emb_forward.1} parent=11 // pred_region
          _
        $region80: #{bert_emb_forward.1} parent=11 // pred_fallthru
          _
        // Predicated region
        $region81: #{bert_emb_forward.1} parent=11 // pred_check
          %p802 = pneg %p500
        $region82: #{bert_emb_forward.1} parent=11 // pred_check_branch
          %804 = sbr.rel (%p802) target = $region84
        $region83: #{bert_emb_forward.1} parent=11 // pred_region
          _
        $region84: #{bert_emb_forward.1} parent=11 // pred_fallthru
          _
        // Predicated region
        $region85: #{bert_emb_forward.1} parent=11 // pred_check
          %p805 = pneg %p521
        $region86: #{bert_emb_forward.1} parent=11 // pred_check_branch
          %807 = sbr.rel (%p805) target = $region88
        $region87: #{bert_emb_forward.1} parent=11 // pred_region
          _
        $region88: #{bert_emb_forward.1} parent=11 // pred_fallthru
          _
        // Predicated region
        $region89: #{bert_emb_forward.1} parent=11 // pred_check
          %p808 = pneg %p542
        $region90: #{bert_emb_forward.1} parent=11 // pred_check_branch
          %810 = sbr.rel (%p808) target = $region92
        $region91: #{bert_emb_forward.1} parent=11 // pred_region
          _
        $region92: #{bert_emb_forward.1} parent=11 // pred_fallthru
          _
        // Predicated region
        $region93: #{bert_emb_forward.1} parent=11 // pred_check
          %p811 = pneg %p563
        $region94: #{bert_emb_forward.1} parent=11 // pred_check_branch
          %813 = sbr.rel (%p811) target = $region96
        $region95: #{bert_emb_forward.1} parent=11 // pred_region
          _
        $region96: #{bert_emb_forward.1} parent=11 // pred_fallthru
          _
        // Predicated region
        $region97: #{bert_emb_forward.1} parent=11 // pred_check
          %p814 = pneg %p584
        $region98: #{bert_emb_forward.1} parent=11 // pred_check_branch
          %816 = sbr.rel (%p814) target = $region100
        $region99: #{bert_emb_forward.1} parent=11 // pred_region
          _
        $region100: #{bert_emb_forward.1} parent=11 // pred_fallthru
          _
        // Predicated region
        $region101: #{bert_emb_forward.1} parent=11 // pred_check
          %p817 = pneg %p605
        $region102: #{bert_emb_forward.1} parent=11 // pred_check_branch
          %819 = sbr.rel (%p817) target = $region104
        $region103: #{bert_emb_forward.1} parent=11 // pred_region
          _
        $region104: #{bert_emb_forward.1} parent=11 // pred_fallthru
          _
        // Predicated region
        $region105: #{bert_emb_forward.1} parent=11 // pred_check
          %p820 = pneg %p626
        $region106: #{bert_emb_forward.1} parent=11 // pred_check_branch
          %822 = sbr.rel (%p820) target = $region108
        $region107: #{bert_emb_forward.1} parent=11 // pred_region
          _
        $region108: #{bert_emb_forward.1} parent=11 // pred_fallthru
          _
        // Predicated region
        $region109: #{bert_emb_forward.1} parent=11 // pred_check
          %p823 = pneg %p647
        $region110: #{bert_emb_forward.1} parent=11 // pred_check_branch
          %825 = sbr.rel (%p823) target = $region112
        $region111: #{bert_emb_forward.1} parent=11 // pred_region
          _
        $region112: #{bert_emb_forward.1} parent=11 // pred_fallthru
          _
        // Predicated region
        $region113: #{bert_emb_forward.1} parent=11 // pred_check
          %p826 = pneg %p668
        $region114: #{bert_emb_forward.1} parent=11 // pred_check_branch
          %828 = sbr.rel (%p826) target = $region116
        $region115: #{bert_emb_forward.1} parent=11 // pred_region
          _
        $region116: #{bert_emb_forward.1} parent=11 // pred_fallthru
          _
        // Predicated region
        $region117: #{bert_emb_forward.1} parent=11 // pred_check
          %p829 = pneg %p689
        $region118: #{bert_emb_forward.1} parent=11 // pred_check_branch
          %831 = sbr.rel (%p829) target = $region120
        $region119: #{bert_emb_forward.1} parent=11 // pred_region
          _
        $region120: #{bert_emb_forward.1} parent=11 // pred_fallthru
          _
        // Predicated region
        $region121: #{bert_emb_forward.1} parent=11 // pred_check
          %p832 = pneg %p710
        $region122: #{bert_emb_forward.1} parent=11 // pred_check_branch
          %834 = sbr.rel (%p832) target = $region124
        $region123: #{bert_emb_forward.1} parent=11 // pred_region
          _
        $region124: #{bert_emb_forward.1} parent=11 // pred_fallthru
          _
      $region12: #{bert_emb_forward.1} parent=5 // pred_fallthru
        _
      %p835 = scmp.lt.s32.totalorder %s70, 2
      // Predicated region
      $region125: #{bert_emb_forward.1} parent=5 // pred_check
        %p836 = pneg %p835
      $region126: #{bert_emb_forward.1} parent=5 // pred_check_branch
        %838 = sbr.rel (%p836) target = $region128
      $region127: #{bert_emb_forward.1} parent=5 // pred_region
        // Predicated region
        $region129: #{bert_emb_forward.1} parent=127 // pred_check
          %p839 = pneg %p90
        $region130: #{bert_emb_forward.1} parent=127 // pred_check_branch
          %841 = sbr.rel (%p839) target = $region132
        $region131: #{bert_emb_forward.1} parent=127 // pred_region
          %p842 = scmp.lt.s32.totalorder %s70, 1
          %s843 = scalar_select %p842, %s70, 1
          %s844 = smul.addr %s843, 8
          %s845 = scalar_lea.vmem %s1, %s844
        $region132: #{bert_emb_forward.1} parent=127 // pred_fallthru
          _
        // Predicated region
        $region133: #{bert_emb_forward.1} parent=127 // pred_check
          %p846 = pneg %p116
        $region134: #{bert_emb_forward.1} parent=127 // pred_check_branch
          %848 = sbr.rel (%p846) target = $region136
        $region135: #{bert_emb_forward.1} parent=127 // pred_region
          %p849 = scmp.lt.s32.totalorder %s70, 1
          %s850 = scalar_select %p849, %s70, 1
          %s851 = scalar_lea.vmem %s3, %s850
        $region136: #{bert_emb_forward.1} parent=127 // pred_fallthru
          _
      $region128: #{bert_emb_forward.1} parent=5 // pred_fallthru
        _
      %p852 = scmp.le.s32.totalorder 1, %s70
      %p853 = scmp.lt.s32.totalorder %s70, 3
      %p854 = pnand %p852, %p853
      %p855 = pneg %p854
      // Predicated region
      $region137: #{bert_emb_forward.1} parent=5 // pred_check
        _
      $region138: #{bert_emb_forward.1} parent=5 // pred_check_branch
        %857 = sbr.rel (%p854) target = $region140
      $region139: #{bert_emb_forward.1} parent=5 // pred_region
        %s858 = ssub.s32 %s70, 1
        %p859 = scmp.lt.s32.totalorder %s75, 1
        %s860 = scalar_select %p859, %s75, 1
        %s861 = smul.addr %s860, 8
        %s862 = scalar_lea.vmem %s1, %s861
        %p863 = pneg %p96
        %p864 = pneg %p93
        %p865 = scmp.lt.s32.totalorder %s75, 1
        %s866 = scalar_select %p865, %s75, 1
        %s867 = scalar_lea.vmem %s3, %s866
        %p868 = pneg %p122
        %p869 = pneg %p119
        %p870 = pneg %p143
        %p871 = pneg %p140
        %p872 = pneg %p164
        %p873 = pneg %p161
        %p874 = pneg %p185
        %p875 = pneg %p182
        %p876 = pneg %p206
        %p877 = pneg %p203
        %p878 = pneg %p227
        %p879 = pneg %p224
        %p880 = pneg %p248
        %p881 = pneg %p245
        %p882 = pneg %p269
        %p883 = pneg %p266
        %p884 = pneg %p290
        %p885 = pneg %p287
        %p886 = pneg %p311
        %p887 = pneg %p308
        %p888 = pneg %p332
        %p889 = pneg %p329
        %p890 = pneg %p353
        %p891 = pneg %p350
        %p892 = pneg %p374
        %p893 = pneg %p371
        %p894 = pneg %p395
        %p895 = pneg %p392
        %p896 = pneg %p416
        %p897 = pneg %p413
        %p898 = pneg %p437
        %p899 = pneg %p434
        %p900 = pneg %p458
        %p901 = pneg %p455
        %p902 = pneg %p479
        %p903 = pneg %p476
        %p904 = pneg %p500
        %p905 = pneg %p497
        %p906 = pneg %p521
        %p907 = pneg %p518
        %p908 = pneg %p542
        %p909 = pneg %p539
        %p910 = pneg %p563
        %p911 = pneg %p560
        %p912 = pneg %p584
        %p913 = pneg %p581
        %p914 = pneg %p605
        %p915 = pneg %p602
        %p916 = pneg %p626
        %p917 = pneg %p623
        %p918 = pneg %p647
        %p919 = pneg %p644
        %p920 = pneg %p668
        %p921 = pneg %p665
        %p922 = pneg %p689
        %p923 = pneg %p686
        %p924 = pneg %p710
        %p925 = pneg %p707
        %p926 = pneg %p736
        %p927 = pneg %p733
        %s928 = sand.u32 %s723, 1
        %s929 = scalar_lea.sflag [#allocation3], %s928
        %s930 = sand.u32 %s723, 1
        %s931 = scalar_lea.vmem [#allocation2], %s930
        %p932 = scmp.lt.s32.totalorder %s75, 1
        %s933 = scalar_select %p932, %s75, 1
        %s934 = smul.addr %s933, 8
        %s935 = scalar_lea.vmem %s1, %s934
        %p936 = scmp.lt.s32.totalorder %s75, 1
        %s937 = scalar_select %p936, %s75, 1
        %s938 = scalar_lea.vmem %s3, %s937
        %v939 = vld [vmem:[%s935] sm:$0xff]
        %v940 = vld [vmem:[%s5] sm:$0xff]
        %v941 = vadd.f32 %v939, %v940
        %v942 = vld [vmem:[%s7] sm:$0x1]
        %v944 = vlaneseq
        %v945 = vshrl.u32 %v944, 7
        %v946 = vsub.s32 0, %v945
        %v947 = vrot.slane %v942, %v946
        %v949 = vadd.f32 %v941, %v947
        %v950 = vld [vmem:[%s9] sm:$0x1]
        %v951 = vld [vmem:[%s11] sm:$0x1]
        %vm952 = vcmask 261120
        %v953 = vsel %vm952, %v949, 0.0
        %954 = vadd.xlane.f32.xlu0 %v953
        %v955 = vpop.xlane.xlu0 %954
        %v956 = vrcp.pop 32.0
        %v957 = vmul.f32 %v955, %v956
        %v958 = vsub.f32 %v949, %v957
        %v959 = vmul.f32 %v958, %v958
        %v960 = vsel %vm952, %v959, 0.0
        %961 = vadd.xlane.f32.xlu0 %v960
        %v962 = vpop.xlane.xlu0 %961
        %v963 = vmul.f32 %v962, %v956
        %v964 = vadd.f32 %v963, 1e-12
        %v965 = vrsqrt.pop %v964
        %v966 = vmul.f32 %v958, %v965
        %v968 = vlaneseq
        %v969 = vshrl.u32 %v968, 7
        %v970 = vsub.s32 0, %v969
        %v971 = vrot.slane %v950, %v970
        %v973 = vmul.f32 %v966, %v971
        %v975 = vlaneseq
        %v976 = vshrl.u32 %v975, 7
        %v977 = vsub.s32 0, %v976
        %v978 = vrot.slane %v951, %v977
        %v980 = vadd.f32 %v973, %v978
        %v981 = vld [vmem:[%s938] sm:$0x1]
        %v982 = vsub.f32 %v981, 1.0
        %v983 = vmul.f32 %v982, 1e+09
        %v984 = vld [vmem:[%s13] sm:$0xff]
        %v985 = vld [vmem:[%s13 + $0x8] sm:$0xff]
        %v986 = vld [vmem:[%s13 + $0x10] sm:$0xff]
        %v987 = vld [vmem:[%s13 + $0x18] sm:$0xff]
        %v988 = vld [vmem:[%s15] sm:$0x1]
        %v990 = vlaneseq
        %v991 = vshrl.u32 %v990, 7
        %v992 = vsub.s32 0, %v991
        %v993 = vrot.slane %v988, %v992
        %v996 = vsel %vm952, %v980, 0
        %998 = vmatprep.subr.mxu0 0.0
        %999 = vmatpush1.msra.mxu0 0.0
        %1000 = vmatprep.subr.mxu0 0.0
        %1001 = vmatpush1.msra.mxu0 0.0
        %1002 = vmatprep.subr.mxu0 0.0
        %1003 = vmatpush1.msra.mxu0 0.0
        %1004 = vmatprep.subr.mxu0 0.0
        %1005 = vmatpush1.msra.mxu0 0.0
        %1006 = vmatprep.subr.mxu0 0.0
        %1007 = vmatpush1.msra.mxu0 0.0
        %1008 = vmatprep.subr.mxu0 0.0
        %1009 = vmatpush1.msra.mxu0 0.0
        %1010 = vmatprep.subr.mxu0 0.0
        %1011 = vmatpush1.msra.mxu0 0.0
        %1012 = vmatprep.subr.mxu0 0.0
        %1013 = vmatpush1.msra.mxu0 0.0
        %1014 = vmatprep.subr.mxu0 0.0
        %1015 = vmatpush1.msra.mxu0 0.0
        %1016 = vmatprep.subr.mxu0 0.0
        %1017 = vmatpush1.msra.mxu0 0.0
        %1018 = vmatprep.subr.mxu0 0.0
        %1019 = vmatpush1.msra.mxu0 0.0
        %1020 = vmatprep.subr.mxu0 0.0
        %1021 = vmatpush1.msra.mxu0 0.0
        %1022 = vmatprep.subr.mxu0 0.0
        %1023 = vmatpush1.msra.mxu0 %v987
        %1024 = vmatprep.subr.mxu0 0.0
        %1025 = vmatpush1.msra.mxu0 %v986
        %1026 = vmatprep.subr.mxu0 0.0
        %1027 = vmatpush1.msra.mxu0 %v985
        %1028 = vmatprep.subr.mxu0 0.0
        %1029 = vmatpush1.msra.mxu0 %v984
        %1030 = vmatprep.subr.mxu0 0.0
        %1031 = vmatpush2.msra.mxu0 0.0
        %1032 = vmatprep.subr.mxu0 0.0
        %1033 = vmatpush2.msra.mxu0 0.0
        %1034 = vmatprep.subr.mxu0 0.0
        %1035 = vmatpush2.msra.mxu0 0.0
        %1036 = vmatprep.subr.mxu0 0.0
        %1037 = vmatpush2.msra.mxu0 0.0
        %1038 = vmatprep.subr.mxu0 0.0
        %1039 = vmatpush2.msra.mxu0 0.0
        %1040 = vmatprep.subr.mxu0 0.0
        %1041 = vmatpush2.msra.mxu0 0.0
        %1042 = vmatprep.subr.mxu0 0.0
        %1043 = vmatpush2.msra.mxu0 0.0
        %1044 = vmatprep.subr.mxu0 0.0
        %1045 = vmatpush2.msra.mxu0 0.0
        %1046 = vmatprep.subr.mxu0 0.0
        %1047 = vmatpush2.msra.mxu0 0.0
        %1048 = vmatprep.subr.mxu0 0.0
        %1049 = vmatpush2.msra.mxu0 0.0
        %1050 = vmatprep.subr.mxu0 0.0
        %1051 = vmatpush2.msra.mxu0 0.0
        %1052 = vmatprep.subr.mxu0 0.0
        %1053 = vmatpush2.msra.mxu0 0.0
        %1054 = vmatprep.subr.mxu0 0.0
        %1055 = vmatpush2.msra.mxu0 0.0
        %1056 = vmatprep.subr.mxu0 0.0
        %1057 = vmatpush2.msra.mxu0 0.0
        %1058 = vmatprep.subr.mxu0 0.0
        %1059 = vmatpush2.msra.mxu0 0.0
        %1060 = vmatprep.subr.mxu0 0.0
        %1061 = vmatpush2.msra.mxu0 0.0
        %1062 = vmatprep.mubr.f32.mxu0 0.0
        %1063 = vmatmul.mubr.f32.gmra.mxu0 %v996
        %v1064 = vpop.f32.mrf.mxu0
        %v1065 = vadd.f32 %v993, %v1064
        %v1066 = vpop.f32.mrf.mxu0
        %1067 = vdwg.mxu0
        %1069 = vrot.lane.b32.xlu0 %v1065, 96
        %v1070 = vpop.permute.xlu0 %1069
        %vm1071 = vcmask 130048
        %v1072 = vsel %vm1071, %v1065, 0
        %v1074 = vsel %vm1071, %v1070, 0
        %1076 = vmatprep.subr.mxu0 0.0
        %1077 = vmatpush1.xpose.msra.mxu0 0.0
        %1078 = vmatprep.subr.mxu0 0.0
        %1079 = vmatpush1.xpose.msra.mxu0 0.0
        %1080 = vmatprep.subr.mxu0 0.0
        %1081 = vmatpush1.xpose.msra.mxu0 0.0
        %1082 = vmatprep.subr.mxu0 0.0
        %1083 = vmatpush1.xpose.msra.mxu0 0.0
        %1084 = vmatprep.subr.mxu0 0.0
        %1085 = vmatpush1.xpose.msra.mxu0 0.0
        %1086 = vmatprep.subr.mxu0 0.0
        %1087 = vmatpush1.xpose.msra.mxu0 0.0
        %1088 = vmatprep.subr.mxu0 0.0
        %1089 = vmatpush1.xpose.msra.mxu0 0.0
        %1090 = vmatprep.subr.mxu0 0.0
        %1091 = vmatpush1.xpose.msra.mxu0 0.0
        %1092 = vmatprep.subr.mxu0 0.0
        %1093 = vmatpush1.xpose.msra.mxu0 0.0
        %1094 = vmatprep.subr.mxu0 0.0
        %1095 = vmatpush1.xpose.msra.mxu0 0.0
        %1096 = vmatprep.subr.mxu0 0.0
        %1097 = vmatpush1.xpose.msra.mxu0 0.0
        %1098 = vmatprep.subr.mxu0 0.0
        %1099 = vmatpush1.xpose.msra.mxu0 0.0
        %1100 = vmatprep.subr.mxu0 0.0
        %1101 = vmatpush1.xpose.msra.mxu0 0.0
        %1102 = vmatprep.subr.mxu0 0.0
        %1103 = vmatpush1.xpose.msra.mxu0 0.0
        %1104 = vmatprep.subr.mxu0 0.0
        %1105 = vmatpush1.xpose.msra.mxu0 0.0
        %1106 = vmatprep.subr.mxu0 0.0
        %1107 = vmatpush1.xpose.msra.mxu0 %v1074
        %1108 = vmatprep.subr.mxu0 0.0
        %1109 = vmatpush2.xpose.msra.mxu0 0.0
        %1110 = vmatprep.subr.mxu0 0.0
        %1111 = vmatpush2.xpose.msra.mxu0 0.0
        %1112 = vmatprep.subr.mxu0 0.0
        %1113 = vmatpush2.xpose.msra.mxu0 0.0
        %1114 = vmatprep.subr.mxu0 0.0
        %1115 = vmatpush2.xpose.msra.mxu0 0.0
        %1116 = vmatprep.subr.mxu0 0.0
        %1117 = vmatpush2.xpose.msra.mxu0 0.0
        %1118 = vmatprep.subr.mxu0 0.0
        %1119 = vmatpush2.xpose.msra.mxu0 0.0
        %1120 = vmatprep.subr.mxu0 0.0
        %1121 = vmatpush2.xpose.msra.mxu0 0.0
        %1122 = vmatprep.subr.mxu0 0.0
        %1123 = vmatpush2.xpose.msra.mxu0 0.0
        %1124 = vmatprep.subr.mxu0 0.0
        %1125 = vmatpush2.xpose.msra.mxu0 0.0
        %1126 = vmatprep.subr.mxu0 0.0
        %1127 = vmatpush2.xpose.msra.mxu0 0.0
        %1128 = vmatprep.subr.mxu0 0.0
        %1129 = vmatpush2.xpose.msra.mxu0 0.0
        %1130 = vmatprep.subr.mxu0 0.0
        %1131 = vmatpush2.xpose.msra.mxu0 0.0
        %1132 = vmatprep.subr.mxu0 0.0
        %1133 = vmatpush2.xpose.msra.mxu0 0.0
        %1134 = vmatprep.subr.mxu0 0.0
        %1135 = vmatpush2.xpose.msra.mxu0 0.0
        %1136 = vmatprep.subr.mxu0 0.0
        %1137 = vmatpush2.xpose.msra.mxu0 0.0
        %1138 = vmatprep.subr.mxu0 0.0
        %1139 = vmatpush2.xpose.msra.mxu0 0.0
        %1140 = vmatprep.mubr.f32.mxu0 0.0
        %1141 = vmatmul.mubr.f32.gmra.mxu0 %v1072
        %v1142 = vpop.f32.mrf.mxu0
        %v1143 = vadd.f32 0.0, %v1142
        %v1144 = vpop.f32.mrf.mxu0
        %1145 = vdwg.mxu0
        %v1146 = vmul.f32 %v1143, 0.25
        %v1148 = vlaneseq
        %v1149 = vshrl.u32 %v1148, 7
        %v1150 = vsub.s32 0, %v1149
        %v1151 = vrot.slane %v983, %v1150
        %v1153 = vadd.f32 %v1146, %v1151
        %vm1154 = vcmask 64512
        %v1155 = vsel %vm1154, %v1153, -inf
        %1156 = vmax.xlane.f32.xlu0 %v1155
        %v1157 = vpop.xlane.xlu0 %1156
        %v1158 = vsub.f32 %v1153, %v1157
        %v1159 = vmul.f32 %v1158, 1.442695
        %v1160 = vpow.pop %v1159
        %v1161 = vsel %vm1154, %v1160, 0.0
        %1162 = vadd.xlane.f32.xlu0 %v1161
        %v1163 = vpop.xlane.xlu0 %1162
        %v1164 = vrcp.pop %v1163
        %v1165 = vmul.f32 %v1160, %v1164
        %1166 = vrot.lane.b32.xlu0 %v1065, 64
        %v1167 = vpop.permute.xlu0 %1166
        %v1170 = vsel %vm1154, %v1165, 0
        %1172 = vmatprep.subr.mxu0 0.0
        %1173 = vmatpush1.msra.mxu0 0.0
        %1174 = vmatprep.subr.mxu0 0.0
        %1175 = vmatpush1.msra.mxu0 0.0
        %1176 = vmatprep.subr.mxu0 0.0
        %1177 = vmatpush1.msra.mxu0 0.0
        %1178 = vmatprep.subr.mxu0 0.0
        %1179 = vmatpush1.msra.mxu0 0.0
        %1180 = vmatprep.subr.mxu0 0.0
        %1181 = vmatpush1.msra.mxu0 0.0
        %1182 = vmatprep.subr.mxu0 0.0
        %1183 = vmatpush1.msra.mxu0 0.0
        %1184 = vmatprep.subr.mxu0 0.0
        %1185 = vmatpush1.msra.mxu0 0.0
        %1186 = vmatprep.subr.mxu0 0.0
        %1187 = vmatpush1.msra.mxu0 0.0
        %1188 = vmatprep.subr.mxu0 0.0
        %1189 = vmatpush1.msra.mxu0 0.0
        %1190 = vmatprep.subr.mxu0 0.0
        %1191 = vmatpush1.msra.mxu0 0.0
        %1192 = vmatprep.subr.mxu0 0.0
        %1193 = vmatpush1.msra.mxu0 0.0
        %1194 = vmatprep.subr.mxu0 0.0
        %1195 = vmatpush1.msra.mxu0 0.0
        %1196 = vmatprep.subr.mxu0 0.0
        %1197 = vmatpush1.msra.mxu0 0.0
        %1198 = vmatprep.subr.mxu0 0.0
        %1199 = vmatpush1.msra.mxu0 0.0
        %1200 = vmatprep.subr.mxu0 0.0
        %1201 = vmatpush1.msra.mxu0 0.0
        %1202 = vmatprep.subr.mxu0 0.0
        %1203 = vmatpush1.msra.mxu0 %v1167
        %1204 = vmatprep.subr.mxu0 0.0
        %1205 = vmatpush2.msra.mxu0 0.0
        %1206 = vmatprep.subr.mxu0 0.0
        %1207 = vmatpush2.msra.mxu0 0.0
        %1208 = vmatprep.subr.mxu0 0.0
        %1209 = vmatpush2.msra.mxu0 0.0
        %1210 = vmatprep.subr.mxu0 0.0
        %1211 = vmatpush2.msra.mxu0 0.0
        %1212 = vmatprep.subr.mxu0 0.0
        %1213 = vmatpush2.msra.mxu0 0.0
        %1214 = vmatprep.subr.mxu0 0.0
        %1215 = vmatpush2.msra.mxu0 0.0
        %1216 = vmatprep.subr.mxu0 0.0
        %1217 = vmatpush2.msra.mxu0 0.0
        %1218 = vmatprep.subr.mxu0 0.0
        %1219 = vmatpush2.msra.mxu0 0.0
        %1220 = vmatprep.subr.mxu0 0.0
        %1221 = vmatpush2.msra.mxu0 0.0
        %1222 = vmatprep.subr.mxu0 0.0
        %1223 = vmatpush2.msra.mxu0 0.0
        %1224 = vmatprep.subr.mxu0 0.0
        %1225 = vmatpush2.msra.mxu0 0.0
        %1226 = vmatprep.subr.mxu0 0.0
        %1227 = vmatpush2.msra.mxu0 0.0
        %1228 = vmatprep.subr.mxu0 0.0
        %1229 = vmatpush2.msra.mxu0 0.0
        %1230 = vmatprep.subr.mxu0 0.0
        %1231 = vmatpush2.msra.mxu0 0.0
        %1232 = vmatprep.subr.mxu0 0.0
        %1233 = vmatpush2.msra.mxu0 0.0
        %1234 = vmatprep.subr.mxu0 0.0
        %1235 = vmatpush2.msra.mxu0 0.0
        %1236 = vmatprep.mubr.f32.mxu0 0.0
        %1237 = vmatmul.mubr.f32.gmra.mxu0 %v1170
        %v1238 = vpop.f32.mrf.mxu0
        %v1239 = vadd.f32 0.0, %v1238
        %v1240 = vpop.f32.mrf.mxu0
        %1241 = vdwg.mxu0
        %1242 = vrot.lane.b32.xlu0 %v1065, 112
        %v1243 = vpop.permute.xlu0 %1242
        %1244 = vrot.lane.b32.xlu0 %v1065, 80
        %v1245 = vpop.permute.xlu0 %1244
        %v1246 = vsel %vm1071, %v1243, 0
        %v1248 = vsel %vm1071, %v1245, 0
        %1250 = vmatprep.subr.mxu0 0.0
        %1251 = vmatpush1.xpose.msra.mxu0 0.0
        %1252 = vmatprep.subr.mxu0 0.0
        %1253 = vmatpush1.xpose.msra.mxu0 0.0
        %1254 = vmatprep.subr.mxu0 0.0
        %1255 = vmatpush1.xpose.msra.mxu0 0.0
        %1256 = vmatprep.subr.mxu0 0.0
        %1257 = vmatpush1.xpose.msra.mxu0 0.0
        %1258 = vmatprep.subr.mxu0 0.0
        %1259 = vmatpush1.xpose.msra.mxu0 0.0
        %1260 = vmatprep.subr.mxu0 0.0
        %1261 = vmatpush1.xpose.msra.mxu0 0.0
        %1262 = vmatprep.subr.mxu0 0.0
        %1263 = vmatpush1.xpose.msra.mxu0 0.0
        %1264 = vmatprep.subr.mxu0 0.0
        %1265 = vmatpush1.xpose.msra.mxu0 0.0
        %1266 = vmatprep.subr.mxu0 0.0
        %1267 = vmatpush1.xpose.msra.mxu0 0.0
        %1268 = vmatprep.subr.mxu0 0.0
        %1269 = vmatpush1.xpose.msra.mxu0 0.0
        %1270 = vmatprep.subr.mxu0 0.0
        %1271 = vmatpush1.xpose.msra.mxu0 0.0
        %1272 = vmatprep.subr.mxu0 0.0
        %1273 = vmatpush1.xpose.msra.mxu0 0.0
        %1274 = vmatprep.subr.mxu0 0.0
        %1275 = vmatpush1.xpose.msra.mxu0 0.0
        %1276 = vmatprep.subr.mxu0 0.0
        %1277 = vmatpush1.xpose.msra.mxu0 0.0
        %1278 = vmatprep.subr.mxu0 0.0
        %1279 = vmatpush1.xpose.msra.mxu0 0.0
        %1280 = vmatprep.subr.mxu0 0.0
        %1281 = vmatpush1.xpose.msra.mxu0 %v1248
        %1282 = vmatprep.subr.mxu0 0.0
        %1283 = vmatpush2.xpose.msra.mxu0 0.0
        %1284 = vmatprep.subr.mxu0 0.0
        %1285 = vmatpush2.xpose.msra.mxu0 0.0
        %1286 = vmatprep.subr.mxu0 0.0
        %1287 = vmatpush2.xpose.msra.mxu0 0.0
        %1288 = vmatprep.subr.mxu0 0.0
        %1289 = vmatpush2.xpose.msra.mxu0 0.0
        %1290 = vmatprep.subr.mxu0 0.0
        %1291 = vmatpush2.xpose.msra.mxu0 0.0
        %1292 = vmatprep.subr.mxu0 0.0
        %1293 = vmatpush2.xpose.msra.mxu0 0.0
        %1294 = vmatprep.subr.mxu0 0.0
        %1295 = vmatpush2.xpose.msra.mxu0 0.0
        %1296 = vmatprep.subr.mxu0 0.0
        %1297 = vmatpush2.xpose.msra.mxu0 0.0
        %1298 = vmatprep.subr.mxu0 0.0
        %1299 = vmatpush2.xpose.msra.mxu0 0.0
        %1300 = vmatprep.subr.mxu0 0.0
        %1301 = vmatpush2.xpose.msra.mxu0 0.0
        %1302 = vmatprep.subr.mxu0 0.0
        %1303 = vmatpush2.xpose.msra.mxu0 0.0
        %1304 = vmatprep.subr.mxu0 0.0
        %1305 = vmatpush2.xpose.msra.mxu0 0.0
        %1306 = vmatprep.subr.mxu0 0.0
        %1307 = vmatpush2.xpose.msra.mxu0 0.0
        %1308 = vmatprep.subr.mxu0 0.0
        %1309 = vmatpush2.xpose.msra.mxu0 0.0
        %1310 = vmatprep.subr.mxu0 0.0
        %1311 = vmatpush2.xpose.msra.mxu0 0.0
        %1312 = vmatprep.subr.mxu0 0.0
        %1313 = vmatpush2.xpose.msra.mxu0 0.0
        %1314 = vmatprep.mubr.f32.mxu0 0.0
        %1315 = vmatmul.mubr.f32.gmra.mxu0 %v1246
        %v1316 = vpop.f32.mrf.mxu0
        %v1317 = vadd.f32 0.0, %v1316
        %v1318 = vpop.f32.mrf.mxu0
        %1319 = vdwg.mxu0
        %v1320 = vmul.f32 %v1317, 0.25
        %v1321 = vadd.f32 %v1320, %v1151
        %v1322 = vsel %vm1154, %v1321, -inf
        %1323 = vmax.xlane.f32.xlu0 %v1322
        %v1324 = vpop.xlane.xlu0 %1323
        %v1325 = vsub.f32 %v1321, %v1324
        %v1326 = vmul.f32 %v1325, 1.442695
        %v1327 = vpow.pop %v1326
        %v1328 = vsel %vm1154, %v1327, 0.0
        %1329 = vadd.xlane.f32.xlu0 %v1328
        %v1330 = vpop.xlane.xlu0 %1329
        %v1331 = vrcp.pop %v1330
        %v1332 = vmul.f32 %v1327, %v1331
        %1333 = vrot.lane.b32.xlu0 %v1065, 48
        %v1334 = vpop.permute.xlu0 %1333
        %v1337 = vsel %vm1154, %v1332, 0
        %1339 = vmatprep.subr.mxu0 0.0
        %1340 = vmatpush1.msra.mxu0 0.0
        %1341 = vmatprep.subr.mxu0 0.0
        %1342 = vmatpush1.msra.mxu0 0.0
        %1343 = vmatprep.subr.mxu0 0.0
        %1344 = vmatpush1.msra.mxu0 0.0
        %1345 = vmatprep.subr.mxu0 0.0
        %1346 = vmatpush1.msra.mxu0 0.0
        %1347 = vmatprep.subr.mxu0 0.0
        %1348 = vmatpush1.msra.mxu0 0.0
        %1349 = vmatprep.subr.mxu0 0.0
        %1350 = vmatpush1.msra.mxu0 0.0
        %1351 = vmatprep.subr.mxu0 0.0
        %1352 = vmatpush1.msra.mxu0 0.0
        %1353 = vmatprep.subr.mxu0 0.0
        %1354 = vmatpush1.msra.mxu0 0.0
        %1355 = vmatprep.subr.mxu0 0.0
        %1356 = vmatpush1.msra.mxu0 0.0
        %1357 = vmatprep.subr.mxu0 0.0
        %1358 = vmatpush1.msra.mxu0 0.0
        %1359 = vmatprep.subr.mxu0 0.0
        %1360 = vmatpush1.msra.mxu0 0.0
        %1361 = vmatprep.subr.mxu0 0.0
        %1362 = vmatpush1.msra.mxu0 0.0
        %1363 = vmatprep.subr.mxu0 0.0
        %1364 = vmatpush1.msra.mxu0 0.0
        %1365 = vmatprep.subr.mxu0 0.0
        %1366 = vmatpush1.msra.mxu0 0.0
        %1367 = vmatprep.subr.mxu0 0.0
        %1368 = vmatpush1.msra.mxu0 0.0
        %1369 = vmatprep.subr.mxu0 0.0
        %1370 = vmatpush1.msra.mxu0 %v1334
        %1371 = vmatprep.subr.mxu0 0.0
        %1372 = vmatpush2.msra.mxu0 0.0
        %1373 = vmatprep.subr.mxu0 0.0
        %1374 = vmatpush2.msra.mxu0 0.0
        %1375 = vmatprep.subr.mxu0 0.0
        %1376 = vmatpush2.msra.mxu0 0.0
        %1377 = vmatprep.subr.mxu0 0.0
        %1378 = vmatpush2.msra.mxu0 0.0
        %1379 = vmatprep.subr.mxu0 0.0
        %1380 = vmatpush2.msra.mxu0 0.0
        %1381 = vmatprep.subr.mxu0 0.0
        %1382 = vmatpush2.msra.mxu0 0.0
        %1383 = vmatprep.subr.mxu0 0.0
        %1384 = vmatpush2.msra.mxu0 0.0
        %1385 = vmatprep.subr.mxu0 0.0
        %1386 = vmatpush2.msra.mxu0 0.0
        %1387 = vmatprep.subr.mxu0 0.0
        %1388 = vmatpush2.msra.mxu0 0.0
        %1389 = vmatprep.subr.mxu0 0.0
        %1390 = vmatpush2.msra.mxu0 0.0
        %1391 = vmatprep.subr.mxu0 0.0
        %1392 = vmatpush2.msra.mxu0 0.0
        %1393 = vmatprep.subr.mxu0 0.0
        %1394 = vmatpush2.msra.mxu0 0.0
        %1395 = vmatprep.subr.mxu0 0.0
        %1396 = vmatpush2.msra.mxu0 0.0
        %1397 = vmatprep.subr.mxu0 0.0
        %1398 = vmatpush2.msra.mxu0 0.0
        %1399 = vmatprep.subr.mxu0 0.0
        %1400 = vmatpush2.msra.mxu0 0.0
        %1401 = vmatprep.subr.mxu0 0.0
        %1402 = vmatpush2.msra.mxu0 0.0
        %1403 = vmatprep.mubr.f32.mxu0 0.0
        %1404 = vmatmul.mubr.f32.gmra.mxu0 %v1337
        %v1405 = vpop.f32.mrf.mxu0
        %v1406 = vadd.f32 0.0, %v1405
        %v1407 = vpop.f32.mrf.mxu0
        %1408 = vdwg.mxu0
        %1410 = vrot.lane.b32.xlu0 %v1406, 16
        %v1411 = vpop.permute.xlu0 %1410
        %v1413 = vsel %vm1071, %v1239, %v1411
        %v1414 = vld [vmem:[%s17] sm:$0xff]
        %v1415 = vld [vmem:[%s17 + $0x8] sm:$0xff]
        %v1416 = vld [vmem:[%s17 + $0x10] sm:$0xff]
        %v1417 = vld [vmem:[%s17 + $0x18] sm:$0xff]
        %v1418 = vld [vmem:[%s19] sm:$0x1]
        %v1420 = vlaneseq
        %v1421 = vshrl.u32 %v1420, 7
        %v1422 = vsub.s32 0, %v1421
        %v1423 = vrot.slane %v1418, %v1422
        %v1426 = vsel %vm952, %v1413, 0
        %1428 = vmatprep.subr.mxu0 0.0
        %1429 = vmatpush1.msra.mxu0 0.0
        %1430 = vmatprep.subr.mxu0 0.0
        %1431 = vmatpush1.msra.mxu0 0.0
        %1432 = vmatprep.subr.mxu0 0.0
        %1433 = vmatpush1.msra.mxu0 0.0
        %1434 = vmatprep.subr.mxu0 0.0
        %1435 = vmatpush1.msra.mxu0 0.0
        %1436 = vmatprep.subr.mxu0 0.0
        %1437 = vmatpush1.msra.mxu0 0.0
        %1438 = vmatprep.subr.mxu0 0.0
        %1439 = vmatpush1.msra.mxu0 0.0
        %1440 = vmatprep.subr.mxu0 0.0
        %1441 = vmatpush1.msra.mxu0 0.0
        %1442 = vmatprep.subr.mxu0 0.0
        %1443 = vmatpush1.msra.mxu0 0.0
        %1444 = vmatprep.subr.mxu0 0.0
        %1445 = vmatpush1.msra.mxu0 0.0
        %1446 = vmatprep.subr.mxu0 0.0
        %1447 = vmatpush1.msra.mxu0 0.0
        %1448 = vmatprep.subr.mxu0 0.0
        %1449 = vmatpush1.msra.mxu0 0.0
        %1450 = vmatprep.subr.mxu0 0.0
        %1451 = vmatpush1.msra.mxu0 0.0
        %1452 = vmatprep.subr.mxu0 0.0
        %1453 = vmatpush1.msra.mxu0 %v1417
        %1454 = vmatprep.subr.mxu0 0.0
        %1455 = vmatpush1.msra.mxu0 %v1416
        %1456 = vmatprep.subr.mxu0 0.0
        %1457 = vmatpush1.msra.mxu0 %v1415
        %1458 = vmatprep.subr.mxu0 0.0
        %1459 = vmatpush1.msra.mxu0 %v1414
        %1460 = vmatprep.subr.mxu0 0.0
        %1461 = vmatpush2.msra.mxu0 0.0
        %1462 = vmatprep.subr.mxu0 0.0
        %1463 = vmatpush2.msra.mxu0 0.0
        %1464 = vmatprep.subr.mxu0 0.0
        %1465 = vmatpush2.msra.mxu0 0.0
        %1466 = vmatprep.subr.mxu0 0.0
        %1467 = vmatpush2.msra.mxu0 0.0
        %1468 = vmatprep.subr.mxu0 0.0
        %1469 = vmatpush2.msra.mxu0 0.0
        %1470 = vmatprep.subr.mxu0 0.0
        %1471 = vmatpush2.msra.mxu0 0.0
        %1472 = vmatprep.subr.mxu0 0.0
        %1473 = vmatpush2.msra.mxu0 0.0
        %1474 = vmatprep.subr.mxu0 0.0
        %1475 = vmatpush2.msra.mxu0 0.0
        %1476 = vmatprep.subr.mxu0 0.0
        %1477 = vmatpush2.msra.mxu0 0.0
        %1478 = vmatprep.subr.mxu0 0.0
        %1479 = vmatpush2.msra.mxu0 0.0
        %1480 = vmatprep.subr.mxu0 0.0
        %1481 = vmatpush2.msra.mxu0 0.0
        %1482 = vmatprep.subr.mxu0 0.0
        %1483 = vmatpush2.msra.mxu0 0.0
        %1484 = vmatprep.subr.mxu0 0.0
        %1485 = vmatpush2.msra.mxu0 0.0
        %1486 = vmatprep.subr.mxu0 0.0
        %1487 = vmatpush2.msra.mxu0 0.0
        %1488 = vmatprep.subr.mxu0 0.0
        %1489 = vmatpush2.msra.mxu0 0.0
        %1490 = vmatprep.subr.mxu0 0.0
        %1491 = vmatpush2.msra.mxu0 0.0
        %1492 = vmatprep.mubr.f32.mxu0 0.0
        %1493 = vmatmul.mubr.f32.gmra.mxu0 %v1426
        %v1494 = vpop.f32.mrf.mxu0
        %v1495 = vadd.f32 %v1423, %v1494
        %v1496 = vpop.f32.mrf.mxu0
        %1497 = vdwg.mxu0
        %v1498 = vadd.f32 %v1495, %v980
        %v1499 = vld [vmem:[%s21] sm:$0x1]
        %v1500 = vld [vmem:[%s23] sm:$0x1]
        %v1501 = vsel %vm952, %v1498, 0.0
        %1502 = vadd.xlane.f32.xlu0 %v1501
        %v1503 = vpop.xlane.xlu0 %1502
        %v1504 = vmul.f32 %v1503, %v956
        %v1505 = vsub.f32 %v1498, %v1504
        %v1506 = vmul.f32 %v1505, %v1505
        %v1507 = vsel %vm952, %v1506, 0.0
        %1508 = vadd.xlane.f32.xlu0 %v1507
        %v1509 = vpop.xlane.xlu0 %1508
        %v1510 = vmul.f32 %v1509, %v956
        %v1511 = vadd.f32 %v1510, 1e-12
        %v1512 = vrsqrt.pop %v1511
        %v1513 = vmul.f32 %v1505, %v1512
        %v1515 = vlaneseq
        %v1516 = vshrl.u32 %v1515, 7
        %v1517 = vsub.s32 0, %v1516
        %v1518 = vrot.slane %v1499, %v1517
        %v1520 = vmul.f32 %v1513, %v1518
        %v1522 = vlaneseq
        %v1523 = vshrl.u32 %v1522, 7
        %v1524 = vsub.s32 0, %v1523
        %v1525 = vrot.slane %v1500, %v1524
        %v1527 = vadd.f32 %v1520, %v1525
        %v1528 = vld [vmem:[%s25] sm:$0xff]
        %v1529 = vld [vmem:[%s25 + $0x8] sm:$0xff]
        %v1530 = vld [vmem:[%s25 + $0x10] sm:$0xff]
        %v1531 = vld [vmem:[%s25 + $0x18] sm:$0xff]
        %v1532 = vld [vmem:[%s27] sm:$0x1]
        %v1534 = vlaneseq
        %v1535 = vshrl.u32 %v1534, 7
        %v1536 = vsub.s32 0, %v1535
        %v1537 = vrot.slane %v1532, %v1536
        %v1540 = vsel %vm952, %v1527, 0
        %1542 = vmatprep.subr.mxu0 0.0
        %1543 = vmatpush1.msra.mxu0 0.0
        %1544 = vmatprep.subr.mxu0 0.0
        %1545 = vmatpush1.msra.mxu0 0.0
        %1546 = vmatprep.subr.mxu0 0.0
        %1547 = vmatpush1.msra.mxu0 0.0
        %1548 = vmatprep.subr.mxu0 0.0
        %1549 = vmatpush1.msra.mxu0 0.0
        %1550 = vmatprep.subr.mxu0 0.0
        %1551 = vmatpush1.msra.mxu0 0.0
        %1552 = vmatprep.subr.mxu0 0.0
        %1553 = vmatpush1.msra.mxu0 0.0
        %1554 = vmatprep.subr.mxu0 0.0
        %1555 = vmatpush1.msra.mxu0 0.0
        %1556 = vmatprep.subr.mxu0 0.0
        %1557 = vmatpush1.msra.mxu0 0.0
        %1558 = vmatprep.subr.mxu0 0.0
        %1559 = vmatpush1.msra.mxu0 0.0
        %1560 = vmatprep.subr.mxu0 0.0
        %1561 = vmatpush1.msra.mxu0 0.0
        %1562 = vmatprep.subr.mxu0 0.0
        %1563 = vmatpush1.msra.mxu0 0.0
        %1564 = vmatprep.subr.mxu0 0.0
        %1565 = vmatpush1.msra.mxu0 0.0
        %1566 = vmatprep.subr.mxu0 0.0
        %1567 = vmatpush1.msra.mxu0 %v1531
        %1568 = vmatprep.subr.mxu0 0.0
        %1569 = vmatpush1.msra.mxu0 %v1530
        %1570 = vmatprep.subr.mxu0 0.0
        %1571 = vmatpush1.msra.mxu0 %v1529
        %1572 = vmatprep.subr.mxu0 0.0
        %1573 = vmatpush1.msra.mxu0 %v1528
        %1574 = vmatprep.subr.mxu0 0.0
        %1575 = vmatpush2.msra.mxu0 0.0
        %1576 = vmatprep.subr.mxu0 0.0
        %1577 = vmatpush2.msra.mxu0 0.0
        %1578 = vmatprep.subr.mxu0 0.0
        %1579 = vmatpush2.msra.mxu0 0.0
        %1580 = vmatprep.subr.mxu0 0.0
        %1581 = vmatpush2.msra.mxu0 0.0
        %1582 = vmatprep.subr.mxu0 0.0
        %1583 = vmatpush2.msra.mxu0 0.0
        %1584 = vmatprep.subr.mxu0 0.0
        %1585 = vmatpush2.msra.mxu0 0.0
        %1586 = vmatprep.subr.mxu0 0.0
        %1587 = vmatpush2.msra.mxu0 0.0
        %1588 = vmatprep.subr.mxu0 0.0
        %1589 = vmatpush2.msra.mxu0 0.0
        %1590 = vmatprep.subr.mxu0 0.0
        %1591 = vmatpush2.msra.mxu0 0.0
        %1592 = vmatprep.subr.mxu0 0.0
        %1593 = vmatpush2.msra.mxu0 0.0
        %1594 = vmatprep.subr.mxu0 0.0
        %1595 = vmatpush2.msra.mxu0 0.0
        %1596 = vmatprep.subr.mxu0 0.0
        %1597 = vmatpush2.msra.mxu0 0.0
        %1598 = vmatprep.subr.mxu0 0.0
        %1599 = vmatpush2.msra.mxu0 0.0
        %1600 = vmatprep.subr.mxu0 0.0
        %1601 = vmatpush2.msra.mxu0 0.0
        %1602 = vmatprep.subr.mxu0 0.0
        %1603 = vmatpush2.msra.mxu0 0.0
        %1604 = vmatprep.subr.mxu0 0.0
        %1605 = vmatpush2.msra.mxu0 0.0
        %1606 = vmatprep.mubr.f32.mxu0 0.0
        %1607 = vmatmul.mubr.f32.gmra.mxu0 %v1540
        %v1608 = vpop.f32.mrf.mxu0
        %v1609 = vadd.f32 %v1537, %v1608
        %v1610 = vpop.f32.mrf.mxu0
        %1611 = vdwg.mxu0
        %v1612 = vmul.f32 %v1609, %v1609
        %v1613 = vmul.f32 %v1609, %v1612
        %v1614 = vmul.f32 %v1613, 0.044715
        %v1615 = vadd.f32 %v1609, %v1614
        %v1616 = vmul.f32 %v1615, 0.7978846
        %v1617 = vtanh.pop %v1616
        %v1618 = vadd.f32 %v1617, 1.0
        %v1619 = vmul.f32 %v1618, 0.5
        %v1620 = vmul.f32 %v1609, %v1619
        %v1621 = vld [vmem:[%s29] sm:$0xff]
        %v1622 = vld [vmem:[%s29 + $0x8] sm:$0xff]
        %v1623 = vld [vmem:[%s29 + $0x10] sm:$0xff]
        %v1624 = vld [vmem:[%s29 + $0x18] sm:$0xff]
        %v1625 = vld [vmem:[%s29 + $0x20] sm:$0xff]
        %v1626 = vld [vmem:[%s29 + $0x28] sm:$0xff]
        %v1627 = vld [vmem:[%s29 + $0x30] sm:$0xff]
        %v1628 = vld [vmem:[%s29 + $0x38] sm:$0xff]
        %v1629 = vld [vmem:[%s31] sm:$0x1]
        %v1631 = vlaneseq
        %v1632 = vshrl.u32 %v1631, 7
        %v1633 = vsub.s32 0, %v1632
        %v1634 = vrot.slane %v1629, %v1633
        %vm1636 = vcmask 523264
        %v1638 = vsel %vm1636, %v1620, 0
        %1640 = vmatprep.subr.mxu0 0.0
        %1641 = vmatpush1.msra.mxu0 0.0
        %1642 = vmatprep.subr.mxu0 0.0
        %1643 = vmatpush1.msra.mxu0 0.0
        %1644 = vmatprep.subr.mxu0 0.0
        %1645 = vmatpush1.msra.mxu0 0.0
        %1646 = vmatprep.subr.mxu0 0.0
        %1647 = vmatpush1.msra.mxu0 0.0
        %1648 = vmatprep.subr.mxu0 0.0
        %1649 = vmatpush1.msra.mxu0 0.0
        %1650 = vmatprep.subr.mxu0 0.0
        %1651 = vmatpush1.msra.mxu0 0.0
        %1652 = vmatprep.subr.mxu0 0.0
        %1653 = vmatpush1.msra.mxu0 0.0
        %1654 = vmatprep.subr.mxu0 0.0
        %1655 = vmatpush1.msra.mxu0 0.0
        %1656 = vmatprep.subr.mxu0 0.0
        %1657 = vmatpush1.msra.mxu0 %v1628
        %1658 = vmatprep.subr.mxu0 0.0
        %1659 = vmatpush1.msra.mxu0 %v1627
        %1660 = vmatprep.subr.mxu0 0.0
        %1661 = vmatpush1.msra.mxu0 %v1626
        %1662 = vmatprep.subr.mxu0 0.0
        %1663 = vmatpush1.msra.mxu0 %v1625
        %1664 = vmatprep.subr.mxu0 0.0
        %1665 = vmatpush1.msra.mxu0 %v1624
        %1666 = vmatprep.subr.mxu0 0.0
        %1667 = vmatpush1.msra.mxu0 %v1623
        %1668 = vmatprep.subr.mxu0 0.0
        %1669 = vmatpush1.msra.mxu0 %v1622
        %1670 = vmatprep.subr.mxu0 0.0
        %1671 = vmatpush1.msra.mxu0 %v1621
        %1672 = vmatprep.subr.mxu0 0.0
        %1673 = vmatpush2.msra.mxu0 0.0
        %1674 = vmatprep.subr.mxu0 0.0
        %1675 = vmatpush2.msra.mxu0 0.0
        %1676 = vmatprep.subr.mxu0 0.0
        %1677 = vmatpush2.msra.mxu0 0.0
        %1678 = vmatprep.subr.mxu0 0.0
        %1679 = vmatpush2.msra.mxu0 0.0
        %1680 = vmatprep.subr.mxu0 0.0
        %1681 = vmatpush2.msra.mxu0 0.0
        %1682 = vmatprep.subr.mxu0 0.0
        %1683 = vmatpush2.msra.mxu0 0.0
        %1684 = vmatprep.subr.mxu0 0.0
        %1685 = vmatpush2.msra.mxu0 0.0
        %1686 = vmatprep.subr.mxu0 0.0
        %1687 = vmatpush2.msra.mxu0 0.0
        %1688 = vmatprep.subr.mxu0 0.0
        %1689 = vmatpush2.msra.mxu0 0.0
        %1690 = vmatprep.subr.mxu0 0.0
        %1691 = vmatpush2.msra.mxu0 0.0
        %1692 = vmatprep.subr.mxu0 0.0
        %1693 = vmatpush2.msra.mxu0 0.0
        %1694 = vmatprep.subr.mxu0 0.0
        %1695 = vmatpush2.msra.mxu0 0.0
        %1696 = vmatprep.subr.mxu0 0.0
        %1697 = vmatpush2.msra.mxu0 0.0
        %1698 = vmatprep.subr.mxu0 0.0
        %1699 = vmatpush2.msra.mxu0 0.0
        %1700 = vmatprep.subr.mxu0 0.0
        %1701 = vmatpush2.msra.mxu0 0.0
        %1702 = vmatprep.subr.mxu0 0.0
        %1703 = vmatpush2.msra.mxu0 0.0
        %1704 = vmatprep.mubr.f32.mxu0 0.0
        %1705 = vmatmul.mubr.f32.gmra.mxu0 %v1638
        %v1706 = vpop.f32.mrf.mxu0
        %v1707 = vadd.f32 %v1634, %v1706
        %v1708 = vpop.f32.mrf.mxu0
        %1709 = vdwg.mxu0
        %v1710 = vadd.f32 %v1707, %v1527
        %v1711 = vld [vmem:[%s33] sm:$0x1]
        %v1712 = vld [vmem:[%s35] sm:$0x1]
        %v1713 = vsel %vm952, %v1710, 0.0
        %1714 = vadd.xlane.f32.xlu0 %v1713
        %v1715 = vpop.xlane.xlu0 %1714
        %v1716 = vmul.f32 %v1715, %v956
        %v1717 = vsub.f32 %v1710, %v1716
        %v1718 = vmul.f32 %v1717, %v1717
        %v1719 = vsel %vm952, %v1718, 0.0
        %1720 = vadd.xlane.f32.xlu0 %v1719
        %v1721 = vpop.xlane.xlu0 %1720
        %v1722 = vmul.f32 %v1721, %v956
        %v1723 = vadd.f32 %v1722, 1e-12
        %v1724 = vrsqrt.pop %v1723
        %v1725 = vmul.f32 %v1717, %v1724
        %v1727 = vlaneseq
        %v1728 = vshrl.u32 %v1727, 7
        %v1729 = vsub.s32 0, %v1728
        %v1730 = vrot.slane %v1711, %v1729
        %v1732 = vmul.f32 %v1725, %v1730
        %v1734 = vlaneseq
        %v1735 = vshrl.u32 %v1734, 7
        %v1736 = vsub.s32 0, %v1735
        %v1737 = vrot.slane %v1712, %v1736
        %v1739 = vadd.f32 %v1732, %v1737
        %v1740 = vld [vmem:[%s37] sm:$0xff]
        %v1741 = vld [vmem:[%s37 + $0x8] sm:$0xff]
        %v1742 = vld [vmem:[%s37 + $0x10] sm:$0xff]
        %v1743 = vld [vmem:[%s37 + $0x18] sm:$0xff]
        %v1744 = vld [vmem:[%s39] sm:$0x1]
        %v1746 = vlaneseq
        %v1747 = vshrl.u32 %v1746, 7
        %v1748 = vsub.s32 0, %v1747
        %v1749 = vrot.slane %v1744, %v1748
        %v1752 = vsel %vm952, %v1739, 0
        %1754 = vmatprep.subr.mxu0 0.0
        %1755 = vmatpush1.msra.mxu0 0.0
        %1756 = vmatprep.subr.mxu0 0.0
        %1757 = vmatpush1.msra.mxu0 0.0
        %1758 = vmatprep.subr.mxu0 0.0
        %1759 = vmatpush1.msra.mxu0 0.0
        %1760 = vmatprep.subr.mxu0 0.0
        %1761 = vmatpush1.msra.mxu0 0.0
        %1762 = vmatprep.subr.mxu0 0.0
        %1763 = vmatpush1.msra.mxu0 0.0
        %1764 = vmatprep.subr.mxu0 0.0
        %1765 = vmatpush1.msra.mxu0 0.0
        %1766 = vmatprep.subr.mxu0 0.0
        %1767 = vmatpush1.msra.mxu0 0.0
        %1768 = vmatprep.subr.mxu0 0.0
        %1769 = vmatpush1.msra.mxu0 0.0
        %1770 = vmatprep.subr.mxu0 0.0
        %1771 = vmatpush1.msra.mxu0 0.0
        %1772 = vmatprep.subr.mxu0 0.0
        %1773 = vmatpush1.msra.mxu0 0.0
        %1774 = vmatprep.subr.mxu0 0.0
        %1775 = vmatpush1.msra.mxu0 0.0
        %1776 = vmatprep.subr.mxu0 0.0
        %1777 = vmatpush1.msra.mxu0 0.0
        %1778 = vmatprep.subr.mxu0 0.0
        %1779 = vmatpush1.msra.mxu0 %v1743
        %1780 = vmatprep.subr.mxu0 0.0
        %1781 = vmatpush1.msra.mxu0 %v1742
        %1782 = vmatprep.subr.mxu0 0.0
        %1783 = vmatpush1.msra.mxu0 %v1741
        %1784 = vmatprep.subr.mxu0 0.0
        %1785 = vmatpush1.msra.mxu0 %v1740
        %1786 = vmatprep.subr.mxu0 0.0
        %1787 = vmatpush2.msra.mxu0 0.0
        %1788 = vmatprep.subr.mxu0 0.0
        %1789 = vmatpush2.msra.mxu0 0.0
        %1790 = vmatprep.subr.mxu0 0.0
        %1791 = vmatpush2.msra.mxu0 0.0
        %1792 = vmatprep.subr.mxu0 0.0
        %1793 = vmatpush2.msra.mxu0 0.0
        %1794 = vmatprep.subr.mxu0 0.0
        %1795 = vmatpush2.msra.mxu0 0.0
        %1796 = vmatprep.subr.mxu0 0.0
        %1797 = vmatpush2.msra.mxu0 0.0
        %1798 = vmatprep.subr.mxu0 0.0
        %1799 = vmatpush2.msra.mxu0 0.0
        %1800 = vmatprep.subr.mxu0 0.0
        %1801 = vmatpush2.msra.mxu0 0.0
        %1802 = vmatprep.subr.mxu0 0.0
        %1803 = vmatpush2.msra.mxu0 0.0
        %1804 = vmatprep.subr.mxu0 0.0
        %1805 = vmatpush2.msra.mxu0 0.0
        %1806 = vmatprep.subr.mxu0 0.0
        %1807 = vmatpush2.msra.mxu0 0.0
        %1808 = vmatprep.subr.mxu0 0.0
        %1809 = vmatpush2.msra.mxu0 0.0
        %1810 = vmatprep.subr.mxu0 0.0
        %1811 = vmatpush2.msra.mxu0 0.0
        %1812 = vmatprep.subr.mxu0 0.0
        %1813 = vmatpush2.msra.mxu0 0.0
        %1814 = vmatprep.subr.mxu0 0.0
        %1815 = vmatpush2.msra.mxu0 0.0
        %1816 = vmatprep.subr.mxu0 0.0
        %1817 = vmatpush2.msra.mxu0 0.0
        %1818 = vmatprep.mubr.f32.mxu0 0.0
        %1819 = vmatmul.mubr.f32.gmra.mxu0 %v1752
        %v1820 = vpop.f32.mrf.mxu0
        %v1821 = vadd.f32 %v1749, %v1820
        %v1822 = vpop.f32.mrf.mxu0
        %1823 = vdwg.mxu0
        %1825 = vrot.lane.b32.xlu0 %v1821, 96
        %v1826 = vpop.permute.xlu0 %1825
        %v1827 = vsel %vm1071, %v1821, 0
        %v1829 = vsel %vm1071, %v1826, 0
        %1831 = vmatprep.subr.mxu0 0.0
        %1832 = vmatpush1.xpose.msra.mxu0 0.0
        %1833 = vmatprep.subr.mxu0 0.0
        %1834 = vmatpush1.xpose.msra.mxu0 0.0
        %1835 = vmatprep.subr.mxu0 0.0
        %1836 = vmatpush1.xpose.msra.mxu0 0.0
        %1837 = vmatprep.subr.mxu0 0.0
        %1838 = vmatpush1.xpose.msra.mxu0 0.0
        %1839 = vmatprep.subr.mxu0 0.0
        %1840 = vmatpush1.xpose.msra.mxu0 0.0
        %1841 = vmatprep.subr.mxu0 0.0
        %1842 = vmatpush1.xpose.msra.mxu0 0.0
        %1843 = vmatprep.subr.mxu0 0.0
        %1844 = vmatpush1.xpose.msra.mxu0 0.0
        %1845 = vmatprep.subr.mxu0 0.0
        %1846 = vmatpush1.xpose.msra.mxu0 0.0
        %1847 = vmatprep.subr.mxu0 0.0
        %1848 = vmatpush1.xpose.msra.mxu0 0.0
        %1849 = vmatprep.subr.mxu0 0.0
        %1850 = vmatpush1.xpose.msra.mxu0 0.0
        %1851 = vmatprep.subr.mxu0 0.0
        %1852 = vmatpush1.xpose.msra.mxu0 0.0
        %1853 = vmatprep.subr.mxu0 0.0
        %1854 = vmatpush1.xpose.msra.mxu0 0.0
        %1855 = vmatprep.subr.mxu0 0.0
        %1856 = vmatpush1.xpose.msra.mxu0 0.0
        %1857 = vmatprep.subr.mxu0 0.0
        %1858 = vmatpush1.xpose.msra.mxu0 0.0
        %1859 = vmatprep.subr.mxu0 0.0
        %1860 = vmatpush1.xpose.msra.mxu0 0.0
        %1861 = vmatprep.subr.mxu0 0.0
        %1862 = vmatpush1.xpose.msra.mxu0 %v1829
        %1863 = vmatprep.subr.mxu0 0.0
        %1864 = vmatpush2.xpose.msra.mxu0 0.0
        %1865 = vmatprep.subr.mxu0 0.0
        %1866 = vmatpush2.xpose.msra.mxu0 0.0
        %1867 = vmatprep.subr.mxu0 0.0
        %1868 = vmatpush2.xpose.msra.mxu0 0.0
        %1869 = vmatprep.subr.mxu0 0.0
        %1870 = vmatpush2.xpose.msra.mxu0 0.0
        %1871 = vmatprep.subr.mxu0 0.0
        %1872 = vmatpush2.xpose.msra.mxu0 0.0
        %1873 = vmatprep.subr.mxu0 0.0
        %1874 = vmatpush2.xpose.msra.mxu0 0.0
        %1875 = vmatprep.subr.mxu0 0.0
        %1876 = vmatpush2.xpose.msra.mxu0 0.0
        %1877 = vmatprep.subr.mxu0 0.0
        %1878 = vmatpush2.xpose.msra.mxu0 0.0
        %1879 = vmatprep.subr.mxu0 0.0
        %1880 = vmatpush2.xpose.msra.mxu0 0.0
        %1881 = vmatprep.subr.mxu0 0.0
        %1882 = vmatpush2.xpose.msra.mxu0 0.0
        %1883 = vmatprep.subr.mxu0 0.0
        %1884 = vmatpush2.xpose.msra.mxu0 0.0
        %1885 = vmatprep.subr.mxu0 0.0
        %1886 = vmatpush2.xpose.msra.mxu0 0.0
        %1887 = vmatprep.subr.mxu0 0.0
        %1888 = vmatpush2.xpose.msra.mxu0 0.0
        %1889 = vmatprep.subr.mxu0 0.0
        %1890 = vmatpush2.xpose.msra.mxu0 0.0
        %1891 = vmatprep.subr.mxu0 0.0
        %1892 = vmatpush2.xpose.msra.mxu0 0.0
        %1893 = vmatprep.subr.mxu0 0.0
        %1894 = vmatpush2.xpose.msra.mxu0 0.0
        %1895 = vmatprep.mubr.f32.mxu0 0.0
        %1896 = vmatmul.mubr.f32.gmra.mxu0 %v1827
        %v1897 = vpop.f32.mrf.mxu0
        %v1898 = vadd.f32 0.0, %v1897
        %v1899 = vpop.f32.mrf.mxu0
        %1900 = vdwg.mxu0
        %v1901 = vmul.f32 %v1898, 0.25
        %v1902 = vadd.f32 %v1901, %v1151
        %v1903 = vsel %vm1154, %v1902, -inf
        %1904 = vmax.xlane.f32.xlu0 %v1903
        %v1905 = vpop.xlane.xlu0 %1904
        %v1906 = vsub.f32 %v1902, %v1905
        %v1907 = vmul.f32 %v1906, 1.442695
        %v1908 = vpow.pop %v1907
        %v1909 = vsel %vm1154, %v1908, 0.0
        %1910 = vadd.xlane.f32.xlu0 %v1909
        %v1911 = vpop.xlane.xlu0 %1910
        %v1912 = vrcp.pop %v1911
        %v1913 = vmul.f32 %v1908, %v1912
        %1914 = vrot.lane.b32.xlu0 %v1821, 64
        %v1915 = vpop.permute.xlu0 %1914
        %v1918 = vsel %vm1154, %v1913, 0
        %1920 = vmatprep.subr.mxu0 0.0
        %1921 = vmatpush1.msra.mxu0 0.0
        %1922 = vmatprep.subr.mxu0 0.0
        %1923 = vmatpush1.msra.mxu0 0.0
        %1924 = vmatprep.subr.mxu0 0.0
        %1925 = vmatpush1.msra.mxu0 0.0
        %1926 = vmatprep.subr.mxu0 0.0
        %1927 = vmatpush1.msra.mxu0 0.0
        %1928 = vmatprep.subr.mxu0 0.0
        %1929 = vmatpush1.msra.mxu0 0.0
        %1930 = vmatprep.subr.mxu0 0.0
        %1931 = vmatpush1.msra.mxu0 0.0
        %1932 = vmatprep.subr.mxu0 0.0
        %1933 = vmatpush1.msra.mxu0 0.0
        %1934 = vmatprep.subr.mxu0 0.0
        %1935 = vmatpush1.msra.mxu0 0.0
        %1936 = vmatprep.subr.mxu0 0.0
        %1937 = vmatpush1.msra.mxu0 0.0
        %1938 = vmatprep.subr.mxu0 0.0
        %1939 = vmatpush1.msra.mxu0 0.0
        %1940 = vmatprep.subr.mxu0 0.0
        %1941 = vmatpush1.msra.mxu0 0.0
        %1942 = vmatprep.subr.mxu0 0.0
        %1943 = vmatpush1.msra.mxu0 0.0
        %1944 = vmatprep.subr.mxu0 0.0
        %1945 = vmatpush1.msra.mxu0 0.0
        %1946 = vmatprep.subr.mxu0 0.0
        %1947 = vmatpush1.msra.mxu0 0.0
        %1948 = vmatprep.subr.mxu0 0.0
        %1949 = vmatpush1.msra.mxu0 0.0
        %1950 = vmatprep.subr.mxu0 0.0
        %1951 = vmatpush1.msra.mxu0 %v1915
        %1952 = vmatprep.subr.mxu0 0.0
        %1953 = vmatpush2.msra.mxu0 0.0
        %1954 = vmatprep.subr.mxu0 0.0
        %1955 = vmatpush2.msra.mxu0 0.0
        %1956 = vmatprep.subr.mxu0 0.0
        %1957 = vmatpush2.msra.mxu0 0.0
        %1958 = vmatprep.subr.mxu0 0.0
        %1959 = vmatpush2.msra.mxu0 0.0
        %1960 = vmatprep.subr.mxu0 0.0
        %1961 = vmatpush2.msra.mxu0 0.0
        %1962 = vmatprep.subr.mxu0 0.0
        %1963 = vmatpush2.msra.mxu0 0.0
        %1964 = vmatprep.subr.mxu0 0.0
        %1965 = vmatpush2.msra.mxu0 0.0
        %1966 = vmatprep.subr.mxu0 0.0
        %1967 = vmatpush2.msra.mxu0 0.0
        %1968 = vmatprep.subr.mxu0 0.0
        %1969 = vmatpush2.msra.mxu0 0.0
        %1970 = vmatprep.subr.mxu0 0.0
        %1971 = vmatpush2.msra.mxu0 0.0
        %1972 = vmatprep.subr.mxu0 0.0
        %1973 = vmatpush2.msra.mxu0 0.0
        %1974 = vmatprep.subr.mxu0 0.0
        %1975 = vmatpush2.msra.mxu0 0.0
        %1976 = vmatprep.subr.mxu0 0.0
        %1977 = vmatpush2.msra.mxu0 0.0
        %1978 = vmatprep.subr.mxu0 0.0
        %1979 = vmatpush2.msra.mxu0 0.0
        %1980 = vmatprep.subr.mxu0 0.0
        %1981 = vmatpush2.msra.mxu0 0.0
        %1982 = vmatprep.subr.mxu0 0.0
        %1983 = vmatpush2.msra.mxu0 0.0
        %1984 = vmatprep.mubr.f32.mxu0 0.0
        %1985 = vmatmul.mubr.f32.gmra.mxu0 %v1918
        %v1986 = vpop.f32.mrf.mxu0
        %v1987 = vadd.f32 0.0, %v1986
        %v1988 = vpop.f32.mrf.mxu0
        %1989 = vdwg.mxu0
        %1990 = vrot.lane.b32.xlu0 %v1821, 112
        %v1991 = vpop.permute.xlu0 %1990
        %1992 = vrot.lane.b32.xlu0 %v1821, 80
        %v1993 = vpop.permute.xlu0 %1992
        %v1994 = vsel %vm1071, %v1991, 0
        %v1996 = vsel %vm1071, %v1993, 0
        %1998 = vmatprep.subr.mxu0 0.0
        %1999 = vmatpush1.xpose.msra.mxu0 0.0
        %2000 = vmatprep.subr.mxu0 0.0
        %2001 = vmatpush1.xpose.msra.mxu0 0.0
        %2002 = vmatprep.subr.mxu0 0.0
        %2003 = vmatpush1.xpose.msra.mxu0 0.0
        %2004 = vmatprep.subr.mxu0 0.0
        %2005 = vmatpush1.xpose.msra.mxu0 0.0
        %2006 = vmatprep.subr.mxu0 0.0
        %2007 = vmatpush1.xpose.msra.mxu0 0.0
        %2008 = vmatprep.subr.mxu0 0.0
        %2009 = vmatpush1.xpose.msra.mxu0 0.0
        %2010 = vmatprep.subr.mxu0 0.0
        %2011 = vmatpush1.xpose.msra.mxu0 0.0
        %2012 = vmatprep.subr.mxu0 0.0
        %2013 = vmatpush1.xpose.msra.mxu0 0.0
        %2014 = vmatprep.subr.mxu0 0.0
        %2015 = vmatpush1.xpose.msra.mxu0 0.0
        %2016 = vmatprep.subr.mxu0 0.0
        %2017 = vmatpush1.xpose.msra.mxu0 0.0
        %2018 = vmatprep.subr.mxu0 0.0
        %2019 = vmatpush1.xpose.msra.mxu0 0.0
        %2020 = vmatprep.subr.mxu0 0.0
        %2021 = vmatpush1.xpose.msra.mxu0 0.0
        %2022 = vmatprep.subr.mxu0 0.0
        %2023 = vmatpush1.xpose.msra.mxu0 0.0
        %2024 = vmatprep.subr.mxu0 0.0
        %2025 = vmatpush1.xpose.msra.mxu0 0.0
        %2026 = vmatprep.subr.mxu0 0.0
        %2027 = vmatpush1.xpose.msra.mxu0 0.0
        %2028 = vmatprep.subr.mxu0 0.0
        %2029 = vmatpush1.xpose.msra.mxu0 %v1996
        %2030 = vmatprep.subr.mxu0 0.0
        %2031 = vmatpush2.xpose.msra.mxu0 0.0
        %2032 = vmatprep.subr.mxu0 0.0
        %2033 = vmatpush2.xpose.msra.mxu0 0.0
        %2034 = vmatprep.subr.mxu0 0.0
        %2035 = vmatpush2.xpose.msra.mxu0 0.0
        %2036 = vmatprep.subr.mxu0 0.0
        %2037 = vmatpush2.xpose.msra.mxu0 0.0
        %2038 = vmatprep.subr.mxu0 0.0
        %2039 = vmatpush2.xpose.msra.mxu0 0.0
        %2040 = vmatprep.subr.mxu0 0.0
        %2041 = vmatpush2.xpose.msra.mxu0 0.0
        %2042 = vmatprep.subr.mxu0 0.0
        %2043 = vmatpush2.xpose.msra.mxu0 0.0
        %2044 = vmatprep.subr.mxu0 0.0
        %2045 = vmatpush2.xpose.msra.mxu0 0.0
        %2046 = vmatprep.subr.mxu0 0.0
        %2047 = vmatpush2.xpose.msra.mxu0 0.0
        %2048 = vmatprep.subr.mxu0 0.0
        %2049 = vmatpush2.xpose.msra.mxu0 0.0
        %2050 = vmatprep.subr.mxu0 0.0
        %2051 = vmatpush2.xpose.msra.mxu0 0.0
        %2052 = vmatprep.subr.mxu0 0.0
        %2053 = vmatpush2.xpose.msra.mxu0 0.0
        %2054 = vmatprep.subr.mxu0 0.0
        %2055 = vmatpush2.xpose.msra.mxu0 0.0
        %2056 = vmatprep.subr.mxu0 0.0
        %2057 = vmatpush2.xpose.msra.mxu0 0.0
        %2058 = vmatprep.subr.mxu0 0.0
        %2059 = vmatpush2.xpose.msra.mxu0 0.0
        %2060 = vmatprep.subr.mxu0 0.0
        %2061 = vmatpush2.xpose.msra.mxu0 0.0
        %2062 = vmatprep.mubr.f32.mxu0 0.0
        %2063 = vmatmul.mubr.f32.gmra.mxu0 %v1994
        %v2064 = vpop.f32.mrf.mxu0
        %v2065 = vadd.f32 0.0, %v2064
        %v2066 = vpop.f32.mrf.mxu0
        %2067 = vdwg.mxu0
        %v2068 = vmul.f32 %v2065, 0.25
        %v2069 = vadd.f32 %v2068, %v1151
        %v2070 = vsel %vm1154, %v2069, -inf
        %2071 = vmax.xlane.f32.xlu0 %v2070
        %v2072 = vpop.xlane.xlu0 %2071
        %v2073 = vsub.f32 %v2069, %v2072
        %v2074 = vmul.f32 %v2073, 1.442695
        %v2075 = vpow.pop %v2074
        %v2076 = vsel %vm1154, %v2075, 0.0
        %2077 = vadd.xlane.f32.xlu0 %v2076
        %v2078 = vpop.xlane.xlu0 %2077
        %v2079 = vrcp.pop %v2078
        %v2080 = vmul.f32 %v2075, %v2079
        %2081 = vrot.lane.b32.xlu0 %v1821, 48
        %v2082 = vpop.permute.xlu0 %2081
        %v2085 = vsel %vm1154, %v2080, 0
        %2087 = vmatprep.subr.mxu0 0.0
        %2088 = vmatpush1.msra.mxu0 0.0
        %2089 = vmatprep.subr.mxu0 0.0
        %2090 = vmatpush1.msra.mxu0 0.0
        %2091 = vmatprep.subr.mxu0 0.0
        %2092 = vmatpush1.msra.mxu0 0.0
        %2093 = vmatprep.subr.mxu0 0.0
        %2094 = vmatpush1.msra.mxu0 0.0
        %2095 = vmatprep.subr.mxu0 0.0
        %2096 = vmatpush1.msra.mxu0 0.0
        %2097 = vmatprep.subr.mxu0 0.0
        %2098 = vmatpush1.msra.mxu0 0.0
        %2099 = vmatprep.subr.mxu0 0.0
        %2100 = vmatpush1.msra.mxu0 0.0
        %2101 = vmatprep.subr.mxu0 0.0
        %2102 = vmatpush1.msra.mxu0 0.0
        %2103 = vmatprep.subr.mxu0 0.0
        %2104 = vmatpush1.msra.mxu0 0.0
        %2105 = vmatprep.subr.mxu0 0.0
        %2106 = vmatpush1.msra.mxu0 0.0
        %2107 = vmatprep.subr.mxu0 0.0
        %2108 = vmatpush1.msra.mxu0 0.0
        %2109 = vmatprep.subr.mxu0 0.0
        %2110 = vmatpush1.msra.mxu0 0.0
        %2111 = vmatprep.subr.mxu0 0.0
        %2112 = vmatpush1.msra.mxu0 0.0
        %2113 = vmatprep.subr.mxu0 0.0
        %2114 = vmatpush1.msra.mxu0 0.0
        %2115 = vmatprep.subr.mxu0 0.0
        %2116 = vmatpush1.msra.mxu0 0.0
        %2117 = vmatprep.subr.mxu0 0.0
        %2118 = vmatpush1.msra.mxu0 %v2082
        %2119 = vmatprep.subr.mxu0 0.0
        %2120 = vmatpush2.msra.mxu0 0.0
        %2121 = vmatprep.subr.mxu0 0.0
        %2122 = vmatpush2.msra.mxu0 0.0
        %2123 = vmatprep.subr.mxu0 0.0
        %2124 = vmatpush2.msra.mxu0 0.0
        %2125 = vmatprep.subr.mxu0 0.0
        %2126 = vmatpush2.msra.mxu0 0.0
        %2127 = vmatprep.subr.mxu0 0.0
        %2128 = vmatpush2.msra.mxu0 0.0
        %2129 = vmatprep.subr.mxu0 0.0
        %2130 = vmatpush2.msra.mxu0 0.0
        %2131 = vmatprep.subr.mxu0 0.0
        %2132 = vmatpush2.msra.mxu0 0.0
        %2133 = vmatprep.subr.mxu0 0.0
        %2134 = vmatpush2.msra.mxu0 0.0
        %2135 = vmatprep.subr.mxu0 0.0
        %2136 = vmatpush2.msra.mxu0 0.0
        %2137 = vmatprep.subr.mxu0 0.0
        %2138 = vmatpush2.msra.mxu0 0.0
        %2139 = vmatprep.subr.mxu0 0.0
        %2140 = vmatpush2.msra.mxu0 0.0
        %2141 = vmatprep.subr.mxu0 0.0
        %2142 = vmatpush2.msra.mxu0 0.0
        %2143 = vmatprep.subr.mxu0 0.0
        %2144 = vmatpush2.msra.mxu0 0.0
        %2145 = vmatprep.subr.mxu0 0.0
        %2146 = vmatpush2.msra.mxu0 0.0
        %2147 = vmatprep.subr.mxu0 0.0
        %2148 = vmatpush2.msra.mxu0 0.0
        %2149 = vmatprep.subr.mxu0 0.0
        %2150 = vmatpush2.msra.mxu0 0.0
        %2151 = vmatprep.mubr.f32.mxu0 0.0
        %2152 = vmatmul.mubr.f32.gmra.mxu0 %v2085
        %v2153 = vpop.f32.mrf.mxu0
        %v2154 = vadd.f32 0.0, %v2153
        %v2155 = vpop.f32.mrf.mxu0
        %2156 = vdwg.mxu0
        %2158 = vrot.lane.b32.xlu0 %v2154, 16
        %v2159 = vpop.permute.xlu0 %2158
        %v2161 = vsel %vm1071, %v1987, %v2159
        %v2162 = vld [vmem:[%s41] sm:$0xff]
        %v2163 = vld [vmem:[%s41 + $0x8] sm:$0xff]
        %v2164 = vld [vmem:[%s41 + $0x10] sm:$0xff]
        %v2165 = vld [vmem:[%s41 + $0x18] sm:$0xff]
        %v2166 = vld [vmem:[%s43] sm:$0x1]
        %v2168 = vlaneseq
        %v2169 = vshrl.u32 %v2168, 7
        %v2170 = vsub.s32 0, %v2169
        %v2171 = vrot.slane %v2166, %v2170
        %v2174 = vsel %vm952, %v2161, 0
        %2176 = vmatprep.subr.mxu0 0.0
        %2177 = vmatpush1.msra.mxu0 0.0
        %2178 = vmatprep.subr.mxu0 0.0
        %2179 = vmatpush1.msra.mxu0 0.0
        %2180 = vmatprep.subr.mxu0 0.0
        %2181 = vmatpush1.msra.mxu0 0.0
        %2182 = vmatprep.subr.mxu0 0.0
        %2183 = vmatpush1.msra.mxu0 0.0
        %2184 = vmatprep.subr.mxu0 0.0
        %2185 = vmatpush1.msra.mxu0 0.0
        %2186 = vmatprep.subr.mxu0 0.0
        %2187 = vmatpush1.msra.mxu0 0.0
        %2188 = vmatprep.subr.mxu0 0.0
        %2189 = vmatpush1.msra.mxu0 0.0
        %2190 = vmatprep.subr.mxu0 0.0
        %2191 = vmatpush1.msra.mxu0 0.0
        %2192 = vmatprep.subr.mxu0 0.0
        %2193 = vmatpush1.msra.mxu0 0.0
        %2194 = vmatprep.subr.mxu0 0.0
        %2195 = vmatpush1.msra.mxu0 0.0
        %2196 = vmatprep.subr.mxu0 0.0
        %2197 = vmatpush1.msra.mxu0 0.0
        %2198 = vmatprep.subr.mxu0 0.0
        %2199 = vmatpush1.msra.mxu0 0.0
        %2200 = vmatprep.subr.mxu0 0.0
        %2201 = vmatpush1.msra.mxu0 %v2165
        %2202 = vmatprep.subr.mxu0 0.0
        %2203 = vmatpush1.msra.mxu0 %v2164
        %2204 = vmatprep.subr.mxu0 0.0
        %2205 = vmatpush1.msra.mxu0 %v2163
        %2206 = vmatprep.subr.mxu0 0.0
        %2207 = vmatpush1.msra.mxu0 %v2162
        %2208 = vmatprep.subr.mxu0 0.0
        %2209 = vmatpush2.msra.mxu0 0.0
        %2210 = vmatprep.subr.mxu0 0.0
        %2211 = vmatpush2.msra.mxu0 0.0
        %2212 = vmatprep.subr.mxu0 0.0
        %2213 = vmatpush2.msra.mxu0 0.0
        %2214 = vmatprep.subr.mxu0 0.0
        %2215 = vmatpush2.msra.mxu0 0.0
        %2216 = vmatprep.subr.mxu0 0.0
        %2217 = vmatpush2.msra.mxu0 0.0
        %2218 = vmatprep.subr.mxu0 0.0
        %2219 = vmatpush2.msra.mxu0 0.0
        %2220 = vmatprep.subr.mxu0 0.0
        %2221 = vmatpush2.msra.mxu0 0.0
        %2222 = vmatprep.subr.mxu0 0.0
        %2223 = vmatpush2.msra.mxu0 0.0
        %2224 = vmatprep.subr.mxu0 0.0
        %2225 = vmatpush2.msra.mxu0 0.0
        %2226 = vmatprep.subr.mxu0 0.0
        %2227 = vmatpush2.msra.mxu0 0.0
        %2228 = vmatprep.subr.mxu0 0.0
        %2229 = vmatpush2.msra.mxu0 0.0
        %2230 = vmatprep.subr.mxu0 0.0
        %2231 = vmatpush2.msra.mxu0 0.0
        %2232 = vmatprep.subr.mxu0 0.0
        %2233 = vmatpush2.msra.mxu0 0.0
        %2234 = vmatprep.subr.mxu0 0.0
        %2235 = vmatpush2.msra.mxu0 0.0
        %2236 = vmatprep.subr.mxu0 0.0
        %2237 = vmatpush2.msra.mxu0 0.0
        %2238 = vmatprep.subr.mxu0 0.0
        %2239 = vmatpush2.msra.mxu0 0.0
        %2240 = vmatprep.mubr.f32.mxu0 0.0
        %2241 = vmatmul.mubr.f32.gmra.mxu0 %v2174
        %v2242 = vpop.f32.mrf.mxu0
        %v2243 = vadd.f32 %v2171, %v2242
        %v2244 = vpop.f32.mrf.mxu0
        %2245 = vdwg.mxu0
        %v2246 = vadd.f32 %v2243, %v1739
        %v2247 = vld [vmem:[%s45] sm:$0x1]
        %v2248 = vld [vmem:[%s47] sm:$0x1]
        %v2249 = vsel %vm952, %v2246, 0.0
        %2250 = vadd.xlane.f32.xlu0 %v2249
        %v2251 = vpop.xlane.xlu0 %2250
        %v2252 = vmul.f32 %v2251, %v956
        %v2253 = vsub.f32 %v2246, %v2252
        %v2254 = vmul.f32 %v2253, %v2253
        %v2255 = vsel %vm952, %v2254, 0.0
        %2256 = vadd.xlane.f32.xlu0 %v2255
        %v2257 = vpop.xlane.xlu0 %2256
        %v2258 = vmul.f32 %v2257, %v956
        %v2259 = vadd.f32 %v2258, 1e-12
        %v2260 = vrsqrt.pop %v2259
        %v2261 = vmul.f32 %v2253, %v2260
        %v2263 = vlaneseq
        %v2264 = vshrl.u32 %v2263, 7
        %v2265 = vsub.s32 0, %v2264
        %v2266 = vrot.slane %v2247, %v2265
        %v2268 = vmul.f32 %v2261, %v2266
        %v2270 = vlaneseq
        %v2271 = vshrl.u32 %v2270, 7
        %v2272 = vsub.s32 0, %v2271
        %v2273 = vrot.slane %v2248, %v2272
        %v2275 = vadd.f32 %v2268, %v2273
        %v2276 = vld [vmem:[%s49] sm:$0xff]
        %v2277 = vld [vmem:[%s49 + $0x8] sm:$0xff]
        %v2278 = vld [vmem:[%s49 + $0x10] sm:$0xff]
        %v2279 = vld [vmem:[%s49 + $0x18] sm:$0xff]
        %v2280 = vld [vmem:[%s51] sm:$0x1]
        %v2282 = vlaneseq
        %v2283 = vshrl.u32 %v2282, 7
        %v2284 = vsub.s32 0, %v2283
        %v2285 = vrot.slane %v2280, %v2284
        %v2288 = vsel %vm952, %v2275, 0
        %2290 = vmatprep.subr.mxu0 0.0
        %2291 = vmatpush1.msra.mxu0 0.0
        %2292 = vmatprep.subr.mxu0 0.0
        %2293 = vmatpush1.msra.mxu0 0.0
        %2294 = vmatprep.subr.mxu0 0.0
        %2295 = vmatpush1.msra.mxu0 0.0
        %2296 = vmatprep.subr.mxu0 0.0
        %2297 = vmatpush1.msra.mxu0 0.0
        %2298 = vmatprep.subr.mxu0 0.0
        %2299 = vmatpush1.msra.mxu0 0.0
        %2300 = vmatprep.subr.mxu0 0.0
        %2301 = vmatpush1.msra.mxu0 0.0
        %2302 = vmatprep.subr.mxu0 0.0
        %2303 = vmatpush1.msra.mxu0 0.0
        %2304 = vmatprep.subr.mxu0 0.0
        %2305 = vmatpush1.msra.mxu0 0.0
        %2306 = vmatprep.subr.mxu0 0.0
        %2307 = vmatpush1.msra.mxu0 0.0
        %2308 = vmatprep.subr.mxu0 0.0
        %2309 = vmatpush1.msra.mxu0 0.0
        %2310 = vmatprep.subr.mxu0 0.0
        %2311 = vmatpush1.msra.mxu0 0.0
        %2312 = vmatprep.subr.mxu0 0.0
        %2313 = vmatpush1.msra.mxu0 0.0
        %2314 = vmatprep.subr.mxu0 0.0
        %2315 = vmatpush1.msra.mxu0 %v2279
        %2316 = vmatprep.subr.mxu0 0.0
        %2317 = vmatpush1.msra.mxu0 %v2278
        %2318 = vmatprep.subr.mxu0 0.0
        %2319 = vmatpush1.msra.mxu0 %v2277
        %2320 = vmatprep.subr.mxu0 0.0
        %2321 = vmatpush1.msra.mxu0 %v2276
        %2322 = vmatprep.subr.mxu0 0.0
        %2323 = vmatpush2.msra.mxu0 0.0
        %2324 = vmatprep.subr.mxu0 0.0
        %2325 = vmatpush2.msra.mxu0 0.0
        %2326 = vmatprep.subr.mxu0 0.0
        %2327 = vmatpush2.msra.mxu0 0.0
        %2328 = vmatprep.subr.mxu0 0.0
        %2329 = vmatpush2.msra.mxu0 0.0
        %2330 = vmatprep.subr.mxu0 0.0
        %2331 = vmatpush2.msra.mxu0 0.0
        %2332 = vmatprep.subr.mxu0 0.0
        %2333 = vmatpush2.msra.mxu0 0.0
        %2334 = vmatprep.subr.mxu0 0.0
        %2335 = vmatpush2.msra.mxu0 0.0
        %2336 = vmatprep.subr.mxu0 0.0
        %2337 = vmatpush2.msra.mxu0 0.0
        %2338 = vmatprep.subr.mxu0 0.0
        %2339 = vmatpush2.msra.mxu0 0.0
        %2340 = vmatprep.subr.mxu0 0.0
        %2341 = vmatpush2.msra.mxu0 0.0
        %2342 = vmatprep.subr.mxu0 0.0
        %2343 = vmatpush2.msra.mxu0 0.0
        %2344 = vmatprep.subr.mxu0 0.0
        %2345 = vmatpush2.msra.mxu0 0.0
        %2346 = vmatprep.subr.mxu0 0.0
        %2347 = vmatpush2.msra.mxu0 0.0
        %2348 = vmatprep.subr.mxu0 0.0
        %2349 = vmatpush2.msra.mxu0 0.0
        %2350 = vmatprep.subr.mxu0 0.0
        %2351 = vmatpush2.msra.mxu0 0.0
        %2352 = vmatprep.subr.mxu0 0.0
        %2353 = vmatpush2.msra.mxu0 0.0
        %2354 = vmatprep.mubr.f32.mxu0 0.0
        %2355 = vmatmul.mubr.f32.gmra.mxu0 %v2288
        %v2356 = vpop.f32.mrf.mxu0
        %v2357 = vadd.f32 %v2285, %v2356
        %v2358 = vpop.f32.mrf.mxu0
        %2359 = vdwg.mxu0
        %v2360 = vmul.f32 %v2357, %v2357
        %v2361 = vmul.f32 %v2357, %v2360
        %v2362 = vmul.f32 %v2361, 0.044715
        %v2363 = vadd.f32 %v2357, %v2362
        %v2364 = vmul.f32 %v2363, 0.7978846
        %v2365 = vtanh.pop %v2364
        %v2366 = vadd.f32 %v2365, 1.0
        %v2367 = vmul.f32 %v2366, 0.5
        %v2368 = vmul.f32 %v2357, %v2367
        %v2369 = vld [vmem:[%s53] sm:$0xff]
        %v2370 = vld [vmem:[%s53 + $0x8] sm:$0xff]
        %v2371 = vld [vmem:[%s53 + $0x10] sm:$0xff]
        %v2372 = vld [vmem:[%s53 + $0x18] sm:$0xff]
        %v2373 = vld [vmem:[%s53 + $0x20] sm:$0xff]
        %v2374 = vld [vmem:[%s53 + $0x28] sm:$0xff]
        %v2375 = vld [vmem:[%s53 + $0x30] sm:$0xff]
        %v2376 = vld [vmem:[%s53 + $0x38] sm:$0xff]
        %v2377 = vld [vmem:[%s55] sm:$0x1]
        %v2379 = vlaneseq
        %v2380 = vshrl.u32 %v2379, 7
        %v2381 = vsub.s32 0, %v2380
        %v2382 = vrot.slane %v2377, %v2381
        %v2385 = vsel %vm1636, %v2368, 0
        %2387 = vmatprep.subr.mxu0 0.0
        %2388 = vmatpush1.msra.mxu0 0.0
        %2389 = vmatprep.subr.mxu0 0.0
        %2390 = vmatpush1.msra.mxu0 0.0
        %2391 = vmatprep.subr.mxu0 0.0
        %2392 = vmatpush1.msra.mxu0 0.0
        %2393 = vmatprep.subr.mxu0 0.0
        %2394 = vmatpush1.msra.mxu0 0.0
        %2395 = vmatprep.subr.mxu0 0.0
        %2396 = vmatpush1.msra.mxu0 0.0
        %2397 = vmatprep.subr.mxu0 0.0
        %2398 = vmatpush1.msra.mxu0 0.0
        %2399 = vmatprep.subr.mxu0 0.0
        %2400 = vmatpush1.msra.mxu0 0.0
        %2401 = vmatprep.subr.mxu0 0.0
        %2402 = vmatpush1.msra.mxu0 0.0
        %2403 = vmatprep.subr.mxu0 0.0
        %2404 = vmatpush1.msra.mxu0 %v2376
        %2405 = vmatprep.subr.mxu0 0.0
        %2406 = vmatpush1.msra.mxu0 %v2375
        %2407 = vmatprep.subr.mxu0 0.0
        %2408 = vmatpush1.msra.mxu0 %v2374
        %2409 = vmatprep.subr.mxu0 0.0
        %2410 = vmatpush1.msra.mxu0 %v2373
        %2411 = vmatprep.subr.mxu0 0.0
        %2412 = vmatpush1.msra.mxu0 %v2372
        %2413 = vmatprep.subr.mxu0 0.0
        %2414 = vmatpush1.msra.mxu0 %v2371
        %2415 = vmatprep.subr.mxu0 0.0
        %2416 = vmatpush1.msra.mxu0 %v2370
        %2417 = vmatprep.subr.mxu0 0.0
        %2418 = vmatpush1.msra.mxu0 %v2369
        %2419 = vmatprep.subr.mxu0 0.0
        %2420 = vmatpush2.msra.mxu0 0.0
        %2421 = vmatprep.subr.mxu0 0.0
        %2422 = vmatpush2.msra.mxu0 0.0
        %2423 = vmatprep.subr.mxu0 0.0
        %2424 = vmatpush2.msra.mxu0 0.0
        %2425 = vmatprep.subr.mxu0 0.0
        %2426 = vmatpush2.msra.mxu0 0.0
        %2427 = vmatprep.subr.mxu0 0.0
        %2428 = vmatpush2.msra.mxu0 0.0
        %2429 = vmatprep.subr.mxu0 0.0
        %2430 = vmatpush2.msra.mxu0 0.0
        %2431 = vmatprep.subr.mxu0 0.0
        %2432 = vmatpush2.msra.mxu0 0.0
        %2433 = vmatprep.subr.mxu0 0.0
        %2434 = vmatpush2.msra.mxu0 0.0
        %2435 = vmatprep.subr.mxu0 0.0
        %2436 = vmatpush2.msra.mxu0 0.0
        %2437 = vmatprep.subr.mxu0 0.0
        %2438 = vmatpush2.msra.mxu0 0.0
        %2439 = vmatprep.subr.mxu0 0.0
        %2440 = vmatpush2.msra.mxu0 0.0
        %2441 = vmatprep.subr.mxu0 0.0
        %2442 = vmatpush2.msra.mxu0 0.0
        %2443 = vmatprep.subr.mxu0 0.0
        %2444 = vmatpush2.msra.mxu0 0.0
        %2445 = vmatprep.subr.mxu0 0.0
        %2446 = vmatpush2.msra.mxu0 0.0
        %2447 = vmatprep.subr.mxu0 0.0
        %2448 = vmatpush2.msra.mxu0 0.0
        %2449 = vmatprep.subr.mxu0 0.0
        %2450 = vmatpush2.msra.mxu0 0.0
        %2451 = vmatprep.mubr.f32.mxu0 0.0
        %2452 = vmatmul.mubr.f32.gmra.mxu0 %v2385
        %v2453 = vpop.f32.mrf.mxu0
        %v2454 = vadd.f32 %v2382, %v2453
        %v2455 = vpop.f32.mrf.mxu0
        %2456 = vdwg.mxu0
        %v2457 = vadd.f32 %v2454, %v2275
        %v2458 = vld [vmem:[%s57] sm:$0x1]
        %v2459 = vld [vmem:[%s59] sm:$0x1]
        %v2460 = vsel %vm952, %v2457, 0.0
        %2461 = vadd.xlane.f32.xlu0 %v2460
        %v2462 = vpop.xlane.xlu0 %2461
        %v2463 = vmul.f32 %v2462, %v956
        %v2464 = vsub.f32 %v2457, %v2463
        %v2465 = vmul.f32 %v2464, %v2464
        %v2466 = vsel %vm952, %v2465, 0.0
        %2467 = vadd.xlane.f32.xlu0 %v2466
        %v2468 = vpop.xlane.xlu0 %2467
        %v2469 = vmul.f32 %v2468, %v956
        %v2470 = vadd.f32 %v2469, 1e-12
        %v2471 = vrsqrt.pop %v2470
        %v2472 = vmul.f32 %v2464, %v2471
        %v2474 = vlaneseq
        %v2475 = vshrl.u32 %v2474, 7
        %v2476 = vsub.s32 0, %v2475
        %v2477 = vrot.slane %v2458, %v2476
        %v2479 = vmul.f32 %v2472, %v2477
        %v2481 = vlaneseq
        %v2482 = vshrl.u32 %v2481, 7
        %v2483 = vsub.s32 0, %v2482
        %v2484 = vrot.slane %v2459, %v2483
        %v2486 = vadd.f32 %v2479, %v2484
        %v2488 = vsel %vm1154, %v981, 0
        %2490 = vmatprep.subr.mxu0 0.0
        %2491 = vmatpush1.msra.mxu0 0.0
        %2492 = vmatprep.subr.mxu0 0.0
        %2493 = vmatpush1.msra.mxu0 0.0
        %2494 = vmatprep.subr.mxu0 0.0
        %2495 = vmatpush1.msra.mxu0 0.0
        %2496 = vmatprep.subr.mxu0 0.0
        %2497 = vmatpush1.msra.mxu0 0.0
        %2498 = vmatprep.subr.mxu0 0.0
        %2499 = vmatpush1.msra.mxu0 0.0
        %2500 = vmatprep.subr.mxu0 0.0
        %2501 = vmatpush1.msra.mxu0 0.0
        %2502 = vmatprep.subr.mxu0 0.0
        %2503 = vmatpush1.msra.mxu0 0.0
        %2504 = vmatprep.subr.mxu0 0.0
        %2505 = vmatpush1.msra.mxu0 0.0
        %2506 = vmatprep.subr.mxu0 0.0
        %2507 = vmatpush1.msra.mxu0 0.0
        %2508 = vmatprep.subr.mxu0 0.0
        %2509 = vmatpush1.msra.mxu0 0.0
        %2510 = vmatprep.subr.mxu0 0.0
        %2511 = vmatpush1.msra.mxu0 0.0
        %2512 = vmatprep.subr.mxu0 0.0
        %2513 = vmatpush1.msra.mxu0 0.0
        %2514 = vmatprep.subr.mxu0 0.0
        %2515 = vmatpush1.msra.mxu0 0.0
        %2516 = vmatprep.subr.mxu0 0.0
        %2517 = vmatpush1.msra.mxu0 0.0
        %2518 = vmatprep.subr.mxu0 0.0
        %2519 = vmatpush1.msra.mxu0 0.0
        %2520 = vmatprep.subr.mxu0 0.0
        %2521 = vmatpush1.msra.mxu0 %v2486
        %2522 = vmatprep.subr.mxu0 0.0
        %2523 = vmatpush2.msra.mxu0 0.0
        %2524 = vmatprep.subr.mxu0 0.0
        %2525 = vmatpush2.msra.mxu0 0.0
        %2526 = vmatprep.subr.mxu0 0.0
        %2527 = vmatpush2.msra.mxu0 0.0
        %2528 = vmatprep.subr.mxu0 0.0
        %2529 = vmatpush2.msra.mxu0 0.0
        %2530 = vmatprep.subr.mxu0 0.0
        %2531 = vmatpush2.msra.mxu0 0.0
        %2532 = vmatprep.subr.mxu0 0.0
        %2533 = vmatpush2.msra.mxu0 0.0
        %2534 = vmatprep.subr.mxu0 0.0
        %2535 = vmatpush2.msra.mxu0 0.0
        %2536 = vmatprep.subr.mxu0 0.0
        %2537 = vmatpush2.msra.mxu0 0.0
        %2538 = vmatprep.subr.mxu0 0.0
        %2539 = vmatpush2.msra.mxu0 0.0
        %2540 = vmatprep.subr.mxu0 0.0
        %2541 = vmatpush2.msra.mxu0 0.0
        %2542 = vmatprep.subr.mxu0 0.0
        %2543 = vmatpush2.msra.mxu0 0.0
        %2544 = vmatprep.subr.mxu0 0.0
        %2545 = vmatpush2.msra.mxu0 0.0
        %2546 = vmatprep.subr.mxu0 0.0
        %2547 = vmatpush2.msra.mxu0 0.0
        %2548 = vmatprep.subr.mxu0 0.0
        %2549 = vmatpush2.msra.mxu0 0.0
        %2550 = vmatprep.subr.mxu0 0.0
        %2551 = vmatpush2.msra.mxu0 0.0
        %2552 = vmatprep.subr.mxu0 0.0
        %2553 = vmatpush2.msra.mxu0 0.0
        %2554 = vmatprep.mubr.f32.mxu0 0.0
        %2555 = vmatmul.mubr.f32.gmra.mxu0 %v2488
        %v2556 = vpop.f32.mrf.mxu0
        %v2557 = vadd.f32 0.0, %v2556
        %v2558 = vpop.f32.mrf.mxu0
        %2559 = vdwg.mxu0
        %vm2560 = vcmask 57344
        %v2561 = vsel %vm2560, %v981, 0.0
        %2562 = vadd.xlane.f32.xlu0 %v2561
        %v2563 = vpop.xlane.xlu0 %2562
        %v2564 = vrot.slane %v2563, 4
        %v2565 = vadd.f32 %v2563, %v2564
        %v2566 = vrot.slane %v2565, 2
        %v2567 = vadd.f32 %v2565, %v2566
        %v2568 = vrot.slane %v2567, 1
        %v2569 = vadd.f32 %v2567, %v2568
        %s2570 = vtos %v2569
        %s2571 = smax.f32 %s2570, 1.0
        %v2572 = vstv %s2571
        %v2573 = vrcp.pop %v2572
        %v2574 = vmul.f32 %v2557, %v2573
        %vm2575 = vcmask 253952
        %2576 = vst.msk [vmem:[%s931] sm:$0x1] %vm2575, %v2574
        %s2577 = sand.u32 %s723, 1
        %s2578 = scalar_lea.sflag [#allocation3], %s2577
        %s2579 = sand.u32 %s723, 1
        %s2580 = scalar_lea.vmem [#allocation2], %s2579
        // Predicated region
        $region141: #{bert_emb_forward.1} parent=139 // pred_check
          %p2581 = pneg %p733
        $region142: #{bert_emb_forward.1} parent=139 // pred_check_branch
          %2583 = sbr.rel (%p2581) target = $region144
        $region143: #{bert_emb_forward.1} parent=139 // pred_region
          %s2585 = ssub.s32 16, 16
          %2586 = vsyncadd %s2578, %s2585
          %s2587 = smul.addr %s75, 16
          %s2588 = scalar_lea.hbm %s61, %s2587
          %s2590 = sshll.u32 %s2580, 4
          %s2591 = int_to_ptr.vmem [resolvable:$true] %s2590
          %2593 = dma.vmem_to_hbm [thread:$0]  %s2591, 16, %s2588, %s2578
        $region144: #{bert_emb_forward.1} parent=139 // pred_fallthru
          _
      $region140: #{bert_emb_forward.1} parent=5 // pred_fallthru
        _
      %p2594 = scmp.le.s32.totalorder 2, %s70
      // Predicated region
      $region145: #{bert_emb_forward.1} parent=5 // pred_check
        %p2595 = pneg %p2594
      $region146: #{bert_emb_forward.1} parent=5 // pred_check_branch
        %2597 = sbr.rel (%p2595) target = $region148
      $region147: #{bert_emb_forward.1} parent=5 // pred_region
        %s2598 = ssub.s32 %s70, 2
        // Predicated region
        $region149: #{bert_emb_forward.1} parent=147 // pred_check
          %p2599 = pneg %p739
        $region150: #{bert_emb_forward.1} parent=147 // pred_check_branch
          %2601 = sbr.rel (%p2599) target = $region152
        $region151: #{bert_emb_forward.1} parent=147 // pred_region
          %s2602 = sand.u32 %s724, 1
          %s2603 = scalar_lea.sflag [#allocation3], %s2602
          %s2604 = sand.u32 %s724, 1
          %s2605 = scalar_lea.vmem [#allocation2], %s2604
          %2606 = dma.done %s2603, 16
        $region152: #{bert_emb_forward.1} parent=147 // pred_fallthru
          _
      $region148: #{bert_emb_forward.1} parent=5 // pred_fallthru
        _
    $region6: #{bert_emb_forward.1} parent=1 // loop_footer
      %s74 = sadd.s32 1, %s70
    $region7: #{bert_emb_forward.1} parent=1 // loop_footer_branch
      %69 = sbr.rel target = $region3
    $region8: #{bert_emb_forward.1} parent=1 // loop_exit
      _
    %2607 = vsyncpa [#allocation3], 1
    %s2608 = scalar_lea.sflag [#allocation3], 1
    %2609 = vsyncpa %s2608, 1

</llo_original>
